<compile_context>
chip_gen: v6e
topology: v6e:2x2x1
jax: 0.10.0
libtpu: 0.0.40
codegen_flags: <defaults>
</compile_context>

<pallas_src>
import functools

import jax
import jax.numpy as jnp
from jax.experimental import pallas as pl
from jax.experimental.pallas import tpu as pltpu

BN_EPS = 1e-5
LANE = 128


def _round_up(x, m):
    return (x + m - 1) // m * m


def _pick_vmem_limit_bytes():
    """Per-generation scoped-VMEM limit (leave headroom below physical)."""
    cap = 64 * 1024 * 1024                      # conservative fallback (v7x TC)
    try:
        cap = int(getattr(pltpu.get_tpu_info(), "vmem_capacity_bytes", cap))
    except Exception:
        pass
    return min(int(cap * 0.85), 100 * 1024 * 1024)


# ------------------------------ fused kernel ------------------------------- #

def _aspp_fused_kernel(*refs, rates, th, width, dmax, compute_dtype):
    """One grid step = (batch element b, row band i).

    x_ref is one halo'd row band (band_rows, wp, cin).  Produces the
    (th*width, coutp) output tile
      relu( sum_branches relu(conv_b(x)) @ Wproj_b + pool_term[b] + bproj ).
    All patch offsets are band-relative (static), so no program_id math here.
    """
    if rates:
        (x_ref, w0_ref, b0_ref, w3_ref, b3_ref,
         wproj_ref, pool_ref, bproj_ref, o_ref) = refs
    else:
        x_ref, w0_ref, b0_ref, wproj_ref, pool_ref, bproj_ref, o_ref = refs
        w3_ref = b3_ref = None

    cin = x_ref.shape[-1]
    tm = th * width

    # --- branch 0: 1x1 conv (+ folded BN + ReLU), immediately projected -----
    x0 = x_ref[dmax:dmax + th, dmax:dmax + width, :].reshape(tm, cin)
    y0 = jnp.dot(x0, w0_ref[...], preferred_element_type=jnp.float32)
    y0 = jnp.maximum(y0 + b0_ref[...], 0.0)
    acc = jnp.dot(y0.astype(compute_dtype), wproj_ref[0],
                  preferred_element_type=jnp.float32)

    # --- dilated 3x3 branches: per-kh im2col row -> one bigger-K MXU dot ----
    for ri, d in enumerate(rates):
        yb = None
        for kh in range(3):
            rs = dmax + (kh - 1) * d
            slab = x_ref[rs:rs + th, :, :]                    # (th, wp, cin)
            cols = [slab[:, dmax + (kw - 1) * d: dmax + (kw - 1) * d + width, :]
                    for kw in range(3)]
            # TODO(synk): the column offsets are not sublane-aligned in
            # general; a pltpu.roll-based shift would move this relayout
            # work to the XLU slot.
            patch = jnp.concatenate(cols, axis=-1).reshape(tm, 3 * cin)
            part = jnp.dot(patch, w3_ref[ri, kh],
                           preferred_element_type=jnp.float32)
            yb = part if yb is None else yb + part
        yb = jnp.maximum(yb + b3_ref[ri:ri + 1, :], 0.0)
        acc = acc + jnp.dot(yb.astype(compute_dtype), wproj_ref[1 + ri],
                            preferred_element_type=jnp.float32)

    # --- pooling branch (spatially constant) + projection bias + ReLU -------
    acc = acc + pool_ref[...] + bproj_ref[...]
    o_ref[...] = jnp.maximum(acc, 0.0).astype(o_ref.dtype)
    # TODO(synk): nn.Dropout(0.3) is identity in eval mode; train-mode RNG
    # masking is not applied.


# --------------------------- parameter handling ---------------------------- #

def _fold_bn(w, gamma, beta, mean, var):
    """Fold eval-mode BatchNorm into a weight whose LAST axis is Cout."""
    scale = gamma / jnp.sqrt(var + BN_EPS)
    return w * scale, beta - mean * scale


def _bn_init(key, c):
    k0, k1, k2, k3 = jax.random.split(key, 4)
    gamma = 1.0 + 0.1 * jax.random.normal(k0, (c,), jnp.float32)
    beta = 0.1 * jax.random.normal(k1, (c,), jnp.float32)
    mean = 0.1 * jax.random.normal(k2, (c,), jnp.float32)
    var = jnp.abs(1.0 + 0.1 * jax.random.normal(k3, (c,), jnp.float32))
    return gamma, beta, mean, var


def init_aspp_params(key, in_channels, atrous_rates, out_channels):
    """Deterministic parameters with the same shapes as the PyTorch module."""
    n_branches = 1 + len(atrous_rates) + 1
    keys = iter(jax.random.split(key, 2 * (n_branches + 1)))
    params = {}

    w = 0.1 * jax.random.normal(next(keys), (out_channels, in_channels, 1, 1),
                                jnp.float32)
    params["b0"] = {"w": w, "bn": _bn_init(next(keys), out_channels)}

    for i, _ in enumerate(atrous_rates):
        w = 0.1 * jax.random.normal(next(keys),
                                    (out_channels, in_channels, 3, 3),
                                    jnp.float32)
        params[f"r{i}"] = {"w": w, "bn": _bn_init(next(keys), out_channels)}

    w = 0.1 * jax.random.normal(next(keys), (out_channels, in_channels, 1, 1),
                                jnp.float32)
    params["pool"] = {"w": w, "bn": _bn_init(next(keys), out_channels)}

    w = 0.1 * jax.random.normal(
        next(keys), (out_channels, n_branches * out_channels, 1, 1),
        jnp.float32)
    params["proj"] = {"w": w, "bn": _bn_init(next(keys), out_channels)}
    return params


def _conv1x1_mat(w_oi11):
    cout, cin = w_oi11.shape[:2]
    return jnp.transpose(w_oi11.reshape(cout, cin), (1, 0))        # (Cin, Cout)


# ------------------------------ ASPP forward ------------------------------- #

def aspp_forward_nhwc(x, params, atrous_rates, *, rows_per_block=None,
                      compute_dtype=jnp.bfloat16, out_dtype=jnp.float32):
    """NHWC core.  compute_dtype=bf16 by default (f32 MXU accumulation)."""
    rates = tuple(int(r) for r in atrous_rates)
    n, h, w, cin = x.shape
    cout = params["proj"]["w"].shape[0]
    coutp = _round_up(cout, LANE)            # lane-dense output channels
    dmax = max(rates) if rates else 1

    if rows_per_block is None:
        # Target tm = th*w >= 256 (v6e/v7x MXU M-side), th a multiple of 8.
        rows_per_block = max(8, _round_up(-(-256 // w), 8))
        rows_per_block = min(rows_per_block, _round_up(h, 8))
    th = rows_per_block
    assert th % 8 == 0
    nb = -(-h // th)                         # ceil-div: no tail tile needed
    hp_out = nb * th
    tm = th * w
    band_rows = th + 2 * dmax
    wp = w + 2 * dmax

    def pad_c(a):                            # pad last axis Cout -> Coutp
        return jnp.pad(a, [(0, 0)] * (a.ndim - 1) + [(0, coutp - a.shape[-1])])

    # --- fold BN into conv weights, pad Cout, cast MXU operands -------------
    w0, b0 = _fold_bn(_conv1x1_mat(params["b0"]["w"]), *params["b0"]["bn"])
    w0 = pad_c(w0).astype(compute_dtype)                           # (cin, coutp)
    b0 = pad_c(b0).reshape(1, coutp)

    w3 = b3 = None
    if rates:                                # no dummy zero weights otherwise
        w3_list, b3_list = [], []
        for i, _ in enumerate(rates):
            w_hwio = jnp.transpose(params[f"r{i}"]["w"], (2, 3, 1, 0))  # HWIO
            w_hwio, bm = _fold_bn(w_hwio, *params[f"r{i}"]["bn"])
            w3_list.append(jnp.stack(
                [pad_c(w_hwio[kh].reshape(3 * cin, cout)).astype(compute_dtype)
                 for kh in range(3)]))                          # (3, 3cin, coutp)
            b3_list.append(pad_c(bm))
        w3 = jnp.stack(w3_list)              # (len(rates), 3, 3cin, coutp)
        b3 = jnp.stack(b3_list)              # (len(rates), coutp)

    n_br = 1 + len(rates) + 1
    wproj, bproj = _fold_bn(_conv1x1_mat(params["proj"]["w"]),
                            *params["proj"]["bn"])                 # (n_br*cout, cout)
    slices = [wproj[b * cout:(b + 1) * cout, :] for b in range(n_br)]
    wproj_main = jnp.stack(
        [jnp.pad(s, ((0, coutp - cout), (0, coutp - cout))) for s in slices[:-1]]
    ).astype(compute_dtype)                  # (1 + len(rates), coutp, coutp)
    bproj = pad_c(bproj).reshape(1, coutp)

    # --- pooling branch: spatially constant -> per-batch epilogue bias ------
    wpool, bpool = _fold_bn(_conv1x1_mat(params["pool"]["w"]),
                            *params["pool"]["bn"])
    ypool = jnp.maximum(
        jnp.mean(x.astype(jnp.float32), axis=(1, 2)) @ wpool + bpool, 0.0)
    pool_term = pad_c(ypool @ slices[-1]).reshape(n, 1, coutp)     # (N, 1, coutp)

    # --- halo'd input laid out as overlapping row bands ----------------------
    # The kernel only ever sees one (band_rows, wp, cin) band, so VMEM holds
    # ~2 bands regardless of image size (fits v7x 64 MiB/TC at real sizes).
    # TODO(synk): the banding gather re-writes the activation once (factor
    # (th+2*dmax)/th); at production sizes replace it with a pl.Element
    # overlapping-window BlockSpec or manual DMA straight from the padded
    # image, and additionally tile Cin for very large in_channels.
    x_c = x.astype(compute_dtype)
    x_pad = jnp.pad(x_c, ((0, 0), (dmax, hp_out - h + dmax), (dmax, dmax), (0, 0)))
    row_idx = jnp.arange(nb)[:, None] * th + jnp.arange(band_rows)[None, :]
    x_bands = jnp.take(x_pad, row_idx, axis=1)       # (n, nb, band_rows, wp, cin)
    x_bands = x_bands.reshape(n * nb, band_rows, wp, cin)

    kernel = functools.partial(
        _aspp_fused_kernel, rates=rates, th=th, width=w, dmax=dmax,
        compute_dtype=compute_dtype)

    # Streamed band: explicit depth-2 buffering (weights keep constant index
    # maps so they stay VMEM-resident across the band axis).
    try:
        x_spec = pl.BlockSpec((None, band_rows, wp, cin),
                              lambda b, i: (b * nb + i, 0, 0, 0),
                              pipeline_mode=pl.Buffered(2))
    except Exception:
        x_spec = pl.BlockSpec((None, band_rows, wp, cin),
                              lambda b, i: (b * nb + i, 0, 0, 0))

    in_specs = [x_spec,
                pl.BlockSpec((cin, coutp), lambda b, i: (0, 0)),
                pl.BlockSpec((1, coutp), lambda b, i: (0, 0))]
    inputs = [x_bands, w0, b0]
    if rates:
        in_specs += [pl.BlockSpec((len(rates), 3, 3 * cin, coutp),
                                  lambda b, i: (0, 0, 0, 0)),
                     pl.BlockSpec((len(rates), coutp), lambda b, i: (0, 0))]
        inputs += [w3, b3]
    in_specs += [pl.BlockSpec((n_br - 1, coutp, coutp), lambda b, i: (0, 0, 0)),
                 pl.BlockSpec((None, 1, coutp), lambda b, i: (b, 0, 0)),
                 pl.BlockSpec((1, coutp), lambda b, i: (0, 0))]
    inputs += [wproj_main, pool_term, bproj]

    out2d = pl.pallas_call(
        kernel,
        out_shape=jax.ShapeDtypeStruct((n * hp_out * w, coutp), out_dtype),
        grid_spec=pltpu.PrefetchScalarGridSpec(
            num_scalar_prefetch=0,
            grid=(n, nb),
            in_specs=in_specs,
            out_specs=pl.BlockSpec((tm, coutp), lambda b, i: (b * nb + i, 0)),
        ),
        compiler_params=pltpu.CompilerParams(
            # Bands are independent (no cross-band accumulation), so both grid
            # axes are parallel -> both v7x TensorCores used even at batch=1.
            dimension_semantics=("parallel", "parallel"),
            vmem_limit_bytes=_pick_vmem_limit_bytes()),
    )(*inputs)

    out = out2d.reshape(n, hp_out, w, coutp)[:, :h, :, :cout]
    return out


def aspp_forward(x_nchw, params, atrous_rates, *, rows_per_block=None,
                 compute_dtype=jnp.bfloat16, out_dtype=jnp.float32):
    # TODO(synk): NCHW<->NHWC transposes kept only to match the PyTorch
    # interface; production callers should call aspp_forward_nhwc directly
    # with pre-cast bf16 NHWC inputs (saves a full HBM round-trip, esp. v5e).
    x = jnp.transpose(x_nchw, (0, 2, 3, 1))
    out = aspp_forward_nhwc(x, params, atrous_rates,
                            rows_per_block=rows_per_block,
                            compute_dtype=compute_dtype, out_dtype=out_dtype)
    return jnp.transpose(out, (0, 3, 1, 2))                        # NCHW


# -------------------------- pure-JAX reference ----------------------------- #

def _bn_relu_ref(y_nhwc, bn):
    gamma, beta, mean, var = bn
    y = (y_nhwc - mean) / jnp.sqrt(var + BN_EPS) * gamma + beta
    return jnp.maximum(y, 0.0)


def _conv_ref(x_nhwc, w_oihw, dilation, padding):
    w_hwio = jnp.transpose(w_oihw, (2, 3, 1, 0))
    return jax.lax.conv_general_dilated(
        x_nhwc, w_hwio, window_strides=(1, 1),
        padding=((padding, padding), (padding, padding)),
        rhs_dilation=(dilation, dilation),
        dimension_numbers=("NHWC", "HWIO", "NHWC"))


def aspp_reference(x_nchw, params, atrous_rates):
    x = jnp.transpose(x_nchw, (0, 2, 3, 1)).astype(jnp.float32)
    n, h, w, _ = x.shape
    branches = [_bn_relu_ref(_conv_ref(x, params["b0"]["w"], 1, 0),
                             params["b0"]["bn"])]
    for i, d in enumerate(atrous_rates):
        branches.append(_bn_relu_ref(_conv_ref(x, params[f"r{i}"]["w"], d, d),
                                     params[f"r{i}"]["bn"]))
    pooled = jnp.mean(x, axis=(1, 2), keepdims=True)
    yp = _bn_relu_ref(_conv_ref(pooled, params["pool"]["w"], 1, 0),
                      params["pool"]["bn"])
    branches.append(jnp.broadcast_to(yp, (n, h, w, yp.shape[-1])))
    cat = jnp.concatenate(branches, axis=-1)
    out = _bn_relu_ref(_conv_ref(cat, params["proj"]["w"], 1, 0),
                       params["proj"]["bn"])
    return jnp.transpose(out, (0, 3, 1, 2))


# ---------------------------------- main ----------------------------------- #

if __name__ == "__main__":
    key = jax.random.PRNGKey(0)
    kx, kp = jax.random.split(key)

    N, Cin, H, W = 2, 4, 16, 16
    Cout = 8
    atrous_rates = (1, 2)

    x = jax.random.normal(kx, (N, Cin, H, W), jnp.float32)
    params = init_aspp_params(kp, Cin, atrous_rates, Cout)

    ref = jax.block_until_ready(aspp_reference(x, params, atrous_rates))

    # f32 compute path, rows_per_block=8 -> 2 row bands per image (exercises
    # the band/halo blocking); tight tolerance vs the XLA reference.
    out_f32 = jax.block_until_ready(
        aspp_forward(x, params, atrous_rates, rows_per_block=8,
                     compute_dtype=jnp.float32))
    assert out_f32.shape == (N, Cout, H, W), out_f32.shape
    err_f32 = float(jnp.max(jnp.abs(out_f32 - ref)))
    assert jnp.allclose(out_f32, ref, rtol=1e-3, atol=1e-3), err_f32

    # Default path: bf16 MXU compute (f32 accumulation), auto band size
    # (tm = 256); looser tolerance for bf16 rounding.
    out_bf16 = jax.block_until_ready(aspp_forward(x, params, atrous_rates))
    assert out_bf16.shape == (N, Cout, H, W), out_bf16.shape
    err_bf16 = float(jnp.max(jnp.abs(out_bf16 - ref)))
    assert jnp.allclose(out_bf16, ref, rtol=5e-2, atol=6e-2), err_bf16

    print("KERNEL_OK")
</pallas_src>

<mosaic_0001>
module attributes {stable_mosaic.version = 11 : i64} {
  func.func @_aspp_fused_kernel(%arg0: i32, %arg1: i32, %arg2: memref<1x12x20x4xf32, #tpu.memory_space<vmem>>, %arg3: memref<4x128xf32, #tpu.memory_space<vmem>>, %arg4: memref<1x128xf32, #tpu.memory_space<vmem>>, %arg5: memref<2x3x12x128xf32, #tpu.memory_space<vmem>>, %arg6: memref<2x128xf32, #tpu.memory_space<vmem>>, %arg7: memref<3x128x128xf32, #tpu.memory_space<vmem>>, %arg8: memref<1x1x128xf32, #tpu.memory_space<vmem>>, %arg9: memref<1x128xf32, #tpu.memory_space<vmem>>, %arg10: memref<128x128xf32, #tpu.memory_space<vmem>>) attributes {dimension_semantics = [#tpu.dimension_semantics<parallel>, #tpu.dimension_semantics<parallel>], iteration_bounds = array<i64: 2, 2>, scalar_prefetch = 0 : i64, scratch_operands = 0 : i64, tpu.core_type = #tpu.core_type<tc>, window_params = [{pipeline_mode = #tpu.pipeline_mode<double_buffered>, transform_indices = @transform_0, window_bounds = array<i64: 1, 12, 20, 4>}, {pipeline_mode = #tpu.pipeline_mode<synchronous>, transform_indices = @transform_1, window_bounds = array<i64: 4, 128>}, {pipeline_mode = #tpu.pipeline_mode<synchronous>, transform_indices = @transform_2, window_bounds = array<i64: 1, 128>}, {pipeline_mode = #tpu.pipeline_mode<synchronous>, transform_indices = @transform_3, window_bounds = array<i64: 2, 3, 12, 128>}, {pipeline_mode = #tpu.pipeline_mode<synchronous>, transform_indices = @transform_4, window_bounds = array<i64: 2, 128>}, {pipeline_mode = #tpu.pipeline_mode<synchronous>, transform_indices = @transform_5, window_bounds = array<i64: 3, 128, 128>}, {transform_indices = @transform_6, window_bounds = array<i64: 1, 1, 128>}, {pipeline_mode = #tpu.pipeline_mode<synchronous>, transform_indices = @transform_7, window_bounds = array<i64: 1, 128>}, {transform_indices = @transform_8, window_bounds = array<i64: 128, 128>}]} {
    %c0 = arith.constant 0 : index
    %c2 = arith.constant 2 : index
    %c2_0 = arith.constant 2 : index
    %c0_1 = arith.constant 0 : index
    %0 = vector.load %arg2[%c0, %c2, %c2_0, %c0_1] : memref<1x12x20x4xf32, #tpu.memory_space<vmem>>, vector<1x8x16x4xf32>
    %1 = vector.shape_cast %0 : vector<1x8x16x4xf32> to vector<8x16x4xf32>
    %2 = vector.shape_cast %1 : vector<8x16x4xf32> to vector<128x4xf32>
    %c0_2 = arith.constant 0 : index
    %c0_3 = arith.constant 0 : index
    %3 = vector.load %arg3[%c0_2, %c0_3] : memref<4x128xf32, #tpu.memory_space<vmem>>, vector<4x128xf32>
    %cst = arith.constant dense<0.000000e+00> : vector<128x128xf32>
    %4 = tpu.matmul %2, %3, %cst {dimension_numbers = #tpu.dot_dimension_numbers<[1], [0], [0], [1], [0, 0, 1, 1], [], []>} : vector<128x4xf32>, vector<4x128xf32>, vector<128x128xf32> -> vector<128x128xf32>
    %c0_4 = arith.constant 0 : index
    %c0_5 = arith.constant 0 : index
    %5 = vector.load %arg4[%c0_4, %c0_5] : memref<1x128xf32, #tpu.memory_space<vmem>>, vector<1x128xf32>
    %6 = vector.broadcast %5 : vector<1x128xf32> to vector<128x128xf32>
    %7 = arith.addf %4, %6 : vector<128x128xf32>
    %cst_6 = arith.constant 0.000000e+00 : f32
    %8 = vector.broadcast %cst_6 : f32 to vector<128x128xf32>
    %9 = arith.maximumf %7, %8 : vector<128x128xf32>
    %c0_7 = arith.constant 0 : index
    %c0_8 = arith.constant 0 : index
    %c0_9 = arith.constant 0 : index
    %10 = vector.load %arg7[%c0_7, %c0_8, %c0_9] : memref<3x128x128xf32, #tpu.memory_space<vmem>>, vector<1x128x128xf32>
    %11 = vector.shape_cast %10 : vector<1x128x128xf32> to vector<128x128xf32>
    %cst_10 = arith.constant dense<0.000000e+00> : vector<128x128xf32>
    %12 = tpu.matmul %9, %11, %cst_10 {dimension_numbers = #tpu.dot_dimension_numbers<[1], [0], [0], [1], [0, 0, 1, 1], [], []>} : vector<128x128xf32>, vector<128x128xf32>, vector<128x128xf32> -> vector<128x128xf32>
    %c0_11 = arith.constant 0 : index
    %c1 = arith.constant 1 : index
    %c0_12 = arith.constant 0 : index
    %c0_13 = arith.constant 0 : index
    %13 = vector.load %arg2[%c0_11, %c1, %c0_12, %c0_13] : memref<1x12x20x4xf32, #tpu.memory_space<vmem>>, vector<1x8x20x4xf32>
    %14 = vector.shape_cast %13 : vector<1x8x20x4xf32> to vector<8x20x4xf32>
    %15 = vector.extract_strided_slice %14 {offsets = [0, 1, 0], sizes = [8, 16, 4], strides = [1, 1, 1]} : vector<8x20x4xf32> to vector<8x16x4xf32>
    %16 = vector.extract_strided_slice %14 {offsets = [0, 2, 0], sizes = [8, 16, 4], strides = [1, 1, 1]} : vector<8x20x4xf32> to vector<8x16x4xf32>
    %17 = vector.extract_strided_slice %14 {offsets = [0, 3, 0], sizes = [8, 16, 4], strides = [1, 1, 1]} : vector<8x20x4xf32> to vector<8x16x4xf32>
    %18 = tpu.concatenate %15, %16, %17 in 2 : vector<8x16x4xf32>, vector<8x16x4xf32>, vector<8x16x4xf32> -> vector<8x16x12xf32>
    %19 = vector.shape_cast %18 : vector<8x16x12xf32> to vector<128x12xf32>
    %c0_14 = arith.constant 0 : index
    %c0_15 = arith.constant 0 : index
    %c0_16 = arith.constant 0 : index
    %c0_17 = arith.constant 0 : index
    %20 = vector.load %arg5[%c0_14, %c0_15, %c0_16, %c0_17] : memref<2x3x12x128xf32, #tpu.memory_space<vmem>>, vector<1x1x12x128xf32>
    %21 = vector.shape_cast %20 : vector<1x1x12x128xf32> to vector<12x128xf32>
    %cst_18 = arith.constant dense<0.000000e+00> : vector<128x128xf32>
    %22 = tpu.matmul %19, %21, %cst_18 {dimension_numbers = #tpu.dot_dimension_numbers<[1], [0], [0], [1], [0, 0, 1, 1], [], []>} : vector<128x12xf32>, vector<12x128xf32>, vector<128x128xf32> -> vector<128x128xf32>
    %c0_19 = arith.constant 0 : index
    %c2_20 = arith.constant 2 : index
    %c0_21 = arith.constant 0 : index
    %c0_22 = arith.constant 0 : index
    %23 = vector.load %arg2[%c0_19, %c2_20, %c0_21, %c0_22] : memref<1x12x20x4xf32, #tpu.memory_space<vmem>>, vector<1x8x20x4xf32>
    %24 = vector.shape_cast %23 : vector<1x8x20x4xf32> to vector<8x20x4xf32>
    %25 = vector.extract_strided_slice %24 {offsets = [0, 1, 0], sizes = [8, 16, 4], strides = [1, 1, 1]} : vector<8x20x4xf32> to vector<8x16x4xf32>
    %26 = vector.extract_strided_slice %24 {offsets = [0, 2, 0], sizes = [8, 16, 4], strides = [1, 1, 1]} : vector<8x20x4xf32> to vector<8x16x4xf32>
    %27 = vector.extract_strided_slice %24 {offsets = [0, 3, 0], sizes = [8, 16, 4], strides = [1, 1, 1]} : vector<8x20x4xf32> to vector<8x16x4xf32>
    %28 = tpu.concatenate %25, %26, %27 in 2 : vector<8x16x4xf32>, vector<8x16x4xf32>, vector<8x16x4xf32> -> vector<8x16x12xf32>
    %29 = vector.shape_cast %28 : vector<8x16x12xf32> to vector<128x12xf32>
    %c0_23 = arith.constant 0 : index
    %c1_24 = arith.constant 1 : index
    %c0_25 = arith.constant 0 : index
    %c0_26 = arith.constant 0 : index
    %30 = vector.load %arg5[%c0_23, %c1_24, %c0_25, %c0_26] : memref<2x3x12x128xf32, #tpu.memory_space<vmem>>, vector<1x1x12x128xf32>
    %31 = vector.shape_cast %30 : vector<1x1x12x128xf32> to vector<12x128xf32>
    %cst_27 = arith.constant dense<0.000000e+00> : vector<128x128xf32>
    %32 = tpu.matmul %29, %31, %cst_27 {dimension_numbers = #tpu.dot_dimension_numbers<[1], [0], [0], [1], [0, 0, 1, 1], [], []>} : vector<128x12xf32>, vector<12x128xf32>, vector<128x128xf32> -> vector<128x128xf32>
    %33 = arith.addf %22, %32 : vector<128x128xf32>
    %c0_28 = arith.constant 0 : index
    %c3 = arith.constant 3 : index
    %c0_29 = arith.constant 0 : index
    %c0_30 = arith.constant 0 : index
    %34 = vector.load %arg2[%c0_28, %c3, %c0_29, %c0_30] : memref<1x12x20x4xf32, #tpu.memory_space<vmem>>, vector<1x8x20x4xf32>
    %35 = vector.shape_cast %34 : vector<1x8x20x4xf32> to vector<8x20x4xf32>
    %36 = vector.extract_strided_slice %35 {offsets = [0, 1, 0], sizes = [8, 16, 4], strides = [1, 1, 1]} : vector<8x20x4xf32> to vector<8x16x4xf32>
    %37 = vector.extract_strided_slice %35 {offsets = [0, 2, 0], sizes = [8, 16, 4], strides = [1, 1, 1]} : vector<8x20x4xf32> to vector<8x16x4xf32>
    %38 = vector.extract_strided_slice %35 {offsets = [0, 3, 0], sizes = [8, 16, 4], strides = [1, 1, 1]} : vector<8x20x4xf32> to vector<8x16x4xf32>
    %39 = tpu.concatenate %36, %37, %38 in 2 : vector<8x16x4xf32>, vector<8x16x4xf32>, vector<8x16x4xf32> -> vector<8x16x12xf32>
    %40 = vector.shape_cast %39 : vector<8x16x12xf32> to vector<128x12xf32>
    %c0_31 = arith.constant 0 : index
    %c2_32 = arith.constant 2 : index
    %c0_33 = arith.constant 0 : index
    %c0_34 = arith.constant 0 : index
    %41 = vector.load %arg5[%c0_31, %c2_32, %c0_33, %c0_34] : memref<2x3x12x128xf32, #tpu.memory_space<vmem>>, vector<1x1x12x128xf32>
    %42 = vector.shape_cast %41 : vector<1x1x12x128xf32> to vector<12x128xf32>
    %cst_35 = arith.constant dense<0.000000e+00> : vector<128x128xf32>
    %43 = tpu.matmul %40, %42, %cst_35 {dimension_numbers = #tpu.dot_dimension_numbers<[1], [0], [0], [1], [0, 0, 1, 1], [], []>} : vector<128x12xf32>, vector<12x128xf32>, vector<128x128xf32> -> vector<128x128xf32>
    %44 = arith.addf %33, %43 : vector<128x128xf32>
    %c0_36 = arith.constant 0 : index
    %c0_37 = arith.constant 0 : index
    %45 = vector.load %arg6[%c0_36, %c0_37] : memref<2x128xf32, #tpu.memory_space<vmem>>, vector<1x128xf32>
    %46 = vector.broadcast %45 : vector<1x128xf32> to vector<128x128xf32>
    %47 = arith.addf %44, %46 : vector<128x128xf32>
    %cst_38 = arith.constant 0.000000e+00 : f32
    %48 = vector.broadcast %cst_38 : f32 to vector<128x128xf32>
    %49 = arith.maximumf %47, %48 : vector<128x128xf32>
    %c1_39 = arith.constant 1 : index
    %c0_40 = arith.constant 0 : index
    %c0_41 = arith.constant 0 : index
    %50 = vector.load %arg7[%c1_39, %c0_40, %c0_41] : memref<3x128x128xf32, #tpu.memory_space<vmem>>, vector<1x128x128xf32>
    %51 = vector.shape_cast %50 : vector<1x128x128xf32> to vector<128x128xf32>
    %cst_42 = arith.constant dense<0.000000e+00> : vector<128x128xf32>
    %52 = tpu.matmul %49, %51, %cst_42 {dimension_numbers = #tpu.dot_dimension_numbers<[1], [0], [0], [1], [0, 0, 1, 1], [], []>} : vector<128x128xf32>, vector<128x128xf32>, vector<128x128xf32> -> vector<128x128xf32>
    %53 = arith.addf %12, %52 : vector<128x128xf32>
    %c0_43 = arith.constant 0 : index
    %c0_44 = arith.constant 0 : index
    %c0_45 = arith.constant 0 : index
    %c0_46 = arith.constant 0 : index
    %54 = vector.load %arg2[%c0_43, %c0_44, %c0_45, %c0_46] : memref<1x12x20x4xf32, #tpu.memory_space<vmem>>, vector<1x8x20x4xf32>
    %55 = vector.shape_cast %54 : vector<1x8x20x4xf32> to vector<8x20x4xf32>
    %56 = vector.extract_strided_slice %55 {offsets = [0, 0, 0], sizes = [8, 16, 4], strides = [1, 1, 1]} : vector<8x20x4xf32> to vector<8x16x4xf32>
    %57 = vector.extract_strided_slice %55 {offsets = [0, 2, 0], sizes = [8, 16, 4], strides = [1, 1, 1]} : vector<8x20x4xf32> to vector<8x16x4xf32>
    %58 = vector.extract_strided_slice %55 {offsets = [0, 4, 0], sizes = [8, 16, 4], strides = [1, 1, 1]} : vector<8x20x4xf32> to vector<8x16x4xf32>
    %59 = tpu.concatenate %56, %57, %58 in 2 : vector<8x16x4xf32>, vector<8x16x4xf32>, vector<8x16x4xf32> -> vector<8x16x12xf32>
    %60 = vector.shape_cast %59 : vector<8x16x12xf32> to vector<128x12xf32>
    %c1_47 = arith.constant 1 : index
    %c0_48 = arith.constant 0 : index
    %c0_49 = arith.constant 0 : index
    %c0_50 = arith.constant 0 : index
    %61 = vector.load %arg5[%c1_47, %c0_48, %c0_49, %c0_50] : memref<2x3x12x128xf32, #tpu.memory_space<vmem>>, vector<1x1x12x128xf32>
    %62 = vector.shape_cast %61 : vector<1x1x12x128xf32> to vector<12x128xf32>
    %cst_51 = arith.constant dense<0.000000e+00> : vector<128x128xf32>
    %63 = tpu.matmul %60, %62, %cst_51 {dimension_numbers = #tpu.dot_dimension_numbers<[1], [0], [0], [1], [0, 0, 1, 1], [], []>} : vector<128x12xf32>, vector<12x128xf32>, vector<128x128xf32> -> vector<128x128xf32>
    %c0_52 = arith.constant 0 : index
    %c2_53 = arith.constant 2 : index
    %c0_54 = arith.constant 0 : index
    %c0_55 = arith.constant 0 : index
    %64 = vector.load %arg2[%c0_52, %c2_53, %c0_54, %c0_55] : memref<1x12x20x4xf32, #tpu.memory_space<vmem>>, vector<1x8x20x4xf32>
    %65 = vector.shape_cast %64 : vector<1x8x20x4xf32> to vector<8x20x4xf32>
    %66 = vector.extract_strided_slice %65 {offsets = [0, 0, 0], sizes = [8, 16, 4], strides = [1, 1, 1]} : vector<8x20x4xf32> to vector<8x16x4xf32>
    %67 = vector.extract_strided_slice %65 {offsets = [0, 2, 0], sizes = [8, 16, 4], strides = [1, 1, 1]} : vector<8x20x4xf32> to vector<8x16x4xf32>
    %68 = vector.extract_strided_slice %65 {offsets = [0, 4, 0], sizes = [8, 16, 4], strides = [1, 1, 1]} : vector<8x20x4xf32> to vector<8x16x4xf32>
    %69 = tpu.concatenate %66, %67, %68 in 2 : vector<8x16x4xf32>, vector<8x16x4xf32>, vector<8x16x4xf32> -> vector<8x16x12xf32>
    %70 = vector.shape_cast %69 : vector<8x16x12xf32> to vector<128x12xf32>
    %c1_56 = arith.constant 1 : index
    %c1_57 = arith.constant 1 : index
    %c0_58 = arith.constant 0 : index
    %c0_59 = arith.constant 0 : index
    %71 = vector.load %arg5[%c1_56, %c1_57, %c0_58, %c0_59] : memref<2x3x12x128xf32, #tpu.memory_space<vmem>>, vector<1x1x12x128xf32>
    %72 = vector.shape_cast %71 : vector<1x1x12x128xf32> to vector<12x128xf32>
    %cst_60 = arith.constant dense<0.000000e+00> : vector<128x128xf32>
    %73 = tpu.matmul %70, %72, %cst_60 {dimension_numbers = #tpu.dot_dimension_numbers<[1], [0], [0], [1], [0, 0, 1, 1], [], []>} : vector<128x12xf32>, vector<12x128xf32>, vector<128x128xf32> -> vector<128x128xf32>
    %74 = arith.addf %63, %73 : vector<128x128xf32>
    %c0_61 = arith.constant 0 : index
    %c4 = arith.constant 4 : index
    %c0_62 = arith.constant 0 : index
    %c0_63 = arith.constant 0 : index
    %75 = vector.load %arg2[%c0_61, %c4, %c0_62, %c0_63] : memref<1x12x20x4xf32, #tpu.memory_space<vmem>>, vector<1x8x20x4xf32>
    %76 = vector.shape_cast %75 : vector<1x8x20x4xf32> to vector<8x20x4xf32>
    %77 = vector.extract_strided_slice %76 {offsets = [0, 0, 0], sizes = [8, 16, 4], strides = [1, 1, 1]} : vector<8x20x4xf32> to vector<8x16x4xf32>
    %78 = vector.extract_strided_slice %76 {offsets = [0, 2, 0], sizes = [8, 16, 4], strides = [1, 1, 1]} : vector<8x20x4xf32> to vector<8x16x4xf32>
    %79 = vector.extract_strided_slice %76 {offsets = [0, 4, 0], sizes = [8, 16, 4], strides = [1, 1, 1]} : vector<8x20x4xf32> to vector<8x16x4xf32>
    %80 = tpu.concatenate %77, %78, %79 in 2 : vector<8x16x4xf32>, vector<8x16x4xf32>, vector<8x16x4xf32> -> vector<8x16x12xf32>
    %81 = vector.shape_cast %80 : vector<8x16x12xf32> to vector<128x12xf32>
    %c1_64 = arith.constant 1 : index
    %c2_65 = arith.constant 2 : index
    %c0_66 = arith.constant 0 : index
    %c0_67 = arith.constant 0 : index
    %82 = vector.load %arg5[%c1_64, %c2_65, %c0_66, %c0_67] : memref<2x3x12x128xf32, #tpu.memory_space<vmem>>, vector<1x1x12x128xf32>
    %83 = vector.shape_cast %82 : vector<1x1x12x128xf32> to vector<12x128xf32>
    %cst_68 = arith.constant dense<0.000000e+00> : vector<128x128xf32>
    %84 = tpu.matmul %81, %83, %cst_68 {dimension_numbers = #tpu.dot_dimension_numbers<[1], [0], [0], [1], [0, 0, 1, 1], [], []>} : vector<128x12xf32>, vector<12x128xf32>, vector<128x128xf32> -> vector<128x128xf32>
    %85 = arith.addf %74, %84 : vector<128x128xf32>
    %c1_69 = arith.constant 1 : index
    %c0_70 = arith.constant 0 : index
    %86 = vector.load %arg6[%c1_69, %c0_70] : memref<2x128xf32, #tpu.memory_space<vmem>>, vector<1x128xf32>
    %87 = vector.broadcast %86 : vector<1x128xf32> to vector<128x128xf32>
    %88 = arith.addf %85, %87 : vector<128x128xf32>
    %cst_71 = arith.constant 0.000000e+00 : f32
    %89 = vector.broadcast %cst_71 : f32 to vector<128x128xf32>
    %90 = arith.maximumf %88, %89 : vector<128x128xf32>
    %c2_72 = arith.constant 2 : index
    %c0_73 = arith.constant 0 : index
    %c0_74 = arith.constant 0 : index
    %91 = vector.load %arg7[%c2_72, %c0_73, %c0_74] : memref<3x128x128xf32, #tpu.memory_space<vmem>>, vector<1x128x128xf32>
    %92 = vector.shape_cast %91 : vector<1x128x128xf32> to vector<128x128xf32>
    %cst_75 = arith.constant dense<0.000000e+00> : vector<128x128xf32>
    %93 = tpu.matmul %90, %92, %cst_75 {dimension_numbers = #tpu.dot_dimension_numbers<[1], [0], [0], [1], [0, 0, 1, 1], [], []>} : vector<128x128xf32>, vector<128x128xf32>, vector<128x128xf32> -> vector<128x128xf32>
    %94 = arith.addf %53, %93 : vector<128x128xf32>
    %c0_76 = arith.constant 0 : index
    %c0_77 = arith.constant 0 : index
    %c0_78 = arith.constant 0 : index
    %95 = vector.load %arg8[%c0_76, %c0_77, %c0_78] : memref<1x1x128xf32, #tpu.memory_space<vmem>>, vector<1x1x128xf32>
    %96 = vector.shape_cast %95 : vector<1x1x128xf32> to vector<1x128xf32>
    %97 = vector.broadcast %96 : vector<1x128xf32> to vector<128x128xf32>
    %98 = arith.addf %94, %97 : vector<128x128xf32>
    %c0_79 = arith.constant 0 : index
    %c0_80 = arith.constant 0 : index
    %99 = vector.load %arg9[%c0_79, %c0_80] : memref<1x128xf32, #tpu.memory_space<vmem>>, vector<1x128xf32>
    %100 = vector.broadcast %99 : vector<1x128xf32> to vector<128x128xf32>
    %101 = arith.addf %98, %100 : vector<128x128xf32>
    %cst_81 = arith.constant 0.000000e+00 : f32
    %102 = vector.broadcast %cst_81 : f32 to vector<128x128xf32>
    %103 = arith.maximumf %101, %102 : vector<128x128xf32>
    %c0_82 = arith.constant 0 : index
    %c0_83 = arith.constant 0 : index
    %104 = vector.load %arg10[%c0_82, %c0_83] : memref<128x128xf32, #tpu.memory_space<vmem>>, vector<128x128xf32>
    tpu.vector_store %arg10[%c0_82, %c0_83], %103 {strides = array<i32>} : memref<128x128xf32, #tpu.memory_space<vmem>>, vector<128x128xf32>,
    return
  }
  func.func @transform_0(%arg0: i32, %arg1: i32) -> (i32, i32, i32, i32) {
    %c2_i32 = arith.constant 2 : i32
    %0 = arith.muli %arg0, %c2_i32 : i32
    %1 = arith.addi %0, %arg1 : i32
    %c0_i32 = arith.constant 0 : i32
    %c0_i32_0 = arith.constant 0 : i32
    %c0_i32_1 = arith.constant 0 : i32
    %c0_i32_2 = arith.constant 0 : i32
    return %1, %c0_i32, %c0_i32_0, %c0_i32_1 : i32, i32, i32, i32
  }
  func.func @transform_1(%arg0: i32, %arg1: i32) -> (i32, i32) {
    %c0_i32 = arith.constant 0 : i32
    %c0_i32_0 = arith.constant 0 : i32
    %c0_i32_1 = arith.constant 0 : i32
    return %c0_i32, %c0_i32_0 : i32, i32
  }
  func.func @transform_2(%arg0: i32, %arg1: i32) -> (i32, i32) {
    %c0_i32 = arith.constant 0 : i32
    %c0_i32_0 = arith.constant 0 : i32
    %c0_i32_1 = arith.constant 0 : i32
    return %c0_i32, %c0_i32_0 : i32, i32
  }
  func.func @transform_3(%arg0: i32, %arg1: i32) -> (i32, i32, i32, i32) {
    %c0_i32 = arith.constant 0 : i32
    %c0_i32_0 = arith.constant 0 : i32
    %c0_i32_1 = arith.constant 0 : i32
    %c0_i32_2 = arith.constant 0 : i32
    %c0_i32_3 = arith.constant 0 : i32
    return %c0_i32, %c0_i32_0, %c0_i32_1, %c0_i32_2 : i32, i32, i32, i32
  }
  func.func @transform_4(%arg0: i32, %arg1: i32) -> (i32, i32) {
    %c0_i32 = arith.constant 0 : i32
    %c0_i32_0 = arith.constant 0 : i32
    %c0_i32_1 = arith.constant 0 : i32
    return %c0_i32, %c0_i32_0 : i32, i32
  }
  func.func @transform_5(%arg0: i32, %arg1: i32) -> (i32, i32, i32) {
    %c0_i32 = arith.constant 0 : i32
    %c0_i32_0 = arith.constant 0 : i32
    %c0_i32_1 = arith.constant 0 : i32
    %c0_i32_2 = arith.constant 0 : i32
    return %c0_i32, %c0_i32_0, %c0_i32_1 : i32, i32, i32
  }
  func.func @transform_6(%arg0: i32, %arg1: i32) -> (i32, i32, i32) {
    %c0_i32 = arith.constant 0 : i32
    %c0_i32_0 = arith.constant 0 : i32
    %c0_i32_1 = arith.constant 0 : i32
    return %arg0, %c0_i32, %c0_i32_0 : i32, i32, i32
  }
  func.func @transform_7(%arg0: i32, %arg1: i32) -> (i32, i32) {
    %c0_i32 = arith.constant 0 : i32
    %c0_i32_0 = arith.constant 0 : i32
    %c0_i32_1 = arith.constant 0 : i32
    return %c0_i32, %c0_i32_0 : i32, i32
  }
  func.func @transform_8(%arg0: i32, %arg1: i32) -> (i32, i32) {
    %c2_i32 = arith.constant 2 : i32
    %0 = arith.muli %arg0, %c2_i32 : i32
    %1 = arith.addi %0, %arg1 : i32
    %c0_i32 = arith.constant 0 : i32
    %c0_i32_0 = arith.constant 0 : i32
    return %1, %c0_i32 : i32, i32
  }
}

</mosaic_0001>

<llo_original>
// kernel: tpu_custom_call.1
$region0: #{tpu_custom_call.1}
  #allocation0 [shape = 'u32[]', space=smem, size = 0x4, offset = 0x4, fixed_abs, tag = 'smem constant byte address 0x4 - core index']
  #allocation1 [shape = 'u32[144,128]{1,0:T(1,128)}', space=vmem, size = 0x12000, scoped, tag = 'internal scratch']
  %s0 = inlined_call_operand.vmem [shape: f32[4,12,20,4], index: 0, kind: input, shape index: {}]
  %s1 = inlined_call_operand.vmem [shape: f32[4,128], index: 1, kind: input, shape index: {}]
  %s2 = inlined_call_operand.vmem [shape: f32[1,128], index: 2, kind: input, shape index: {}]
  %s3 = inlined_call_operand.vmem [shape: f32[2,3,12,128], index: 3, kind: input, shape index: {}]
  %s4 = inlined_call_operand.vmem [shape: f32[2,128], index: 4, kind: input, shape index: {}]
  %s5 = inlined_call_operand.vmem [shape: f32[3,128,128], index: 5, kind: input, shape index: {}]
  %s6 = inlined_call_operand.vmem [shape: f32[2,1,128], index: 6, kind: input, shape index: {}]
  %s7 = inlined_call_operand.vmem [shape: f32[1,128], index: 7, kind: input, shape index: {}]
  %s8 = inlined_call_operand.hbm [shape: f32[512,128], index: 8, kind: output, shape index: {}]
  %s9 = sld [smem:[#allocation0]]
  $region65: #{tpu_custom_call.1} parent=0
    _
  %s11 = ssub.s32 1, %s9
  %s12 = scalar_select 0, %s11, %s9
  $region1: #{tpu_custom_call.1} parent=0
    #allocation2 [shape = 'u8[131072]{0}', space=vmem, size = 0x20000, scoped, tag = 'output window, operand 0']
    #allocation3 [shape = 's32[2]{0}', space=sflag, size = 0x8, scoped, tag = 'scoped memory for tpu_custom_call.1']
    %13 = vsyncpa [#allocation3], 0
    %s14 = scalar_lea.sflag [#allocation3], 1
    %15 = vsyncpa %s14, 0
    loop: start=0, step=1, limit=6
    $region2: #{tpu_custom_call.1} parent=1 // loop_pre_header
      _
    $region3: #{tpu_custom_call.1} parent=1 // loop_header
      %s17 = sphi 0, %s21
      %p18 = scmp.ge.s32.totalorder %s17, 6
      %s24 = sphi 0, %s36
      %s25 = sphi 0, %s32
      %s26 = sphi 0, %s24
      %s27 = sphi 0, %s25
      %s28 = sphi 0, %s26
      %s29 = sphi 0, %s27
      %s43 = sphi 0, %s45
      %s46 = sphi 0, %s43
      %s47 = sphi 0, %s46
      %s63 = sphi 0, %s47
      %s67 = sphi 0, %s67
      %s69 = sphi 0, %s67
      %s70 = sphi 0, %s69
      %s84 = sphi 0, %s70
      %s88 = sphi 0, %s88
      %s90 = sphi 0, %s88
      %s91 = sphi 0, %s90
      %s105 = sphi 0, %s91
      %s109 = sphi 0, %s109
      %s111 = sphi 0, %s109
      %s112 = sphi 0, %s111
      %s126 = sphi 0, %s112
      %s130 = sphi 0, %s130
      %s132 = sphi 0, %s130
      %s133 = sphi 0, %s132
      %s147 = sphi 0, %s133
      %s151 = sphi 0, %s151
      %s153 = sphi 0, %s151
      %s154 = sphi 0, %s153
      %s168 = sphi 0, %s154
      %s174 = sphi 0, %s176
      %s177 = sphi 0, %s174
      %s178 = sphi 0, %s177
      %s194 = sphi 0, %s178
      %s198 = sphi 0, %s198
      %s200 = sphi 0, %s198
      %s201 = sphi 0, %s200
      %s215 = sphi 0, %s201
      %s225 = sphi 0, %s227
      %s228 = sphi 0, %s225
      %s229 = sphi 0, %s228
      %s245 = sphi 0, %s229
    $region4: #{tpu_custom_call.1} parent=1 // loop_header_branch
      %20 = sbr.rel (%p18) target = $region8
    $region5: #{tpu_custom_call.1} parent=1 // loop_body
      %s22 = ssub.s32 %s17, 1
      %s23 = ssub.s32 %s17, 2
      %s30 = sadd.s32 1, %s25
      %p31 = scmp.ge.s32.totalorder %s30, 2
      %s32 = scalar_select %p31, 0, %s30
      %s33 = sadd.s32 1, %s24
      %s34 = scalar_select %p31, %s33, %s24
      %p35 = scmp.ge.s32.totalorder %s34, 2
      %s36 = scalar_select %p35, 0, %s34
      %s37 = smul.u32 %s24, 2
      %s38 = sadd.s32 %s37, %s25
      %s39 = smul.u32 %s36, 2
      %s40 = sadd.s32 %s39, %s32
      %s41 = ssub.s32 %s38, %s40
      %p42 = scmp.eq.s32.totalorder %s41, 0
      %s44 = sadd.s32 %s43, 1
      %s45 = scalar_select %p42, %s43, %s44
      %p48 = pneg %p42
      %p49 = scmp.eq.s32.totalorder %s17, 3
      %p50 = por %p48, %p49
      %p51 = scmp.ne.s32.totalorder %s43, %s46
      %p52 = scmp.eq.s32.totalorder %s17, 0
      %p53 = por %p51, %p52
      %p54 = scmp.ne.s32.totalorder %s43, %s46
      %p55 = scmp.eq.s32.totalorder %s22, 3
      %p56 = por %p54, %p55
      %p57 = scmp.ne.s32.totalorder %s46, %s47
      %p58 = scmp.eq.s32.totalorder %s22, 0
      %p59 = por %p57, %p58
      %p60 = scmp.ne.s32.totalorder %s46, %s47
      %p61 = scmp.eq.s32.totalorder %s23, 3
      %p62 = por %p60, %p61
      %p64 = scmp.ne.s32.totalorder %s47, %s63
      %p65 = scmp.eq.s32.totalorder %s23, 0
      %p66 = por %p64, %p65
      %s68 = sadd.s32 %s67, 1
      %p71 = scmp.eq.s32.totalorder %s17, 3
      %p72 = scmp.ne.s32.totalorder %s67, %s69
      %p73 = scmp.eq.s32.totalorder %s17, 0
      %p74 = por %p72, %p73
      %p75 = scmp.ne.s32.totalorder %s67, %s69
      %p76 = scmp.eq.s32.totalorder %s22, 3
      %p77 = por %p75, %p76
      %p78 = scmp.ne.s32.totalorder %s69, %s70
      %p79 = scmp.eq.s32.totalorder %s22, 0
      %p80 = por %p78, %p79
      %p81 = scmp.ne.s32.totalorder %s69, %s70
      %p82 = scmp.eq.s32.totalorder %s23, 3
      %p83 = por %p81, %p82
      %p85 = scmp.ne.s32.totalorder %s70, %s84
      %p86 = scmp.eq.s32.totalorder %s23, 0
      %p87 = por %p85, %p86
      %s89 = sadd.s32 %s88, 1
      %p92 = scmp.eq.s32.totalorder %s17, 3
      %p93 = scmp.ne.s32.totalorder %s88, %s90
      %p94 = scmp.eq.s32.totalorder %s17, 0
      %p95 = por %p93, %p94
      %p96 = scmp.ne.s32.totalorder %s88, %s90
      %p97 = scmp.eq.s32.totalorder %s22, 3
      %p98 = por %p96, %p97
      %p99 = scmp.ne.s32.totalorder %s90, %s91
      %p100 = scmp.eq.s32.totalorder %s22, 0
      %p101 = por %p99, %p100
      %p102 = scmp.ne.s32.totalorder %s90, %s91
      %p103 = scmp.eq.s32.totalorder %s23, 3
      %p104 = por %p102, %p103
      %p106 = scmp.ne.s32.totalorder %s91, %s105
      %p107 = scmp.eq.s32.totalorder %s23, 0
      %p108 = por %p106, %p107
      %s110 = sadd.s32 %s109, 1
      %p113 = scmp.eq.s32.totalorder %s17, 3
      %p114 = scmp.ne.s32.totalorder %s109, %s111
      %p115 = scmp.eq.s32.totalorder %s17, 0
      %p116 = por %p114, %p115
      %p117 = scmp.ne.s32.totalorder %s109, %s111
      %p118 = scmp.eq.s32.totalorder %s22, 3
      %p119 = por %p117, %p118
      %p120 = scmp.ne.s32.totalorder %s111, %s112
      %p121 = scmp.eq.s32.totalorder %s22, 0
      %p122 = por %p120, %p121
      %p123 = scmp.ne.s32.totalorder %s111, %s112
      %p124 = scmp.eq.s32.totalorder %s23, 3
      %p125 = por %p123, %p124
      %p127 = scmp.ne.s32.totalorder %s112, %s126
      %p128 = scmp.eq.s32.totalorder %s23, 0
      %p129 = por %p127, %p128
      %s131 = sadd.s32 %s130, 1
      %p134 = scmp.eq.s32.totalorder %s17, 3
      %p135 = scmp.ne.s32.totalorder %s130, %s132
      %p136 = scmp.eq.s32.totalorder %s17, 0
      %p137 = por %p135, %p136
      %p138 = scmp.ne.s32.totalorder %s130, %s132
      %p139 = scmp.eq.s32.totalorder %s22, 3
      %p140 = por %p138, %p139
      %p141 = scmp.ne.s32.totalorder %s132, %s133
      %p142 = scmp.eq.s32.totalorder %s22, 0
      %p143 = por %p141, %p142
      %p144 = scmp.ne.s32.totalorder %s132, %s133
      %p145 = scmp.eq.s32.totalorder %s23, 3
      %p146 = por %p144, %p145
      %p148 = scmp.ne.s32.totalorder %s133, %s147
      %p149 = scmp.eq.s32.totalorder %s23, 0
      %p150 = por %p148, %p149
      %s152 = sadd.s32 %s151, 1
      %p155 = scmp.eq.s32.totalorder %s17, 3
      %p156 = scmp.ne.s32.totalorder %s151, %s153
      %p157 = scmp.eq.s32.totalorder %s17, 0
      %p158 = por %p156, %p157
      %p159 = scmp.ne.s32.totalorder %s151, %s153
      %p160 = scmp.eq.s32.totalorder %s22, 3
      %p161 = por %p159, %p160
      %p162 = scmp.ne.s32.totalorder %s153, %s154
      %p163 = scmp.eq.s32.totalorder %s22, 0
      %p164 = por %p162, %p163
      %p165 = scmp.ne.s32.totalorder %s153, %s154
      %p166 = scmp.eq.s32.totalorder %s23, 3
      %p167 = por %p165, %p166
      %p169 = scmp.ne.s32.totalorder %s154, %s168
      %p170 = scmp.eq.s32.totalorder %s23, 0
      %p171 = por %p169, %p170
      %s172 = ssub.s32 %s24, %s36
      %p173 = scmp.eq.s32.totalorder %s172, 0
      %s175 = sadd.s32 %s174, 1
      %s176 = scalar_select %p173, %s174, %s175
      %p179 = pneg %p173
      %p180 = scmp.eq.s32.totalorder %s17, 3
      %p181 = por %p179, %p180
      %p182 = scmp.ne.s32.totalorder %s174, %s177
      %p183 = scmp.eq.s32.totalorder %s17, 0
      %p184 = por %p182, %p183
      %p185 = scmp.ne.s32.totalorder %s174, %s177
      %p186 = scmp.eq.s32.totalorder %s22, 3
      %p187 = por %p185, %p186
      %p188 = scmp.ne.s32.totalorder %s177, %s178
      %p189 = scmp.eq.s32.totalorder %s22, 0
      %p190 = por %p188, %p189
      %p191 = scmp.ne.s32.totalorder %s177, %s178
      %p192 = scmp.eq.s32.totalorder %s23, 3
      %p193 = por %p191, %p192
      %p195 = scmp.ne.s32.totalorder %s178, %s194
      %p196 = scmp.eq.s32.totalorder %s23, 0
      %p197 = por %p195, %p196
      %s199 = sadd.s32 %s198, 1
      %p202 = scmp.eq.s32.totalorder %s17, 3
      %p203 = scmp.ne.s32.totalorder %s198, %s200
      %p204 = scmp.eq.s32.totalorder %s17, 0
      %p205 = por %p203, %p204
      %p206 = scmp.ne.s32.totalorder %s198, %s200
      %p207 = scmp.eq.s32.totalorder %s22, 3
      %p208 = por %p206, %p207
      %p209 = scmp.ne.s32.totalorder %s200, %s201
      %p210 = scmp.eq.s32.totalorder %s22, 0
      %p211 = por %p209, %p210
      %p212 = scmp.ne.s32.totalorder %s200, %s201
      %p213 = scmp.eq.s32.totalorder %s23, 3
      %p214 = por %p212, %p213
      %p216 = scmp.ne.s32.totalorder %s201, %s215
      %p217 = scmp.eq.s32.totalorder %s23, 0
      %p218 = por %p216, %p217
      %s219 = smul.u32 %s24, 2
      %s220 = sadd.s32 %s219, %s25
      %s221 = smul.u32 %s36, 2
      %s222 = sadd.s32 %s221, %s32
      %s223 = ssub.s32 %s220, %s222
      %p224 = scmp.eq.s32.totalorder %s223, 0
      %s226 = sadd.s32 %s225, 1
      %s227 = scalar_select %p224, %s225, %s226
      %p230 = pneg %p224
      %p231 = scmp.eq.s32.totalorder %s17, 3
      %p232 = por %p230, %p231
      %p233 = scmp.ne.s32.totalorder %s225, %s228
      %p234 = scmp.eq.s32.totalorder %s17, 0
      %p235 = por %p233, %p234
      %p236 = scmp.ne.s32.totalorder %s225, %s228
      %p237 = scmp.eq.s32.totalorder %s22, 3
      %p238 = por %p236, %p237
      %p239 = scmp.ne.s32.totalorder %s228, %s229
      %p240 = scmp.eq.s32.totalorder %s22, 0
      %p241 = por %p239, %p240
      %p242 = scmp.ne.s32.totalorder %s228, %s229
      %p243 = scmp.eq.s32.totalorder %s23, 3
      %p244 = por %p242, %p243
      %p246 = scmp.ne.s32.totalorder %s229, %s245
      %p247 = scmp.eq.s32.totalorder %s23, 0
      %p248 = por %p246, %p247
      %p249 = scmp.le.s32.totalorder 1, %s17
      %p250 = scmp.lt.s32.totalorder %s17, 5
      %p251 = pnand %p249, %p250
      %p252 = pneg %p251
      // Predicated region
      $region9: #{tpu_custom_call.1} parent=5 // pred_check
        _
      $region10: #{tpu_custom_call.1} parent=5 // pred_check_branch
        %254 = sbr.rel (%p251) target = $region12
      $region11: #{tpu_custom_call.1} parent=5 // pred_region
        %s255 = ssub.s32 %s17, 1
        // Predicated region
        $region13: #{tpu_custom_call.1} parent=11 // pred_check
          %p256 = pneg %p80
        $region14: #{tpu_custom_call.1} parent=11 // pred_check_branch
          %258 = sbr.rel (%p256) target = $region16
        $region15: #{tpu_custom_call.1} parent=11 // pred_region
          _
        $region16: #{tpu_custom_call.1} parent=11 // pred_fallthru
          _
        // Predicated region
        $region17: #{tpu_custom_call.1} parent=11 // pred_check
          %p259 = pneg %p101
        $region18: #{tpu_custom_call.1} parent=11 // pred_check_branch
          %261 = sbr.rel (%p259) target = $region20
        $region19: #{tpu_custom_call.1} parent=11 // pred_region
          _
        $region20: #{tpu_custom_call.1} parent=11 // pred_fallthru
          _
        // Predicated region
        $region21: #{tpu_custom_call.1} parent=11 // pred_check
          %p262 = pneg %p122
        $region22: #{tpu_custom_call.1} parent=11 // pred_check_branch
          %264 = sbr.rel (%p262) target = $region24
        $region23: #{tpu_custom_call.1} parent=11 // pred_region
          _
        $region24: #{tpu_custom_call.1} parent=11 // pred_fallthru
          _
        // Predicated region
        $region25: #{tpu_custom_call.1} parent=11 // pred_check
          %p265 = pneg %p143
        $region26: #{tpu_custom_call.1} parent=11 // pred_check_branch
          %267 = sbr.rel (%p265) target = $region28
        $region27: #{tpu_custom_call.1} parent=11 // pred_region
          _
        $region28: #{tpu_custom_call.1} parent=11 // pred_fallthru
          _
        // Predicated region
        $region29: #{tpu_custom_call.1} parent=11 // pred_check
          %p268 = pneg %p164
        $region30: #{tpu_custom_call.1} parent=11 // pred_check_branch
          %270 = sbr.rel (%p268) target = $region32
        $region31: #{tpu_custom_call.1} parent=11 // pred_region
          _
        $region32: #{tpu_custom_call.1} parent=11 // pred_fallthru
          _
        // Predicated region
        $region33: #{tpu_custom_call.1} parent=11 // pred_check
          %p271 = pneg %p211
        $region34: #{tpu_custom_call.1} parent=11 // pred_check_branch
          %273 = sbr.rel (%p271) target = $region36
        $region35: #{tpu_custom_call.1} parent=11 // pred_region
          _
        $region36: #{tpu_custom_call.1} parent=11 // pred_fallthru
          _
      $region12: #{tpu_custom_call.1} parent=5 // pred_fallthru
        _
      %p274 = scmp.lt.s32.totalorder %s17, 4
      // Predicated region
      $region37: #{tpu_custom_call.1} parent=5 // pred_check
        %p275 = pneg %p274
      $region38: #{tpu_custom_call.1} parent=5 // pred_check_branch
        %277 = sbr.rel (%p275) target = $region40
      $region39: #{tpu_custom_call.1} parent=5 // pred_region
        // Predicated region
        $region41: #{tpu_custom_call.1} parent=39 // pred_check
          %p278 = pneg %p53
        $region42: #{tpu_custom_call.1} parent=39 // pred_check_branch
          %280 = sbr.rel (%p278) target = $region44
        $region43: #{tpu_custom_call.1} parent=39 // pred_region
          %s281 = smul.u32 %s24, 2
          %s282 = sadd.s32 %s281, %s25
          %p283 = scmp.lt.s32.totalorder %s282, 3
          %s284 = scalar_select %p283, %s282, 3
          %s285 = smul.addr %s284, 36
          %s286 = smul.addr %s285, 8
          %s287 = scalar_lea.vmem %s0, %s286
          %s288 = smul.u32 %s24, 2
          %s289 = sadd.s32 %s288, %s25
        $region44: #{tpu_custom_call.1} parent=39 // pred_fallthru
          _
        // Predicated region
        $region45: #{tpu_custom_call.1} parent=39 // pred_check
          %p290 = pneg %p184
        $region46: #{tpu_custom_call.1} parent=39 // pred_check_branch
          %292 = sbr.rel (%p290) target = $region48
        $region47: #{tpu_custom_call.1} parent=39 // pred_region
          %p293 = scmp.lt.s32.totalorder %s24, 1
          %s294 = scalar_select %p293, %s24, 1
          %s295 = scalar_lea.vmem %s6, %s294
        $region48: #{tpu_custom_call.1} parent=39 // pred_fallthru
          _
      $region40: #{tpu_custom_call.1} parent=5 // pred_fallthru
        _
      %p296 = scmp.le.s32.totalorder 1, %s17
      %p297 = scmp.lt.s32.totalorder %s17, 5
      %p298 = pnand %p296, %p297
      %p299 = pneg %p298
      // Predicated region
      $region49: #{tpu_custom_call.1} parent=5 // pred_check
        _
      $region50: #{tpu_custom_call.1} parent=5 // pred_check_branch
        %301 = sbr.rel (%p298) target = $region52
      $region51: #{tpu_custom_call.1} parent=5 // pred_region
        %s302 = ssub.s32 %s17, 1
        %s303 = smul.u32 %s26, 2
        %s304 = sadd.s32 %s303, %s27
        %p305 = scmp.lt.s32.totalorder %s304, 3
        %s306 = scalar_select %p305, %s304, 3
        %s307 = smul.addr %s306, 36
        %s308 = smul.addr %s307, 8
        %s309 = scalar_lea.vmem %s0, %s308
        %p310 = pneg %p59
        %p311 = pneg %p56
        %p312 = pneg %p80
        %p313 = pneg %p77
        %p314 = pneg %p101
        %p315 = pneg %p98
        %p316 = pneg %p122
        %p317 = pneg %p119
        %p318 = pneg %p143
        %p319 = pneg %p140
        %p320 = pneg %p164
        %p321 = pneg %p161
        %p322 = scmp.lt.s32.totalorder %s26, 1
        %s323 = scalar_select %p322, %s26, 1
        %s324 = scalar_lea.vmem %s6, %s323
        %p325 = pneg %p190
        %p326 = pneg %p187
        %p327 = pneg %p211
        %p328 = pneg %p208
        %p329 = pneg %p241
        %p330 = pneg %p238
        %s331 = sand.u32 %s228, 1
        %s332 = scalar_lea.sflag [#allocation3], %s331
        %s333 = sand.u32 %s228, 1
        %s334 = smul.addr %s333, 128
        %s335 = scalar_lea.vmem [#allocation2], %s334
        %s336 = smul.u32 %s26, 2
        %s337 = sadd.s32 %s336, %s27
        %p338 = scmp.lt.s32.totalorder %s337, 3
        %s339 = scalar_select %p338, %s337, 3
        %s340 = smul.addr %s339, 36
        %s341 = smul.addr %s340, 8
        %s342 = scalar_lea.vmem %s0, %s341
        %s343 = smul.u32 %s26, 2
        %s344 = sadd.s32 %s343, %s27
        %p345 = scmp.lt.s32.totalorder %s26, 1
        %s346 = scalar_select %p345, %s26, 1
        %s347 = scalar_lea.vmem %s6, %s346
        %s348 = smul.u32 %s26, 2
        %s349 = sadd.s32 %s348, %s27
        %s350 = smul.u32 16, %s349
        %s351 = scalar_lea.vmem %s342, 48
        %v352 = vld [vmem:[%s351 + $0x2] sm:$0xff]
        %v353 = vld [vmem:[%s351 + $0xa] sm:$0xff]
        %v354 = vld [vmem:[%s351 + $0x1a] sm:$0xff]
        %v355 = vld [vmem:[%s351 + $0x22] sm:$0xff]
        %v356 = vld [vmem:[%s351 + $0x32] sm:$0xff]
        %v357 = vld [vmem:[%s351 + $0x3a] sm:$0xff]
        %v358 = vld [vmem:[%s351 + $0x4a] sm:$0xff]
        %v359 = vld [vmem:[%s351 + $0x52] sm:$0xff]
        %v360 = vld [vmem:[%s351 + $0x62] sm:$0xff]
        %v361 = vld [vmem:[%s351 + $0x6a] sm:$0xff]
        %v362 = vld [vmem:[%s351 + $0x7a] sm:$0xff]
        %v363 = vld [vmem:[%s351 + $0x82] sm:$0xff]
        %v364 = vld [vmem:[%s351 + $0x92] sm:$0xff]
        %v365 = vld [vmem:[%s351 + $0x9a] sm:$0xff]
        %v366 = vld [vmem:[%s351 + $0xaa] sm:$0xff]
        %v367 = vld [vmem:[%s351 + $0xb2] sm:$0xff]
        %v368 = vld [vmem:[%s1] sm:$0xf]
        %v369 = vld [vmem:[%s2] sm:$0x1]
        %v371 = vlaneseq
        %v372 = vshrl.u32 %v371, 7
        %v373 = vsub.s32 0, %v372
        %v374 = vrot.slane %v369, %v373
        %vm376 = vcmask 31744
        %v378 = vsel %vm376, %v352, 0
        %v381 = vsel %vm376, %v353, 0
        %v384 = vsel %vm376, %v354, 0
        %v387 = vsel %vm376, %v355, 0
        %v390 = vsel %vm376, %v356, 0
        %v393 = vsel %vm376, %v357, 0
        %v396 = vsel %vm376, %v358, 0
        %v399 = vsel %vm376, %v359, 0
        %v402 = vsel %vm376, %v360, 0
        %v405 = vsel %vm376, %v361, 0
        %v408 = vsel %vm376, %v362, 0
        %v411 = vsel %vm376, %v363, 0
        %v414 = vsel %vm376, %v364, 0
        %v417 = vsel %vm376, %v365, 0
        %v420 = vsel %vm376, %v366, 0
        %v423 = vsel %vm376, %v367, 0
        %vm425 = vcmask 1043456
        %v427 = vsel %vm425, %v368, 0
        %429 = vmatprep.subr.mxu0 0.0
        %430 = vmatpush1.msra.mxu0 0.0
        %431 = vmatprep.subr.mxu0 0.0
        %432 = vmatpush1.msra.mxu0 0.0
        %433 = vmatprep.subr.mxu0 0.0
        %434 = vmatpush1.msra.mxu0 0.0
        %435 = vmatprep.subr.mxu0 0.0
        %436 = vmatpush1.msra.mxu0 0.0
        %437 = vmatprep.subr.mxu0 0.0
        %438 = vmatpush1.msra.mxu0 0.0
        %439 = vmatprep.subr.mxu0 0.0
        %440 = vmatpush1.msra.mxu0 0.0
        %441 = vmatprep.subr.mxu0 0.0
        %442 = vmatpush1.msra.mxu0 0.0
        %443 = vmatprep.subr.mxu0 0.0
        %444 = vmatpush1.msra.mxu0 0.0
        %445 = vmatprep.subr.mxu0 0.0
        %446 = vmatpush1.msra.mxu0 0.0
        %447 = vmatprep.subr.mxu0 0.0
        %448 = vmatpush1.msra.mxu0 0.0
        %449 = vmatprep.subr.mxu0 0.0
        %450 = vmatpush1.msra.mxu0 0.0
        %451 = vmatprep.subr.mxu0 0.0
        %452 = vmatpush1.msra.mxu0 0.0
        %453 = vmatprep.subr.mxu0 0.0
        %454 = vmatpush1.msra.mxu0 0.0
        %455 = vmatprep.subr.mxu0 0.0
        %456 = vmatpush1.msra.mxu0 0.0
        %457 = vmatprep.subr.mxu0 0.0
        %458 = vmatpush1.msra.mxu0 0.0
        %459 = vmatprep.subr.mxu0 0.0
        %460 = vmatpush1.msra.mxu0 %v427
        %461 = vmatprep.subr.mxu0 0.0
        %462 = vmatpush2.msra.mxu0 0.0
        %463 = vmatprep.subr.mxu0 0.0
        %464 = vmatpush2.msra.mxu0 0.0
        %465 = vmatprep.subr.mxu0 0.0
        %466 = vmatpush2.msra.mxu0 0.0
        %467 = vmatprep.subr.mxu0 0.0
        %468 = vmatpush2.msra.mxu0 0.0
        %469 = vmatprep.subr.mxu0 0.0
        %470 = vmatpush2.msra.mxu0 0.0
        %471 = vmatprep.subr.mxu0 0.0
        %472 = vmatpush2.msra.mxu0 0.0
        %473 = vmatprep.subr.mxu0 0.0
        %474 = vmatpush2.msra.mxu0 0.0
        %475 = vmatprep.subr.mxu0 0.0
        %476 = vmatpush2.msra.mxu0 0.0
        %477 = vmatprep.subr.mxu0 0.0
        %478 = vmatpush2.msra.mxu0 0.0
        %479 = vmatprep.subr.mxu0 0.0
        %480 = vmatpush2.msra.mxu0 0.0
        %481 = vmatprep.subr.mxu0 0.0
        %482 = vmatpush2.msra.mxu0 0.0
        %483 = vmatprep.subr.mxu0 0.0
        %484 = vmatpush2.msra.mxu0 0.0
        %485 = vmatprep.subr.mxu0 0.0
        %486 = vmatpush2.msra.mxu0 0.0
        %487 = vmatprep.subr.mxu0 0.0
        %488 = vmatpush2.msra.mxu0 0.0
        %489 = vmatprep.subr.mxu0 0.0
        %490 = vmatpush2.msra.mxu0 0.0
        %491 = vmatprep.subr.mxu0 0.0
        %492 = vmatpush2.msra.mxu0 0.0
        %493 = vmatprep.mubr.f32.mxu0 0.0
        %494 = vmatmul.mubr.f32.gmra.mxu0 %v378
        %v495 = vpop.f32.mrf.mxu0
        %v496 = vadd.f32 %v374, %v495
        %v497 = vpop.f32.mrf.mxu0
        %498 = vmatprep.mubr.f32.mxu0 0.0
        %499 = vmatmul.mubr.f32.gmra.mxu0 %v381
        %v500 = vpop.f32.mrf.mxu0
        %v501 = vadd.f32 %v374, %v500
        %v502 = vpop.f32.mrf.mxu0
        %503 = vmatprep.mubr.f32.mxu0 0.0
        %504 = vmatmul.mubr.f32.gmra.mxu0 %v384
        %v505 = vpop.f32.mrf.mxu0
        %v506 = vadd.f32 %v374, %v505
        %v507 = vpop.f32.mrf.mxu0
        %508 = vmatprep.mubr.f32.mxu0 0.0
        %509 = vmatmul.mubr.f32.gmra.mxu0 %v387
        %v510 = vpop.f32.mrf.mxu0
        %v511 = vadd.f32 %v374, %v510
        %v512 = vpop.f32.mrf.mxu0
        %513 = vmatprep.mubr.f32.mxu0 0.0
        %514 = vmatmul.mubr.f32.gmra.mxu0 %v390
        %v515 = vpop.f32.mrf.mxu0
        %v516 = vadd.f32 %v374, %v515
        %v517 = vpop.f32.mrf.mxu0
        %518 = vmatprep.mubr.f32.mxu0 0.0
        %519 = vmatmul.mubr.f32.gmra.mxu0 %v393
        %v520 = vpop.f32.mrf.mxu0
        %v521 = vadd.f32 %v374, %v520
        %v522 = vpop.f32.mrf.mxu0
        %523 = vmatprep.mubr.f32.mxu0 0.0
        %524 = vmatmul.mubr.f32.gmra.mxu0 %v396
        %v525 = vpop.f32.mrf.mxu0
        %v526 = vadd.f32 %v374, %v525
        %v527 = vpop.f32.mrf.mxu0
        %528 = vmatprep.mubr.f32.mxu0 0.0
        %529 = vmatmul.mubr.f32.gmra.mxu0 %v399
        %v530 = vpop.f32.mrf.mxu0
        %v531 = vadd.f32 %v374, %v530
        %v532 = vpop.f32.mrf.mxu0
        %533 = vmatprep.mubr.f32.mxu0 0.0
        %534 = vmatmul.mubr.f32.gmra.mxu0 %v402
        %v535 = vpop.f32.mrf.mxu0
        %v536 = vadd.f32 %v374, %v535
        %v537 = vpop.f32.mrf.mxu0
        %538 = vmatprep.mubr.f32.mxu0 0.0
        %539 = vmatmul.mubr.f32.gmra.mxu0 %v405
        %v540 = vpop.f32.mrf.mxu0
        %v541 = vadd.f32 %v374, %v540
        %v542 = vpop.f32.mrf.mxu0
        %543 = vmatprep.mubr.f32.mxu0 0.0
        %544 = vmatmul.mubr.f32.gmra.mxu0 %v408
        %v545 = vpop.f32.mrf.mxu0
        %v546 = vadd.f32 %v374, %v545
        %v547 = vpop.f32.mrf.mxu0
        %548 = vmatprep.mubr.f32.mxu0 0.0
        %549 = vmatmul.mubr.f32.gmra.mxu0 %v411
        %v550 = vpop.f32.mrf.mxu0
        %v551 = vadd.f32 %v374, %v550
        %v552 = vpop.f32.mrf.mxu0
        %553 = vmatprep.mubr.f32.mxu0 0.0
        %554 = vmatmul.mubr.f32.gmra.mxu0 %v414
        %v555 = vpop.f32.mrf.mxu0
        %v556 = vadd.f32 %v374, %v555
        %v557 = vpop.f32.mrf.mxu0
        %558 = vmatprep.mubr.f32.mxu0 0.0
        %559 = vmatmul.mubr.f32.gmra.mxu0 %v417
        %v560 = vpop.f32.mrf.mxu0
        %v561 = vadd.f32 %v374, %v560
        %v562 = vpop.f32.mrf.mxu0
        %563 = vmatprep.mubr.f32.mxu0 0.0
        %564 = vmatmul.mubr.f32.gmra.mxu0 %v420
        %v565 = vpop.f32.mrf.mxu0
        %v566 = vadd.f32 %v374, %v565
        %v567 = vpop.f32.mrf.mxu0
        %568 = vmatprep.mubr.f32.mxu0 0.0
        %569 = vmatmul.mubr.f32.gmra.mxu0 %v423
        %v570 = vpop.f32.mrf.mxu0
        %v571 = vadd.f32 %v374, %v570
        %v572 = vpop.f32.mrf.mxu0
        %573 = vdwg.mxu0
        %v574 = vmax.f32 %v496, 0.0
        %v575 = vmax.f32 %v501, 0.0
        %v576 = vmax.f32 %v506, 0.0
        %v577 = vmax.f32 %v511, 0.0
        %v578 = vmax.f32 %v516, 0.0
        %v579 = vmax.f32 %v521, 0.0
        %v580 = vmax.f32 %v526, 0.0
        %v581 = vmax.f32 %v531, 0.0
        %v582 = vmax.f32 %v536, 0.0
        %v583 = vmax.f32 %v541, 0.0
        %v584 = vmax.f32 %v546, 0.0
        %v585 = vmax.f32 %v551, 0.0
        %v586 = vmax.f32 %v556, 0.0
        %v587 = vmax.f32 %v561, 0.0
        %v588 = vmax.f32 %v566, 0.0
        %v589 = vmax.f32 %v571, 0.0
        %v590 = vld [vmem:[%s5] sm:$0xff]
        %v591 = vld [vmem:[%s5 + $0x8] sm:$0xff]
        %v592 = vld [vmem:[%s5 + $0x10] sm:$0xff]
        %v593 = vld [vmem:[%s5 + $0x18] sm:$0xff]
        %v594 = vld [vmem:[%s5 + $0x20] sm:$0xff]
        %v595 = vld [vmem:[%s5 + $0x28] sm:$0xff]
        %v596 = vld [vmem:[%s5 + $0x30] sm:$0xff]
        %v597 = vld [vmem:[%s5 + $0x38] sm:$0xff]
        %v598 = vld [vmem:[%s5 + $0x40] sm:$0xff]
        %v599 = vld [vmem:[%s5 + $0x48] sm:$0xff]
        %v600 = vld [vmem:[%s5 + $0x50] sm:$0xff]
        %v601 = vld [vmem:[%s5 + $0x58] sm:$0xff]
        %v602 = vld [vmem:[%s5 + $0x60] sm:$0xff]
        %v603 = vld [vmem:[%s5 + $0x68] sm:$0xff]
        %v604 = vld [vmem:[%s5 + $0x70] sm:$0xff]
        %v605 = vld [vmem:[%s5 + $0x78] sm:$0xff]
        %s606 = scalar_lea.vmem %s342, 24
        %v607 = vld [vmem:[%s606] sm:$0xff]
        %v608 = vld [vmem:[%s606 + $0x8] sm:$0xff]
        %v609 = vld [vmem:[%s606 + $0x10] sm:$0xf]
        %v610 = vld [vmem:[%s606 + $0x18] sm:$0xff]
        %v611 = vld [vmem:[%s606 + $0x20] sm:$0xff]
        %v612 = vld [vmem:[%s606 + $0x28] sm:$0xf]
        %v613 = vld [vmem:[%s606 + $0x30] sm:$0xff]
        %v614 = vld [vmem:[%s606 + $0x38] sm:$0xff]
        %v615 = vld [vmem:[%s606 + $0x40] sm:$0xf]
        %v616 = vld [vmem:[%s606 + $0x48] sm:$0xff]
        %v617 = vld [vmem:[%s606 + $0x50] sm:$0xff]
        %v618 = vld [vmem:[%s606 + $0x58] sm:$0xf]
        %v619 = vld [vmem:[%s606 + $0x60] sm:$0xff]
        %v620 = vld [vmem:[%s606 + $0x68] sm:$0xff]
        %v621 = vld [vmem:[%s606 + $0x70] sm:$0xf]
        %v622 = vld [vmem:[%s606 + $0x78] sm:$0xff]
        %v623 = vld [vmem:[%s606 + $0x80] sm:$0xff]
        %v624 = vld [vmem:[%s606 + $0x88] sm:$0xf]
        %v625 = vld [vmem:[%s606 + $0x90] sm:$0xff]
        %v626 = vld [vmem:[%s606 + $0x98] sm:$0xff]
        %v627 = vld [vmem:[%s606 + $0xa0] sm:$0xf]
        %v628 = vld [vmem:[%s606 + $0xa8] sm:$0xff]
        %v629 = vld [vmem:[%s606 + $0xb0] sm:$0xff]
        %v630 = vld [vmem:[%s606 + $0xb8] sm:$0xf]
        %vm655 = vcmask 1046528
        %v656 = vrot.slane %v607, 1
        %v657 = vrot.slane %v608, 1
        %v658 = vsel %vm655, %v656, %v657
        %v659 = vrot.slane %v609, 1
        %v660 = vsel %vm655, %v657, %v659
        %v661 = vrot.slane %v610, 1
        %v662 = vrot.slane %v611, 1
        %v663 = vsel %vm655, %v661, %v662
        %v664 = vrot.slane %v612, 1
        %v665 = vsel %vm655, %v662, %v664
        %v666 = vrot.slane %v613, 1
        %v667 = vrot.slane %v614, 1
        %v668 = vsel %vm655, %v666, %v667
        %v669 = vrot.slane %v615, 1
        %v670 = vsel %vm655, %v667, %v669
        %v671 = vrot.slane %v616, 1
        %v672 = vrot.slane %v617, 1
        %v673 = vsel %vm655, %v671, %v672
        %v674 = vrot.slane %v618, 1
        %v675 = vsel %vm655, %v672, %v674
        %v676 = vrot.slane %v619, 1
        %v677 = vrot.slane %v620, 1
        %v678 = vsel %vm655, %v676, %v677
        %v679 = vrot.slane %v621, 1
        %v680 = vsel %vm655, %v677, %v679
        %v681 = vrot.slane %v622, 1
        %v682 = vrot.slane %v623, 1
        %v683 = vsel %vm655, %v681, %v682
        %v684 = vrot.slane %v624, 1
        %v685 = vsel %vm655, %v682, %v684
        %v686 = vrot.slane %v625, 1
        %v687 = vrot.slane %v626, 1
        %v688 = vsel %vm655, %v686, %v687
        %v689 = vrot.slane %v627, 1
        %v690 = vsel %vm655, %v687, %v689
        %v691 = vrot.slane %v628, 1
        %v692 = vrot.slane %v629, 1
        %v693 = vsel %vm655, %v691, %v692
        %v694 = vrot.slane %v630, 1
        %v695 = vsel %vm655, %v692, %v694
        %696 = vrot.lane.b32.xlu0 %v658, 4
        %v697 = vpop.permute.xlu0 %696
        %698 = vrot.lane.b32.xlu0 %v660, 4
        %v699 = vpop.permute.xlu0 %698
        %700 = vrot.lane.b32.xlu0 %v659, 4
        %v701 = vpop.permute.xlu0 %700
        %702 = vrot.lane.b32.xlu0 %v663, 4
        %v703 = vpop.permute.xlu0 %702
        %704 = vrot.lane.b32.xlu0 %v665, 4
        %v705 = vpop.permute.xlu0 %704
        %706 = vrot.lane.b32.xlu0 %v664, 4
        %v707 = vpop.permute.xlu0 %706
        %708 = vrot.lane.b32.xlu0 %v668, 4
        %v709 = vpop.permute.xlu0 %708
        %710 = vrot.lane.b32.xlu0 %v670, 4
        %v711 = vpop.permute.xlu0 %710
        %712 = vrot.lane.b32.xlu0 %v669, 4
        %v713 = vpop.permute.xlu0 %712
        %714 = vrot.lane.b32.xlu0 %v673, 4
        %v715 = vpop.permute.xlu0 %714
        %716 = vrot.lane.b32.xlu0 %v675, 4
        %v717 = vpop.permute.xlu0 %716
        %718 = vrot.lane.b32.xlu0 %v674, 4
        %v719 = vpop.permute.xlu0 %718
        %720 = vrot.lane.b32.xlu0 %v678, 4
        %v721 = vpop.permute.xlu0 %720
        %722 = vrot.lane.b32.xlu0 %v680, 4
        %v723 = vpop.permute.xlu0 %722
        %724 = vrot.lane.b32.xlu0 %v679, 4
        %v725 = vpop.permute.xlu0 %724
        %726 = vrot.lane.b32.xlu0 %v683, 4
        %v727 = vpop.permute.xlu0 %726
        %728 = vrot.lane.b32.xlu0 %v685, 4
        %v729 = vpop.permute.xlu0 %728
        %730 = vrot.lane.b32.xlu0 %v684, 4
        %v731 = vpop.permute.xlu0 %730
        %732 = vrot.lane.b32.xlu0 %v688, 4
        %v733 = vpop.permute.xlu0 %732
        %734 = vrot.lane.b32.xlu0 %v690, 4
        %v735 = vpop.permute.xlu0 %734
        %736 = vrot.lane.b32.xlu0 %v689, 4
        %v737 = vpop.permute.xlu0 %736
        %738 = vrot.lane.b32.xlu0 %v693, 4
        %v739 = vpop.permute.xlu0 %738
        %740 = vrot.lane.b32.xlu0 %v695, 4
        %v741 = vpop.permute.xlu0 %740
        %742 = vrot.lane.b32.xlu0 %v694, 4
        %v743 = vpop.permute.xlu0 %742
        %vm768 = vcmask 1045504
        %v769 = vrot.slane %v607, 2
        %v770 = vrot.slane %v608, 2
        %v771 = vsel %vm768, %v769, %v770
        %v772 = vrot.slane %v609, 2
        %v773 = vsel %vm768, %v770, %v772
        %v774 = vrot.slane %v610, 2
        %v775 = vrot.slane %v611, 2
        %v776 = vsel %vm768, %v774, %v775
        %v777 = vrot.slane %v612, 2
        %v778 = vsel %vm768, %v775, %v777
        %v779 = vrot.slane %v613, 2
        %v780 = vrot.slane %v614, 2
        %v781 = vsel %vm768, %v779, %v780
        %v782 = vrot.slane %v615, 2
        %v783 = vsel %vm768, %v780, %v782
        %v784 = vrot.slane %v616, 2
        %v785 = vrot.slane %v617, 2
        %v786 = vsel %vm768, %v784, %v785
        %v787 = vrot.slane %v618, 2
        %v788 = vsel %vm768, %v785, %v787
        %v789 = vrot.slane %v619, 2
        %v790 = vrot.slane %v620, 2
        %v791 = vsel %vm768, %v789, %v790
        %v792 = vrot.slane %v621, 2
        %v793 = vsel %vm768, %v790, %v792
        %v794 = vrot.slane %v622, 2
        %v795 = vrot.slane %v623, 2
        %v796 = vsel %vm768, %v794, %v795
        %v797 = vrot.slane %v624, 2
        %v798 = vsel %vm768, %v795, %v797
        %v799 = vrot.slane %v625, 2
        %v800 = vrot.slane %v626, 2
        %v801 = vsel %vm768, %v799, %v800
        %v802 = vrot.slane %v627, 2
        %v803 = vsel %vm768, %v800, %v802
        %v804 = vrot.slane %v628, 2
        %v805 = vrot.slane %v629, 2
        %v806 = vsel %vm768, %v804, %v805
        %v807 = vrot.slane %v630, 2
        %v808 = vsel %vm768, %v805, %v807
        %809 = vrot.lane.b32.xlu0 %v771, 8
        %v810 = vpop.permute.xlu0 %809
        %811 = vrot.lane.b32.xlu0 %v773, 8
        %v812 = vpop.permute.xlu0 %811
        %813 = vrot.lane.b32.xlu0 %v772, 8
        %v814 = vpop.permute.xlu0 %813
        %815 = vrot.lane.b32.xlu0 %v776, 8
        %v816 = vpop.permute.xlu0 %815
        %817 = vrot.lane.b32.xlu0 %v778, 8
        %v818 = vpop.permute.xlu0 %817
        %819 = vrot.lane.b32.xlu0 %v777, 8
        %v820 = vpop.permute.xlu0 %819
        %821 = vrot.lane.b32.xlu0 %v781, 8
        %v822 = vpop.permute.xlu0 %821
        %823 = vrot.lane.b32.xlu0 %v783, 8
        %v824 = vpop.permute.xlu0 %823
        %825 = vrot.lane.b32.xlu0 %v782, 8
        %v826 = vpop.permute.xlu0 %825
        %827 = vrot.lane.b32.xlu0 %v786, 8
        %v828 = vpop.permute.xlu0 %827
        %829 = vrot.lane.b32.xlu0 %v788, 8
        %v830 = vpop.permute.xlu0 %829
        %831 = vrot.lane.b32.xlu0 %v787, 8
        %v832 = vpop.permute.xlu0 %831
        %833 = vrot.lane.b32.xlu0 %v791, 8
        %v834 = vpop.permute.xlu0 %833
        %835 = vrot.lane.b32.xlu0 %v793, 8
        %v836 = vpop.permute.xlu0 %835
        %837 = vrot.lane.b32.xlu0 %v792, 8
        %v838 = vpop.permute.xlu0 %837
        %839 = vrot.lane.b32.xlu0 %v796, 8
        %v840 = vpop.permute.xlu0 %839
        %841 = vrot.lane.b32.xlu0 %v798, 8
        %v842 = vpop.permute.xlu0 %841
        %843 = vrot.lane.b32.xlu0 %v797, 8
        %v844 = vpop.permute.xlu0 %843
        %845 = vrot.lane.b32.xlu0 %v801, 8
        %v846 = vpop.permute.xlu0 %845
        %847 = vrot.lane.b32.xlu0 %v803, 8
        %v848 = vpop.permute.xlu0 %847
        %849 = vrot.lane.b32.xlu0 %v802, 8
        %v850 = vpop.permute.xlu0 %849
        %851 = vrot.lane.b32.xlu0 %v806, 8
        %v852 = vpop.permute.xlu0 %851
        %853 = vrot.lane.b32.xlu0 %v808, 8
        %v854 = vpop.permute.xlu0 %853
        %855 = vrot.lane.b32.xlu0 %v807, 8
        %v856 = vpop.permute.xlu0 %855
        %v881 = vsel %vm376, %v607, %v697
        %v882 = vsel %vm376, %v608, %v699
        %v883 = vsel %vm376, %v609, %v701
        %v884 = vsel %vm376, %v610, %v703
        %v885 = vsel %vm376, %v611, %v705
        %v886 = vsel %vm376, %v612, %v707
        %v887 = vsel %vm376, %v613, %v709
        %v888 = vsel %vm376, %v614, %v711
        %v889 = vsel %vm376, %v615, %v713
        %v890 = vsel %vm376, %v616, %v715
        %v891 = vsel %vm376, %v617, %v717
        %v892 = vsel %vm376, %v618, %v719
        %v893 = vsel %vm376, %v619, %v721
        %v894 = vsel %vm376, %v620, %v723
        %v895 = vsel %vm376, %v621, %v725
        %v896 = vsel %vm376, %v622, %v727
        %v897 = vsel %vm376, %v623, %v729
        %v898 = vsel %vm376, %v624, %v731
        %v899 = vsel %vm376, %v625, %v733
        %v900 = vsel %vm376, %v626, %v735
        %v901 = vsel %vm376, %v627, %v737
        %v902 = vsel %vm376, %v628, %v739
        %v903 = vsel %vm376, %v629, %v741
        %v904 = vsel %vm376, %v630, %v743
        %vm905 = vcmask 64512
        %v906 = vsel %vm905, %v881, %v810
        %v907 = vsel %vm905, %v882, %v812
        %v908 = vsel %vm905, %v883, %v814
        %v909 = vsel %vm905, %v884, %v816
        %v910 = vsel %vm905, %v885, %v818
        %v911 = vsel %vm905, %v886, %v820
        %v912 = vsel %vm905, %v887, %v822
        %v913 = vsel %vm905, %v888, %v824
        %v914 = vsel %vm905, %v889, %v826
        %v915 = vsel %vm905, %v890, %v828
        %v916 = vsel %vm905, %v891, %v830
        %v917 = vsel %vm905, %v892, %v832
        %v918 = vsel %vm905, %v893, %v834
        %v919 = vsel %vm905, %v894, %v836
        %v920 = vsel %vm905, %v895, %v838
        %v921 = vsel %vm905, %v896, %v840
        %v922 = vsel %vm905, %v897, %v842
        %v923 = vsel %vm905, %v898, %v844
        %v924 = vsel %vm905, %v899, %v846
        %v925 = vsel %vm905, %v900, %v848
        %v926 = vsel %vm905, %v901, %v850
        %v927 = vsel %vm905, %v902, %v852
        %v928 = vsel %vm905, %v903, %v854
        %v929 = vsel %vm905, %v904, %v856
        %v954 = vrot.slane %v906, 1
        %v955 = vrot.slane %v907, 1
        %v956 = vsel %vm655, %v954, %v955
        %v957 = vrot.slane %v908, 1
        %v958 = vsel %vm655, %v955, %v957
        %v959 = vrot.slane %v909, 1
        %v960 = vrot.slane %v910, 1
        %v961 = vsel %vm655, %v959, %v960
        %v962 = vrot.slane %v911, 1
        %v963 = vsel %vm655, %v960, %v962
        %v964 = vrot.slane %v912, 1
        %v965 = vrot.slane %v913, 1
        %v966 = vsel %vm655, %v964, %v965
        %v967 = vrot.slane %v914, 1
        %v968 = vsel %vm655, %v965, %v967
        %v969 = vrot.slane %v915, 1
        %v970 = vrot.slane %v916, 1
        %v971 = vsel %vm655, %v969, %v970
        %v972 = vrot.slane %v917, 1
        %v973 = vsel %vm655, %v970, %v972
        %v974 = vrot.slane %v918, 1
        %v975 = vrot.slane %v919, 1
        %v976 = vsel %vm655, %v974, %v975
        %v977 = vrot.slane %v920, 1
        %v978 = vsel %vm655, %v975, %v977
        %v979 = vrot.slane %v921, 1
        %v980 = vrot.slane %v922, 1
        %v981 = vsel %vm655, %v979, %v980
        %v982 = vrot.slane %v923, 1
        %v983 = vsel %vm655, %v980, %v982
        %v984 = vrot.slane %v924, 1
        %v985 = vrot.slane %v925, 1
        %v986 = vsel %vm655, %v984, %v985
        %v987 = vrot.slane %v926, 1
        %v988 = vsel %vm655, %v985, %v987
        %v989 = vrot.slane %v927, 1
        %v990 = vrot.slane %v928, 1
        %v991 = vsel %vm655, %v989, %v990
        %v992 = vrot.slane %v929, 1
        %v993 = vsel %vm655, %v990, %v992
        %v994 = vld [vmem:[%s3] sm:$0xff]
        %v995 = vld [vmem:[%s3 + $0x8] sm:$0xf]
        %v996 = vld [vmem:[%s351] sm:$0xff]
        %v997 = vld [vmem:[%s351 + $0x8] sm:$0xff]
        %v998 = vld [vmem:[%s351 + $0x10] sm:$0xf]
        %v999 = vld [vmem:[%s351 + $0x18] sm:$0xff]
        %v1000 = vld [vmem:[%s351 + $0x20] sm:$0xff]
        %v1001 = vld [vmem:[%s351 + $0x28] sm:$0xf]
        %v1002 = vld [vmem:[%s351 + $0x30] sm:$0xff]
        %v1003 = vld [vmem:[%s351 + $0x38] sm:$0xff]
        %v1004 = vld [vmem:[%s351 + $0x40] sm:$0xf]
        %v1005 = vld [vmem:[%s351 + $0x48] sm:$0xff]
        %v1006 = vld [vmem:[%s351 + $0x50] sm:$0xff]
        %v1007 = vld [vmem:[%s351 + $0x58] sm:$0xf]
        %v1008 = vld [vmem:[%s351 + $0x60] sm:$0xff]
        %v1009 = vld [vmem:[%s351 + $0x68] sm:$0xff]
        %v1010 = vld [vmem:[%s351 + $0x70] sm:$0xf]
        %v1011 = vld [vmem:[%s351 + $0x78] sm:$0xff]
        %v1012 = vld [vmem:[%s351 + $0x80] sm:$0xff]
        %v1013 = vld [vmem:[%s351 + $0x88] sm:$0xf]
        %v1014 = vld [vmem:[%s351 + $0x90] sm:$0xff]
        %v1015 = vld [vmem:[%s351 + $0x98] sm:$0xff]
        %v1016 = vld [vmem:[%s351 + $0xa0] sm:$0xf]
        %v1017 = vld [vmem:[%s351 + $0xa8] sm:$0xff]
        %v1018 = vld [vmem:[%s351 + $0xb0] sm:$0xff]
        %v1019 = vld [vmem:[%s351 + $0xb8] sm:$0xf]
        %v1044 = vrot.slane %v996, 1
        %v1045 = vrot.slane %v997, 1
        %v1046 = vsel %vm655, %v1044, %v1045
        %v1047 = vrot.slane %v998, 1
        %v1048 = vsel %vm655, %v1045, %v1047
        %v1049 = vrot.slane %v999, 1
        %v1050 = vrot.slane %v1000, 1
        %v1051 = vsel %vm655, %v1049, %v1050
        %v1052 = vrot.slane %v1001, 1
        %v1053 = vsel %vm655, %v1050, %v1052
        %v1054 = vrot.slane %v1002, 1
        %v1055 = vrot.slane %v1003, 1
        %v1056 = vsel %vm655, %v1054, %v1055
        %v1057 = vrot.slane %v1004, 1
        %v1058 = vsel %vm655, %v1055, %v1057
        %v1059 = vrot.slane %v1005, 1
        %v1060 = vrot.slane %v1006, 1
        %v1061 = vsel %vm655, %v1059, %v1060
        %v1062 = vrot.slane %v1007, 1
        %v1063 = vsel %vm655, %v1060, %v1062
        %v1064 = vrot.slane %v1008, 1
        %v1065 = vrot.slane %v1009, 1
        %v1066 = vsel %vm655, %v1064, %v1065
        %v1067 = vrot.slane %v1010, 1
        %v1068 = vsel %vm655, %v1065, %v1067
        %v1069 = vrot.slane %v1011, 1
        %v1070 = vrot.slane %v1012, 1
        %v1071 = vsel %vm655, %v1069, %v1070
        %v1072 = vrot.slane %v1013, 1
        %v1073 = vsel %vm655, %v1070, %v1072
        %v1074 = vrot.slane %v1014, 1
        %v1075 = vrot.slane %v1015, 1
        %v1076 = vsel %vm655, %v1074, %v1075
        %v1077 = vrot.slane %v1016, 1
        %v1078 = vsel %vm655, %v1075, %v1077
        %v1079 = vrot.slane %v1017, 1
        %v1080 = vrot.slane %v1018, 1
        %v1081 = vsel %vm655, %v1079, %v1080
        %v1082 = vrot.slane %v1019, 1
        %v1083 = vsel %vm655, %v1080, %v1082
        %1084 = vrot.lane.b32.xlu0 %v1046, 4
        %v1085 = vpop.permute.xlu0 %1084
        %1086 = vrot.lane.b32.xlu0 %v1048, 4
        %v1087 = vpop.permute.xlu0 %1086
        %1088 = vrot.lane.b32.xlu0 %v1047, 4
        %v1089 = vpop.permute.xlu0 %1088
        %1090 = vrot.lane.b32.xlu0 %v1051, 4
        %v1091 = vpop.permute.xlu0 %1090
        %1092 = vrot.lane.b32.xlu0 %v1053, 4
        %v1093 = vpop.permute.xlu0 %1092
        %1094 = vrot.lane.b32.xlu0 %v1052, 4
        %v1095 = vpop.permute.xlu0 %1094
        %1096 = vrot.lane.b32.xlu0 %v1056, 4
        %v1097 = vpop.permute.xlu0 %1096
        %1098 = vrot.lane.b32.xlu0 %v1058, 4
        %v1099 = vpop.permute.xlu0 %1098
        %1100 = vrot.lane.b32.xlu0 %v1057, 4
        %v1101 = vpop.permute.xlu0 %1100
        %1102 = vrot.lane.b32.xlu0 %v1061, 4
        %v1103 = vpop.permute.xlu0 %1102
        %1104 = vrot.lane.b32.xlu0 %v1063, 4
        %v1105 = vpop.permute.xlu0 %1104
        %1106 = vrot.lane.b32.xlu0 %v1062, 4
        %v1107 = vpop.permute.xlu0 %1106
        %1108 = vrot.lane.b32.xlu0 %v1066, 4
        %v1109 = vpop.permute.xlu0 %1108
        %1110 = vrot.lane.b32.xlu0 %v1068, 4
        %v1111 = vpop.permute.xlu0 %1110
        %1112 = vrot.lane.b32.xlu0 %v1067, 4
        %v1113 = vpop.permute.xlu0 %1112
        %1114 = vrot.lane.b32.xlu0 %v1071, 4
        %v1115 = vpop.permute.xlu0 %1114
        %1116 = vrot.lane.b32.xlu0 %v1073, 4
        %v1117 = vpop.permute.xlu0 %1116
        %1118 = vrot.lane.b32.xlu0 %v1072, 4
        %v1119 = vpop.permute.xlu0 %1118
        %1120 = vrot.lane.b32.xlu0 %v1076, 4
        %v1121 = vpop.permute.xlu0 %1120
        %1122 = vrot.lane.b32.xlu0 %v1078, 4
        %v1123 = vpop.permute.xlu0 %1122
        %1124 = vrot.lane.b32.xlu0 %v1077, 4
        %v1125 = vpop.permute.xlu0 %1124
        %1126 = vrot.lane.b32.xlu0 %v1081, 4
        %v1127 = vpop.permute.xlu0 %1126
        %1128 = vrot.lane.b32.xlu0 %v1083, 4
        %v1129 = vpop.permute.xlu0 %1128
        %1130 = vrot.lane.b32.xlu0 %v1082, 4
        %v1131 = vpop.permute.xlu0 %1130
        %v1156 = vrot.slane %v996, 2
        %v1157 = vrot.slane %v997, 2
        %v1158 = vsel %vm768, %v1156, %v1157
        %v1159 = vrot.slane %v998, 2
        %v1160 = vsel %vm768, %v1157, %v1159
        %v1161 = vrot.slane %v999, 2
        %v1162 = vrot.slane %v1000, 2
        %v1163 = vsel %vm768, %v1161, %v1162
        %v1164 = vrot.slane %v1001, 2
        %v1165 = vsel %vm768, %v1162, %v1164
        %v1166 = vrot.slane %v1002, 2
        %v1167 = vrot.slane %v1003, 2
        %v1168 = vsel %vm768, %v1166, %v1167
        %v1169 = vrot.slane %v1004, 2
        %v1170 = vsel %vm768, %v1167, %v1169
        %v1171 = vrot.slane %v1005, 2
        %v1172 = vrot.slane %v1006, 2
        %v1173 = vsel %vm768, %v1171, %v1172
        %v1174 = vrot.slane %v1007, 2
        %v1175 = vsel %vm768, %v1172, %v1174
        %v1176 = vrot.slane %v1008, 2
        %v1177 = vrot.slane %v1009, 2
        %v1178 = vsel %vm768, %v1176, %v1177
        %v1179 = vrot.slane %v1010, 2
        %v1180 = vsel %vm768, %v1177, %v1179
        %v1181 = vrot.slane %v1011, 2
        %v1182 = vrot.slane %v1012, 2
        %v1183 = vsel %vm768, %v1181, %v1182
        %v1184 = vrot.slane %v1013, 2
        %v1185 = vsel %vm768, %v1182, %v1184
        %v1186 = vrot.slane %v1014, 2
        %v1187 = vrot.slane %v1015, 2
        %v1188 = vsel %vm768, %v1186, %v1187
        %v1189 = vrot.slane %v1016, 2
        %v1190 = vsel %vm768, %v1187, %v1189
        %v1191 = vrot.slane %v1017, 2
        %v1192 = vrot.slane %v1018, 2
        %v1193 = vsel %vm768, %v1191, %v1192
        %v1194 = vrot.slane %v1019, 2
        %v1195 = vsel %vm768, %v1192, %v1194
        %1196 = vrot.lane.b32.xlu0 %v1158, 8
        %v1197 = vpop.permute.xlu0 %1196
        %1198 = vrot.lane.b32.xlu0 %v1160, 8
        %v1199 = vpop.permute.xlu0 %1198
        %1200 = vrot.lane.b32.xlu0 %v1159, 8
        %v1201 = vpop.permute.xlu0 %1200
        %1202 = vrot.lane.b32.xlu0 %v1163, 8
        %v1203 = vpop.permute.xlu0 %1202
        %1204 = vrot.lane.b32.xlu0 %v1165, 8
        %v1205 = vpop.permute.xlu0 %1204
        %1206 = vrot.lane.b32.xlu0 %v1164, 8
        %v1207 = vpop.permute.xlu0 %1206
        %1208 = vrot.lane.b32.xlu0 %v1168, 8
        %v1209 = vpop.permute.xlu0 %1208
        %1210 = vrot.lane.b32.xlu0 %v1170, 8
        %v1211 = vpop.permute.xlu0 %1210
        %1212 = vrot.lane.b32.xlu0 %v1169, 8
        %v1213 = vpop.permute.xlu0 %1212
        %1214 = vrot.lane.b32.xlu0 %v1173, 8
        %v1215 = vpop.permute.xlu0 %1214
        %1216 = vrot.lane.b32.xlu0 %v1175, 8
        %v1217 = vpop.permute.xlu0 %1216
        %1218 = vrot.lane.b32.xlu0 %v1174, 8
        %v1219 = vpop.permute.xlu0 %1218
        %1220 = vrot.lane.b32.xlu0 %v1178, 8
        %v1221 = vpop.permute.xlu0 %1220
        %1222 = vrot.lane.b32.xlu0 %v1180, 8
        %v1223 = vpop.permute.xlu0 %1222
        %1224 = vrot.lane.b32.xlu0 %v1179, 8
        %v1225 = vpop.permute.xlu0 %1224
        %1226 = vrot.lane.b32.xlu0 %v1183, 8
        %v1227 = vpop.permute.xlu0 %1226
        %1228 = vrot.lane.b32.xlu0 %v1185, 8
        %v1229 = vpop.permute.xlu0 %1228
        %1230 = vrot.lane.b32.xlu0 %v1184, 8
        %v1231 = vpop.permute.xlu0 %1230
        %1232 = vrot.lane.b32.xlu0 %v1188, 8
        %v1233 = vpop.permute.xlu0 %1232
        %1234 = vrot.lane.b32.xlu0 %v1190, 8
        %v1235 = vpop.permute.xlu0 %1234
        %1236 = vrot.lane.b32.xlu0 %v1189, 8
        %v1237 = vpop.permute.xlu0 %1236
        %1238 = vrot.lane.b32.xlu0 %v1193, 8
        %v1239 = vpop.permute.xlu0 %1238
        %1240 = vrot.lane.b32.xlu0 %v1195, 8
        %v1241 = vpop.permute.xlu0 %1240
        %1242 = vrot.lane.b32.xlu0 %v1194, 8
        %v1243 = vpop.permute.xlu0 %1242
        %v1268 = vsel %vm376, %v996, %v1085
        %v1269 = vsel %vm376, %v997, %v1087
        %v1270 = vsel %vm376, %v998, %v1089
        %v1271 = vsel %vm376, %v999, %v1091
        %v1272 = vsel %vm376, %v1000, %v1093
        %v1273 = vsel %vm376, %v1001, %v1095
        %v1274 = vsel %vm376, %v1002, %v1097
        %v1275 = vsel %vm376, %v1003, %v1099
        %v1276 = vsel %vm376, %v1004, %v1101
        %v1277 = vsel %vm376, %v1005, %v1103
        %v1278 = vsel %vm376, %v1006, %v1105
        %v1279 = vsel %vm376, %v1007, %v1107
        %v1280 = vsel %vm376, %v1008, %v1109
        %v1281 = vsel %vm376, %v1009, %v1111
        %v1282 = vsel %vm376, %v1010, %v1113
        %v1283 = vsel %vm376, %v1011, %v1115
        %v1284 = vsel %vm376, %v1012, %v1117
        %v1285 = vsel %vm376, %v1013, %v1119
        %v1286 = vsel %vm376, %v1014, %v1121
        %v1287 = vsel %vm376, %v1015, %v1123
        %v1288 = vsel %vm376, %v1016, %v1125
        %v1289 = vsel %vm376, %v1017, %v1127
        %v1290 = vsel %vm376, %v1018, %v1129
        %v1291 = vsel %vm376, %v1019, %v1131
        %v1292 = vsel %vm905, %v1268, %v1197
        %v1293 = vsel %vm905, %v1269, %v1199
        %v1294 = vsel %vm905, %v1270, %v1201
        %v1295 = vsel %vm905, %v1271, %v1203
        %v1296 = vsel %vm905, %v1272, %v1205
        %v1297 = vsel %vm905, %v1273, %v1207
        %v1298 = vsel %vm905, %v1274, %v1209
        %v1299 = vsel %vm905, %v1275, %v1211
        %v1300 = vsel %vm905, %v1276, %v1213
        %v1301 = vsel %vm905, %v1277, %v1215
        %v1302 = vsel %vm905, %v1278, %v1217
        %v1303 = vsel %vm905, %v1279, %v1219
        %v1304 = vsel %vm905, %v1280, %v1221
        %v1305 = vsel %vm905, %v1281, %v1223
        %v1306 = vsel %vm905, %v1282, %v1225
        %v1307 = vsel %vm905, %v1283, %v1227
        %v1308 = vsel %vm905, %v1284, %v1229
        %v1309 = vsel %vm905, %v1285, %v1231
        %v1310 = vsel %vm905, %v1286, %v1233
        %v1311 = vsel %vm905, %v1287, %v1235
        %v1312 = vsel %vm905, %v1288, %v1237
        %v1313 = vsel %vm905, %v1289, %v1239
        %v1314 = vsel %vm905, %v1290, %v1241
        %v1315 = vsel %vm905, %v1291, %v1243
        %v1340 = vrot.slane %v1292, 1
        %v1341 = vrot.slane %v1293, 1
        %v1342 = vsel %vm655, %v1340, %v1341
        %v1343 = vrot.slane %v1294, 1
        %v1344 = vsel %vm655, %v1341, %v1343
        %v1345 = vrot.slane %v1295, 1
        %v1346 = vrot.slane %v1296, 1
        %v1347 = vsel %vm655, %v1345, %v1346
        %v1348 = vrot.slane %v1297, 1
        %v1349 = vsel %vm655, %v1346, %v1348
        %v1350 = vrot.slane %v1298, 1
        %v1351 = vrot.slane %v1299, 1
        %v1352 = vsel %vm655, %v1350, %v1351
        %v1353 = vrot.slane %v1300, 1
        %v1354 = vsel %vm655, %v1351, %v1353
        %v1355 = vrot.slane %v1301, 1
        %v1356 = vrot.slane %v1302, 1
        %v1357 = vsel %vm655, %v1355, %v1356
        %v1358 = vrot.slane %v1303, 1
        %v1359 = vsel %vm655, %v1356, %v1358
        %v1360 = vrot.slane %v1304, 1
        %v1361 = vrot.slane %v1305, 1
        %v1362 = vsel %vm655, %v1360, %v1361
        %v1363 = vrot.slane %v1306, 1
        %v1364 = vsel %vm655, %v1361, %v1363
        %v1365 = vrot.slane %v1307, 1
        %v1366 = vrot.slane %v1308, 1
        %v1367 = vsel %vm655, %v1365, %v1366
        %v1368 = vrot.slane %v1309, 1
        %v1369 = vsel %vm655, %v1366, %v1368
        %v1370 = vrot.slane %v1310, 1
        %v1371 = vrot.slane %v1311, 1
        %v1372 = vsel %vm655, %v1370, %v1371
        %v1373 = vrot.slane %v1312, 1
        %v1374 = vsel %vm655, %v1371, %v1373
        %v1375 = vrot.slane %v1313, 1
        %v1376 = vrot.slane %v1314, 1
        %v1377 = vsel %vm655, %v1375, %v1376
        %v1378 = vrot.slane %v1315, 1
        %v1379 = vsel %vm655, %v1376, %v1378
        %s1380 = scalar_lea.vmem %s3, 16
        %v1381 = vld [vmem:[%s1380] sm:$0xff]
        %v1382 = vld [vmem:[%s1380 + $0x8] sm:$0xf]
        %vm1383 = vcmask 97280
        %v1384 = vsel %vm1383, %v1342, 0
        %v1386 = vsel %vm1383, %v1344, 0
        %v1388 = vsel %vm1383, %v1347, 0
        %v1390 = vsel %vm1383, %v1349, 0
        %v1392 = vsel %vm1383, %v1352, 0
        %v1394 = vsel %vm1383, %v1354, 0
        %v1396 = vsel %vm1383, %v1357, 0
        %v1398 = vsel %vm1383, %v1359, 0
        %v1400 = vsel %vm1383, %v1362, 0
        %v1402 = vsel %vm1383, %v1364, 0
        %v1404 = vsel %vm1383, %v1367, 0
        %v1406 = vsel %vm1383, %v1369, 0
        %v1408 = vsel %vm1383, %v1372, 0
        %v1410 = vsel %vm1383, %v1374, 0
        %v1412 = vsel %vm1383, %v1377, 0
        %v1414 = vsel %vm1383, %v1379, 0
        %v1417 = vsel %vm425, %v1382, 0
        %1419 = vmatprep.subr.mxu0 0.0
        %1420 = vmatpush1.msra.mxu0 0.0
        %1421 = vmatprep.subr.mxu0 0.0
        %1422 = vmatpush1.msra.mxu0 0.0
        %1423 = vmatprep.subr.mxu0 0.0
        %1424 = vmatpush1.msra.mxu0 0.0
        %1425 = vmatprep.subr.mxu0 0.0
        %1426 = vmatpush1.msra.mxu0 0.0
        %1427 = vmatprep.subr.mxu0 0.0
        %1428 = vmatpush1.msra.mxu0 0.0
        %1429 = vmatprep.subr.mxu0 0.0
        %1430 = vmatpush1.msra.mxu0 0.0
        %1431 = vmatprep.subr.mxu0 0.0
        %1432 = vmatpush1.msra.mxu0 0.0
        %1433 = vmatprep.subr.mxu0 0.0
        %1434 = vmatpush1.msra.mxu0 0.0
        %1435 = vmatprep.subr.mxu0 0.0
        %1436 = vmatpush1.msra.mxu0 0.0
        %1437 = vmatprep.subr.mxu0 0.0
        %1438 = vmatpush1.msra.mxu0 0.0
        %1439 = vmatprep.subr.mxu0 0.0
        %1440 = vmatpush1.msra.mxu0 0.0
        %1441 = vmatprep.subr.mxu0 0.0
        %1442 = vmatpush1.msra.mxu0 0.0
        %1443 = vmatprep.subr.mxu0 0.0
        %1444 = vmatpush1.msra.mxu0 0.0
        %1445 = vmatprep.subr.mxu0 0.0
        %1446 = vmatpush1.msra.mxu0 0.0
        %1447 = vmatprep.subr.mxu0 0.0
        %1448 = vmatpush1.msra.mxu0 %v1417
        %1449 = vmatprep.subr.mxu0 0.0
        %1450 = vmatpush1.msra.mxu0 %v1381
        %1451 = vmatprep.subr.mxu0 0.0
        %1452 = vmatpush2.msra.mxu0 0.0
        %1453 = vmatprep.subr.mxu0 0.0
        %1454 = vmatpush2.msra.mxu0 0.0
        %1455 = vmatprep.subr.mxu0 0.0
        %1456 = vmatpush2.msra.mxu0 0.0
        %1457 = vmatprep.subr.mxu0 0.0
        %1458 = vmatpush2.msra.mxu0 0.0
        %1459 = vmatprep.subr.mxu0 0.0
        %1460 = vmatpush2.msra.mxu0 0.0
        %1461 = vmatprep.subr.mxu0 0.0
        %1462 = vmatpush2.msra.mxu0 0.0
        %1463 = vmatprep.subr.mxu0 0.0
        %1464 = vmatpush2.msra.mxu0 0.0
        %1465 = vmatprep.subr.mxu0 0.0
        %1466 = vmatpush2.msra.mxu0 0.0
        %1467 = vmatprep.subr.mxu0 0.0
        %1468 = vmatpush2.msra.mxu0 0.0
        %1469 = vmatprep.subr.mxu0 0.0
        %1470 = vmatpush2.msra.mxu0 0.0
        %1471 = vmatprep.subr.mxu0 0.0
        %1472 = vmatpush2.msra.mxu0 0.0
        %1473 = vmatprep.subr.mxu0 0.0
        %1474 = vmatpush2.msra.mxu0 0.0
        %1475 = vmatprep.subr.mxu0 0.0
        %1476 = vmatpush2.msra.mxu0 0.0
        %1477 = vmatprep.subr.mxu0 0.0
        %1478 = vmatpush2.msra.mxu0 0.0
        %1479 = vmatprep.subr.mxu0 0.0
        %1480 = vmatpush2.msra.mxu0 0.0
        %1481 = vmatprep.subr.mxu0 0.0
        %1482 = vmatpush2.msra.mxu0 0.0
        %1483 = vmatprep.mubr.f32.mxu0 0.0
        %1484 = vmatmul.mubr.f32.gmra.mxu0 %v1384
        %v1485 = vpop.f32.mrf.mxu0
        %v1486 = vadd.f32 0.0, %v1485
        %v1487 = vpop.f32.mrf.mxu0
        %1488 = vmatprep.mubr.f32.mxu0 0.0
        %1489 = vmatmul.mubr.f32.gmra.mxu0 %v1386
        %v1490 = vpop.f32.mrf.mxu0
        %v1491 = vadd.f32 0.0, %v1490
        %v1492 = vpop.f32.mrf.mxu0
        %1493 = vmatprep.mubr.f32.mxu0 0.0
        %1494 = vmatmul.mubr.f32.gmra.mxu0 %v1388
        %v1495 = vpop.f32.mrf.mxu0
        %v1496 = vadd.f32 0.0, %v1495
        %v1497 = vpop.f32.mrf.mxu0
        %1498 = vmatprep.mubr.f32.mxu0 0.0
        %1499 = vmatmul.mubr.f32.gmra.mxu0 %v1390
        %v1500 = vpop.f32.mrf.mxu0
        %v1501 = vadd.f32 0.0, %v1500
        %v1502 = vpop.f32.mrf.mxu0
        %1503 = vmatprep.mubr.f32.mxu0 0.0
        %1504 = vmatmul.mubr.f32.gmra.mxu0 %v1392
        %v1505 = vpop.f32.mrf.mxu0
        %v1506 = vadd.f32 0.0, %v1505
        %v1507 = vpop.f32.mrf.mxu0
        %1508 = vmatprep.mubr.f32.mxu0 0.0
        %1509 = vmatmul.mubr.f32.gmra.mxu0 %v1394
        %v1510 = vpop.f32.mrf.mxu0
        %v1511 = vadd.f32 0.0, %v1510
        %v1512 = vpop.f32.mrf.mxu0
        %1513 = vmatprep.mubr.f32.mxu0 0.0
        %1514 = vmatmul.mubr.f32.gmra.mxu0 %v1396
        %v1515 = vpop.f32.mrf.mxu0
        %v1516 = vadd.f32 0.0, %v1515
        %v1517 = vpop.f32.mrf.mxu0
        %1518 = vmatprep.mubr.f32.mxu0 0.0
        %1519 = vmatmul.mubr.f32.gmra.mxu0 %v1398
        %v1520 = vpop.f32.mrf.mxu0
        %v1521 = vadd.f32 0.0, %v1520
        %v1522 = vpop.f32.mrf.mxu0
        %1523 = vmatprep.mubr.f32.mxu0 0.0
        %1524 = vmatmul.mubr.f32.gmra.mxu0 %v1400
        %v1525 = vpop.f32.mrf.mxu0
        %v1526 = vadd.f32 0.0, %v1525
        %v1527 = vpop.f32.mrf.mxu0
        %1528 = vmatprep.mubr.f32.mxu0 0.0
        %1529 = vmatmul.mubr.f32.gmra.mxu0 %v1402
        %v1530 = vpop.f32.mrf.mxu0
        %v1531 = vadd.f32 0.0, %v1530
        %v1532 = vpop.f32.mrf.mxu0
        %1533 = vmatprep.mubr.f32.mxu0 0.0
        %1534 = vmatmul.mubr.f32.gmra.mxu0 %v1404
        %v1535 = vpop.f32.mrf.mxu0
        %v1536 = vadd.f32 0.0, %v1535
        %v1537 = vpop.f32.mrf.mxu0
        %1538 = vmatprep.mubr.f32.mxu0 0.0
        %1539 = vmatmul.mubr.f32.gmra.mxu0 %v1406
        %v1540 = vpop.f32.mrf.mxu0
        %v1541 = vadd.f32 0.0, %v1540
        %v1542 = vpop.f32.mrf.mxu0
        %1543 = vmatprep.mubr.f32.mxu0 0.0
        %1544 = vmatmul.mubr.f32.gmra.mxu0 %v1408
        %v1545 = vpop.f32.mrf.mxu0
        %v1546 = vadd.f32 0.0, %v1545
        %v1547 = vpop.f32.mrf.mxu0
        %1548 = vmatprep.mubr.f32.mxu0 0.0
        %1549 = vmatmul.mubr.f32.gmra.mxu0 %v1410
        %v1550 = vpop.f32.mrf.mxu0
        %v1551 = vadd.f32 0.0, %v1550
        %v1552 = vpop.f32.mrf.mxu0
        %1553 = vmatprep.mubr.f32.mxu0 0.0
        %1554 = vmatmul.mubr.f32.gmra.mxu0 %v1412
        %v1555 = vpop.f32.mrf.mxu0
        %v1556 = vadd.f32 0.0, %v1555
        %v1557 = vpop.f32.mrf.mxu0
        %1558 = vmatprep.mubr.f32.mxu0 0.0
        %1559 = vmatmul.mubr.f32.gmra.mxu0 %v1414
        %v1560 = vpop.f32.mrf.mxu0
        %v1561 = vadd.f32 0.0, %v1560
        %v1562 = vpop.f32.mrf.mxu0
        %1563 = vdwg.mxu0
        %v1564 = vsel %vm1383, %v956, 0
        %v1566 = vsel %vm1383, %v958, 0
        %v1568 = vsel %vm1383, %v961, 0
        %v1570 = vsel %vm1383, %v963, 0
        %v1572 = vsel %vm1383, %v966, 0
        %v1574 = vsel %vm1383, %v968, 0
        %v1576 = vsel %vm1383, %v971, 0
        %v1578 = vsel %vm1383, %v973, 0
        %v1580 = vsel %vm1383, %v976, 0
        %v1582 = vsel %vm1383, %v978, 0
        %v1584 = vsel %vm1383, %v981, 0
        %v1586 = vsel %vm1383, %v983, 0
        %v1588 = vsel %vm1383, %v986, 0
        %v1590 = vsel %vm1383, %v988, 0
        %v1592 = vsel %vm1383, %v991, 0
        %v1594 = vsel %vm1383, %v993, 0
        %v1597 = vsel %vm425, %v995, 0
        %1599 = vmatprep.subr.mxu0 0.0
        %1600 = vmatpush1.msra.mxu0 0.0
        %1601 = vmatprep.subr.mxu0 0.0
        %1602 = vmatpush1.msra.mxu0 0.0
        %1603 = vmatprep.subr.mxu0 0.0
        %1604 = vmatpush1.msra.mxu0 0.0
        %1605 = vmatprep.subr.mxu0 0.0
        %1606 = vmatpush1.msra.mxu0 0.0
        %1607 = vmatprep.subr.mxu0 0.0
        %1608 = vmatpush1.msra.mxu0 0.0
        %1609 = vmatprep.subr.mxu0 0.0
        %1610 = vmatpush1.msra.mxu0 0.0
        %1611 = vmatprep.subr.mxu0 0.0
        %1612 = vmatpush1.msra.mxu0 0.0
        %1613 = vmatprep.subr.mxu0 0.0
        %1614 = vmatpush1.msra.mxu0 0.0
        %1615 = vmatprep.subr.mxu0 0.0
        %1616 = vmatpush1.msra.mxu0 0.0
        %1617 = vmatprep.subr.mxu0 0.0
        %1618 = vmatpush1.msra.mxu0 0.0
        %1619 = vmatprep.subr.mxu0 0.0
        %1620 = vmatpush1.msra.mxu0 0.0
        %1621 = vmatprep.subr.mxu0 0.0
        %1622 = vmatpush1.msra.mxu0 0.0
        %1623 = vmatprep.subr.mxu0 0.0
        %1624 = vmatpush1.msra.mxu0 0.0
        %1625 = vmatprep.subr.mxu0 0.0
        %1626 = vmatpush1.msra.mxu0 0.0
        %1627 = vmatprep.subr.mxu0 0.0
        %1628 = vmatpush1.msra.mxu0 %v1597
        %1629 = vmatprep.subr.mxu0 0.0
        %1630 = vmatpush1.msra.mxu0 %v994
        %1631 = vmatprep.subr.mxu0 0.0
        %1632 = vmatpush2.msra.mxu0 0.0
        %1633 = vmatprep.subr.mxu0 0.0
        %1634 = vmatpush2.msra.mxu0 0.0
        %1635 = vmatprep.subr.mxu0 0.0
        %1636 = vmatpush2.msra.mxu0 0.0
        %1637 = vmatprep.subr.mxu0 0.0
        %1638 = vmatpush2.msra.mxu0 0.0
        %1639 = vmatprep.subr.mxu0 0.0
        %1640 = vmatpush2.msra.mxu0 0.0
        %1641 = vmatprep.subr.mxu0 0.0
        %1642 = vmatpush2.msra.mxu0 0.0
        %1643 = vmatprep.subr.mxu0 0.0
        %1644 = vmatpush2.msra.mxu0 0.0
        %1645 = vmatprep.subr.mxu0 0.0
        %1646 = vmatpush2.msra.mxu0 0.0
        %1647 = vmatprep.subr.mxu0 0.0
        %1648 = vmatpush2.msra.mxu0 0.0
        %1649 = vmatprep.subr.mxu0 0.0
        %1650 = vmatpush2.msra.mxu0 0.0
        %1651 = vmatprep.subr.mxu0 0.0
        %1652 = vmatpush2.msra.mxu0 0.0
        %1653 = vmatprep.subr.mxu0 0.0
        %1654 = vmatpush2.msra.mxu0 0.0
        %1655 = vmatprep.subr.mxu0 0.0
        %1656 = vmatpush2.msra.mxu0 0.0
        %1657 = vmatprep.subr.mxu0 0.0
        %1658 = vmatpush2.msra.mxu0 0.0
        %1659 = vmatprep.subr.mxu0 0.0
        %1660 = vmatpush2.msra.mxu0 0.0
        %1661 = vmatprep.subr.mxu0 0.0
        %1662 = vmatpush2.msra.mxu0 0.0
        %1663 = vmatprep.mubr.f32.mxu0 0.0
        %1664 = vmatmul.mubr.f32.gmra.mxu0 %v1564
        %v1665 = vpop.f32.mrf.mxu0
        %v1666 = vadd.f32 %v1486, %v1665
        %v1667 = vpop.f32.mrf.mxu0
        %1668 = vmatprep.mubr.f32.mxu0 0.0
        %1669 = vmatmul.mubr.f32.gmra.mxu0 %v1566
        %v1670 = vpop.f32.mrf.mxu0
        %v1671 = vadd.f32 %v1491, %v1670
        %v1672 = vpop.f32.mrf.mxu0
        %1673 = vmatprep.mubr.f32.mxu0 0.0
        %1674 = vmatmul.mubr.f32.gmra.mxu0 %v1568
        %v1675 = vpop.f32.mrf.mxu0
        %v1676 = vadd.f32 %v1496, %v1675
        %v1677 = vpop.f32.mrf.mxu0
        %1678 = vmatprep.mubr.f32.mxu0 0.0
        %1679 = vmatmul.mubr.f32.gmra.mxu0 %v1570
        %v1680 = vpop.f32.mrf.mxu0
        %v1681 = vadd.f32 %v1501, %v1680
        %v1682 = vpop.f32.mrf.mxu0
        %1683 = vmatprep.mubr.f32.mxu0 0.0
        %1684 = vmatmul.mubr.f32.gmra.mxu0 %v1572
        %v1685 = vpop.f32.mrf.mxu0
        %v1686 = vadd.f32 %v1506, %v1685
        %v1687 = vpop.f32.mrf.mxu0
        %1688 = vmatprep.mubr.f32.mxu0 0.0
        %1689 = vmatmul.mubr.f32.gmra.mxu0 %v1574
        %v1690 = vpop.f32.mrf.mxu0
        %v1691 = vadd.f32 %v1511, %v1690
        %v1692 = vpop.f32.mrf.mxu0
        %1693 = vmatprep.mubr.f32.mxu0 0.0
        %1694 = vmatmul.mubr.f32.gmra.mxu0 %v1576
        %v1695 = vpop.f32.mrf.mxu0
        %v1696 = vadd.f32 %v1516, %v1695
        %v1697 = vpop.f32.mrf.mxu0
        %1698 = vmatprep.mubr.f32.mxu0 0.0
        %1699 = vmatmul.mubr.f32.gmra.mxu0 %v1578
        %v1700 = vpop.f32.mrf.mxu0
        %v1701 = vadd.f32 %v1521, %v1700
        %v1702 = vpop.f32.mrf.mxu0
        %1703 = vmatprep.mubr.f32.mxu0 0.0
        %1704 = vmatmul.mubr.f32.gmra.mxu0 %v1580
        %v1705 = vpop.f32.mrf.mxu0
        %v1706 = vadd.f32 %v1526, %v1705
        %v1707 = vpop.f32.mrf.mxu0
        %1708 = vmatprep.mubr.f32.mxu0 0.0
        %1709 = vmatmul.mubr.f32.gmra.mxu0 %v1582
        %v1710 = vpop.f32.mrf.mxu0
        %v1711 = vadd.f32 %v1531, %v1710
        %v1712 = vpop.f32.mrf.mxu0
        %1713 = vmatprep.mubr.f32.mxu0 0.0
        %1714 = vmatmul.mubr.f32.gmra.mxu0 %v1584
        %v1715 = vpop.f32.mrf.mxu0
        %v1716 = vadd.f32 %v1536, %v1715
        %v1717 = vpop.f32.mrf.mxu0
        %1718 = vmatprep.mubr.f32.mxu0 0.0
        %1719 = vmatmul.mubr.f32.gmra.mxu0 %v1586
        %v1720 = vpop.f32.mrf.mxu0
        %v1721 = vadd.f32 %v1541, %v1720
        %v1722 = vpop.f32.mrf.mxu0
        %1723 = vmatprep.mubr.f32.mxu0 0.0
        %1724 = vmatmul.mubr.f32.gmra.mxu0 %v1588
        %v1725 = vpop.f32.mrf.mxu0
        %v1726 = vadd.f32 %v1546, %v1725
        %v1727 = vpop.f32.mrf.mxu0
        %1728 = vmatprep.mubr.f32.mxu0 0.0
        %1729 = vmatmul.mubr.f32.gmra.mxu0 %v1590
        %v1730 = vpop.f32.mrf.mxu0
        %v1731 = vadd.f32 %v1551, %v1730
        %v1732 = vpop.f32.mrf.mxu0
        %1733 = vmatprep.mubr.f32.mxu0 0.0
        %1734 = vmatmul.mubr.f32.gmra.mxu0 %v1592
        %v1735 = vpop.f32.mrf.mxu0
        %v1736 = vadd.f32 %v1556, %v1735
        %v1737 = vpop.f32.mrf.mxu0
        %1738 = vmatprep.mubr.f32.mxu0 0.0
        %1739 = vmatmul.mubr.f32.gmra.mxu0 %v1594
        %v1740 = vpop.f32.mrf.mxu0
        %v1741 = vadd.f32 %v1561, %v1740
        %v1742 = vpop.f32.mrf.mxu0
        %1743 = vdwg.mxu0
        %s1744 = scalar_lea.vmem %s342, 72
        %v1745 = vld [vmem:[%s1744] sm:$0xff]
        %v1746 = vld [vmem:[%s1744 + $0x8] sm:$0xff]
        %v1747 = vld [vmem:[%s1744 + $0x10] sm:$0xf]
        %v1748 = vld [vmem:[%s1744 + $0x18] sm:$0xff]
        %v1749 = vld [vmem:[%s1744 + $0x20] sm:$0xff]
        %v1750 = vld [vmem:[%s1744 + $0x28] sm:$0xf]
        %v1751 = vld [vmem:[%s1744 + $0x30] sm:$0xff]
        %v1752 = vld [vmem:[%s1744 + $0x38] sm:$0xff]
        %v1753 = vld [vmem:[%s1744 + $0x40] sm:$0xf]
        %v1754 = vld [vmem:[%s1744 + $0x48] sm:$0xff]
        %v1755 = vld [vmem:[%s1744 + $0x50] sm:$0xff]
        %v1756 = vld [vmem:[%s1744 + $0x58] sm:$0xf]
        %v1757 = vld [vmem:[%s1744 + $0x60] sm:$0xff]
        %v1758 = vld [vmem:[%s1744 + $0x68] sm:$0xff]
        %v1759 = vld [vmem:[%s1744 + $0x70] sm:$0xf]
        %v1760 = vld [vmem:[%s1744 + $0x78] sm:$0xff]
        %v1761 = vld [vmem:[%s1744 + $0x80] sm:$0xff]
        %v1762 = vld [vmem:[%s1744 + $0x88] sm:$0xf]
        %v1763 = vld [vmem:[%s1744 + $0x90] sm:$0xff]
        %v1764 = vld [vmem:[%s1744 + $0x98] sm:$0xff]
        %v1765 = vld [vmem:[%s1744 + $0xa0] sm:$0xf]
        %v1766 = vld [vmem:[%s1744 + $0xa8] sm:$0xff]
        %v1767 = vld [vmem:[%s1744 + $0xb0] sm:$0xff]
        %v1768 = vld [vmem:[%s1744 + $0xb8] sm:$0xf]
        %v1793 = vrot.slane %v1745, 1
        %v1794 = vrot.slane %v1746, 1
        %v1795 = vsel %vm655, %v1793, %v1794
        %v1796 = vrot.slane %v1747, 1
        %v1797 = vsel %vm655, %v1794, %v1796
        %v1798 = vrot.slane %v1748, 1
        %v1799 = vrot.slane %v1749, 1
        %v1800 = vsel %vm655, %v1798, %v1799
        %v1801 = vrot.slane %v1750, 1
        %v1802 = vsel %vm655, %v1799, %v1801
        %v1803 = vrot.slane %v1751, 1
        %v1804 = vrot.slane %v1752, 1
        %v1805 = vsel %vm655, %v1803, %v1804
        %v1806 = vrot.slane %v1753, 1
        %v1807 = vsel %vm655, %v1804, %v1806
        %v1808 = vrot.slane %v1754, 1
        %v1809 = vrot.slane %v1755, 1
        %v1810 = vsel %vm655, %v1808, %v1809
        %v1811 = vrot.slane %v1756, 1
        %v1812 = vsel %vm655, %v1809, %v1811
        %v1813 = vrot.slane %v1757, 1
        %v1814 = vrot.slane %v1758, 1
        %v1815 = vsel %vm655, %v1813, %v1814
        %v1816 = vrot.slane %v1759, 1
        %v1817 = vsel %vm655, %v1814, %v1816
        %v1818 = vrot.slane %v1760, 1
        %v1819 = vrot.slane %v1761, 1
        %v1820 = vsel %vm655, %v1818, %v1819
        %v1821 = vrot.slane %v1762, 1
        %v1822 = vsel %vm655, %v1819, %v1821
        %v1823 = vrot.slane %v1763, 1
        %v1824 = vrot.slane %v1764, 1
        %v1825 = vsel %vm655, %v1823, %v1824
        %v1826 = vrot.slane %v1765, 1
        %v1827 = vsel %vm655, %v1824, %v1826
        %v1828 = vrot.slane %v1766, 1
        %v1829 = vrot.slane %v1767, 1
        %v1830 = vsel %vm655, %v1828, %v1829
        %v1831 = vrot.slane %v1768, 1
        %v1832 = vsel %vm655, %v1829, %v1831
        %1833 = vrot.lane.b32.xlu0 %v1795, 4
        %v1834 = vpop.permute.xlu0 %1833
        %1835 = vrot.lane.b32.xlu0 %v1797, 4
        %v1836 = vpop.permute.xlu0 %1835
        %1837 = vrot.lane.b32.xlu0 %v1796, 4
        %v1838 = vpop.permute.xlu0 %1837
        %1839 = vrot.lane.b32.xlu0 %v1800, 4
        %v1840 = vpop.permute.xlu0 %1839
        %1841 = vrot.lane.b32.xlu0 %v1802, 4
        %v1842 = vpop.permute.xlu0 %1841
        %1843 = vrot.lane.b32.xlu0 %v1801, 4
        %v1844 = vpop.permute.xlu0 %1843
        %1845 = vrot.lane.b32.xlu0 %v1805, 4
        %v1846 = vpop.permute.xlu0 %1845
        %1847 = vrot.lane.b32.xlu0 %v1807, 4
        %v1848 = vpop.permute.xlu0 %1847
        %1849 = vrot.lane.b32.xlu0 %v1806, 4
        %v1850 = vpop.permute.xlu0 %1849
        %1851 = vrot.lane.b32.xlu0 %v1810, 4
        %v1852 = vpop.permute.xlu0 %1851
        %1853 = vrot.lane.b32.xlu0 %v1812, 4
        %v1854 = vpop.permute.xlu0 %1853
        %1855 = vrot.lane.b32.xlu0 %v1811, 4
        %v1856 = vpop.permute.xlu0 %1855
        %1857 = vrot.lane.b32.xlu0 %v1815, 4
        %v1858 = vpop.permute.xlu0 %1857
        %1859 = vrot.lane.b32.xlu0 %v1817, 4
        %v1860 = vpop.permute.xlu0 %1859
        %1861 = vrot.lane.b32.xlu0 %v1816, 4
        %v1862 = vpop.permute.xlu0 %1861
        %1863 = vrot.lane.b32.xlu0 %v1820, 4
        %v1864 = vpop.permute.xlu0 %1863
        %1865 = vrot.lane.b32.xlu0 %v1822, 4
        %v1866 = vpop.permute.xlu0 %1865
        %1867 = vrot.lane.b32.xlu0 %v1821, 4
        %v1868 = vpop.permute.xlu0 %1867
        %1869 = vrot.lane.b32.xlu0 %v1825, 4
        %v1870 = vpop.permute.xlu0 %1869
        %1871 = vrot.lane.b32.xlu0 %v1827, 4
        %v1872 = vpop.permute.xlu0 %1871
        %1873 = vrot.lane.b32.xlu0 %v1826, 4
        %v1874 = vpop.permute.xlu0 %1873
        %1875 = vrot.lane.b32.xlu0 %v1830, 4
        %v1876 = vpop.permute.xlu0 %1875
        %1877 = vrot.lane.b32.xlu0 %v1832, 4
        %v1878 = vpop.permute.xlu0 %1877
        %1879 = vrot.lane.b32.xlu0 %v1831, 4
        %v1880 = vpop.permute.xlu0 %1879
        %v1905 = vrot.slane %v1745, 2
        %v1906 = vrot.slane %v1746, 2
        %v1907 = vsel %vm768, %v1905, %v1906
        %v1908 = vrot.slane %v1747, 2
        %v1909 = vsel %vm768, %v1906, %v1908
        %v1910 = vrot.slane %v1748, 2
        %v1911 = vrot.slane %v1749, 2
        %v1912 = vsel %vm768, %v1910, %v1911
        %v1913 = vrot.slane %v1750, 2
        %v1914 = vsel %vm768, %v1911, %v1913
        %v1915 = vrot.slane %v1751, 2
        %v1916 = vrot.slane %v1752, 2
        %v1917 = vsel %vm768, %v1915, %v1916
        %v1918 = vrot.slane %v1753, 2
        %v1919 = vsel %vm768, %v1916, %v1918
        %v1920 = vrot.slane %v1754, 2
        %v1921 = vrot.slane %v1755, 2
        %v1922 = vsel %vm768, %v1920, %v1921
        %v1923 = vrot.slane %v1756, 2
        %v1924 = vsel %vm768, %v1921, %v1923
        %v1925 = vrot.slane %v1757, 2
        %v1926 = vrot.slane %v1758, 2
        %v1927 = vsel %vm768, %v1925, %v1926
        %v1928 = vrot.slane %v1759, 2
        %v1929 = vsel %vm768, %v1926, %v1928
        %v1930 = vrot.slane %v1760, 2
        %v1931 = vrot.slane %v1761, 2
        %v1932 = vsel %vm768, %v1930, %v1931
        %v1933 = vrot.slane %v1762, 2
        %v1934 = vsel %vm768, %v1931, %v1933
        %v1935 = vrot.slane %v1763, 2
        %v1936 = vrot.slane %v1764, 2
        %v1937 = vsel %vm768, %v1935, %v1936
        %v1938 = vrot.slane %v1765, 2
        %v1939 = vsel %vm768, %v1936, %v1938
        %v1940 = vrot.slane %v1766, 2
        %v1941 = vrot.slane %v1767, 2
        %v1942 = vsel %vm768, %v1940, %v1941
        %v1943 = vrot.slane %v1768, 2
        %v1944 = vsel %vm768, %v1941, %v1943
        %1945 = vrot.lane.b32.xlu0 %v1907, 8
        %v1946 = vpop.permute.xlu0 %1945
        %1947 = vrot.lane.b32.xlu0 %v1909, 8
        %v1948 = vpop.permute.xlu0 %1947
        %1949 = vrot.lane.b32.xlu0 %v1908, 8
        %v1950 = vpop.permute.xlu0 %1949
        %1951 = vrot.lane.b32.xlu0 %v1912, 8
        %v1952 = vpop.permute.xlu0 %1951
        %1953 = vrot.lane.b32.xlu0 %v1914, 8
        %v1954 = vpop.permute.xlu0 %1953
        %1955 = vrot.lane.b32.xlu0 %v1913, 8
        %v1956 = vpop.permute.xlu0 %1955
        %1957 = vrot.lane.b32.xlu0 %v1917, 8
        %v1958 = vpop.permute.xlu0 %1957
        %1959 = vrot.lane.b32.xlu0 %v1919, 8
        %v1960 = vpop.permute.xlu0 %1959
        %1961 = vrot.lane.b32.xlu0 %v1918, 8
        %v1962 = vpop.permute.xlu0 %1961
        %1963 = vrot.lane.b32.xlu0 %v1922, 8
        %v1964 = vpop.permute.xlu0 %1963
        %1965 = vrot.lane.b32.xlu0 %v1924, 8
        %v1966 = vpop.permute.xlu0 %1965
        %1967 = vrot.lane.b32.xlu0 %v1923, 8
        %v1968 = vpop.permute.xlu0 %1967
        %1969 = vrot.lane.b32.xlu0 %v1927, 8
        %v1970 = vpop.permute.xlu0 %1969
        %1971 = vrot.lane.b32.xlu0 %v1929, 8
        %v1972 = vpop.permute.xlu0 %1971
        %1973 = vrot.lane.b32.xlu0 %v1928, 8
        %v1974 = vpop.permute.xlu0 %1973
        %1975 = vrot.lane.b32.xlu0 %v1932, 8
        %v1976 = vpop.permute.xlu0 %1975
        %1977 = vrot.lane.b32.xlu0 %v1934, 8
        %v1978 = vpop.permute.xlu0 %1977
        %1979 = vrot.lane.b32.xlu0 %v1933, 8
        %v1980 = vpop.permute.xlu0 %1979
        %1981 = vrot.lane.b32.xlu0 %v1937, 8
        %v1982 = vpop.permute.xlu0 %1981
        %1983 = vrot.lane.b32.xlu0 %v1939, 8
        %v1984 = vpop.permute.xlu0 %1983
        %1985 = vrot.lane.b32.xlu0 %v1938, 8
        %v1986 = vpop.permute.xlu0 %1985
        %1987 = vrot.lane.b32.xlu0 %v1942, 8
        %v1988 = vpop.permute.xlu0 %1987
        %1989 = vrot.lane.b32.xlu0 %v1944, 8
        %v1990 = vpop.permute.xlu0 %1989
        %1991 = vrot.lane.b32.xlu0 %v1943, 8
        %v1992 = vpop.permute.xlu0 %1991
        %v2017 = vsel %vm376, %v1745, %v1834
        %v2018 = vsel %vm376, %v1746, %v1836
        %v2019 = vsel %vm376, %v1747, %v1838
        %v2020 = vsel %vm376, %v1748, %v1840
        %v2021 = vsel %vm376, %v1749, %v1842
        %v2022 = vsel %vm376, %v1750, %v1844
        %v2023 = vsel %vm376, %v1751, %v1846
        %v2024 = vsel %vm376, %v1752, %v1848
        %v2025 = vsel %vm376, %v1753, %v1850
        %v2026 = vsel %vm376, %v1754, %v1852
        %v2027 = vsel %vm376, %v1755, %v1854
        %v2028 = vsel %vm376, %v1756, %v1856
        %v2029 = vsel %vm376, %v1757, %v1858
        %v2030 = vsel %vm376, %v1758, %v1860
        %v2031 = vsel %vm376, %v1759, %v1862
        %v2032 = vsel %vm376, %v1760, %v1864
        %v2033 = vsel %vm376, %v1761, %v1866
        %v2034 = vsel %vm376, %v1762, %v1868
        %v2035 = vsel %vm376, %v1763, %v1870
        %v2036 = vsel %vm376, %v1764, %v1872
        %v2037 = vsel %vm376, %v1765, %v1874
        %v2038 = vsel %vm376, %v1766, %v1876
        %v2039 = vsel %vm376, %v1767, %v1878
        %v2040 = vsel %vm376, %v1768, %v1880
        %v2041 = vsel %vm905, %v2017, %v1946
        %v2042 = vsel %vm905, %v2018, %v1948
        %v2043 = vsel %vm905, %v2019, %v1950
        %v2044 = vsel %vm905, %v2020, %v1952
        %v2045 = vsel %vm905, %v2021, %v1954
        %v2046 = vsel %vm905, %v2022, %v1956
        %v2047 = vsel %vm905, %v2023, %v1958
        %v2048 = vsel %vm905, %v2024, %v1960
        %v2049 = vsel %vm905, %v2025, %v1962
        %v2050 = vsel %vm905, %v2026, %v1964
        %v2051 = vsel %vm905, %v2027, %v1966
        %v2052 = vsel %vm905, %v2028, %v1968
        %v2053 = vsel %vm905, %v2029, %v1970
        %v2054 = vsel %vm905, %v2030, %v1972
        %v2055 = vsel %vm905, %v2031, %v1974
        %v2056 = vsel %vm905, %v2032, %v1976
        %v2057 = vsel %vm905, %v2033, %v1978
        %v2058 = vsel %vm905, %v2034, %v1980
        %v2059 = vsel %vm905, %v2035, %v1982
        %v2060 = vsel %vm905, %v2036, %v1984
        %v2061 = vsel %vm905, %v2037, %v1986
        %v2062 = vsel %vm905, %v2038, %v1988
        %v2063 = vsel %vm905, %v2039, %v1990
        %v2064 = vsel %vm905, %v2040, %v1992
        %v2089 = vrot.slane %v2041, 1
        %v2090 = vrot.slane %v2042, 1
        %v2091 = vsel %vm655, %v2089, %v2090
        %v2092 = vrot.slane %v2043, 1
        %v2093 = vsel %vm655, %v2090, %v2092
        %v2094 = vrot.slane %v2044, 1
        %v2095 = vrot.slane %v2045, 1
        %v2096 = vsel %vm655, %v2094, %v2095
        %v2097 = vrot.slane %v2046, 1
        %v2098 = vsel %vm655, %v2095, %v2097
        %v2099 = vrot.slane %v2047, 1
        %v2100 = vrot.slane %v2048, 1
        %v2101 = vsel %vm655, %v2099, %v2100
        %v2102 = vrot.slane %v2049, 1
        %v2103 = vsel %vm655, %v2100, %v2102
        %v2104 = vrot.slane %v2050, 1
        %v2105 = vrot.slane %v2051, 1
        %v2106 = vsel %vm655, %v2104, %v2105
        %v2107 = vrot.slane %v2052, 1
        %v2108 = vsel %vm655, %v2105, %v2107
        %v2109 = vrot.slane %v2053, 1
        %v2110 = vrot.slane %v2054, 1
        %v2111 = vsel %vm655, %v2109, %v2110
        %v2112 = vrot.slane %v2055, 1
        %v2113 = vsel %vm655, %v2110, %v2112
        %v2114 = vrot.slane %v2056, 1
        %v2115 = vrot.slane %v2057, 1
        %v2116 = vsel %vm655, %v2114, %v2115
        %v2117 = vrot.slane %v2058, 1
        %v2118 = vsel %vm655, %v2115, %v2117
        %v2119 = vrot.slane %v2059, 1
        %v2120 = vrot.slane %v2060, 1
        %v2121 = vsel %vm655, %v2119, %v2120
        %v2122 = vrot.slane %v2061, 1
        %v2123 = vsel %vm655, %v2120, %v2122
        %v2124 = vrot.slane %v2062, 1
        %v2125 = vrot.slane %v2063, 1
        %v2126 = vsel %vm655, %v2124, %v2125
        %v2127 = vrot.slane %v2064, 1
        %v2128 = vsel %vm655, %v2125, %v2127
        %s2129 = scalar_lea.vmem %s3, 32
        %v2130 = vld [vmem:[%s2129] sm:$0xff]
        %v2131 = vld [vmem:[%s2129 + $0x8] sm:$0xf]
        %v2132 = vsel %vm1383, %v2091, 0
        %v2134 = vsel %vm1383, %v2093, 0
        %v2136 = vsel %vm1383, %v2096, 0
        %v2138 = vsel %vm1383, %v2098, 0
        %v2140 = vsel %vm1383, %v2101, 0
        %v2142 = vsel %vm1383, %v2103, 0
        %v2144 = vsel %vm1383, %v2106, 0
        %v2146 = vsel %vm1383, %v2108, 0
        %v2148 = vsel %vm1383, %v2111, 0
        %v2150 = vsel %vm1383, %v2113, 0
        %v2152 = vsel %vm1383, %v2116, 0
        %v2154 = vsel %vm1383, %v2118, 0
        %v2156 = vsel %vm1383, %v2121, 0
        %v2158 = vsel %vm1383, %v2123, 0
        %v2160 = vsel %vm1383, %v2126, 0
        %v2162 = vsel %vm1383, %v2128, 0
        %v2165 = vsel %vm425, %v2131, 0
        %2167 = vmatprep.subr.mxu0 0.0
        %2168 = vmatpush1.msra.mxu0 0.0
        %2169 = vmatprep.subr.mxu0 0.0
        %2170 = vmatpush1.msra.mxu0 0.0
        %2171 = vmatprep.subr.mxu0 0.0
        %2172 = vmatpush1.msra.mxu0 0.0
        %2173 = vmatprep.subr.mxu0 0.0
        %2174 = vmatpush1.msra.mxu0 0.0
        %2175 = vmatprep.subr.mxu0 0.0
        %2176 = vmatpush1.msra.mxu0 0.0
        %2177 = vmatprep.subr.mxu0 0.0
        %2178 = vmatpush1.msra.mxu0 0.0
        %2179 = vmatprep.subr.mxu0 0.0
        %2180 = vmatpush1.msra.mxu0 0.0
        %2181 = vmatprep.subr.mxu0 0.0
        %2182 = vmatpush1.msra.mxu0 0.0
        %2183 = vmatprep.subr.mxu0 0.0
        %2184 = vmatpush1.msra.mxu0 0.0
        %2185 = vmatprep.subr.mxu0 0.0
        %2186 = vmatpush1.msra.mxu0 0.0
        %2187 = vmatprep.subr.mxu0 0.0
        %2188 = vmatpush1.msra.mxu0 0.0
        %2189 = vmatprep.subr.mxu0 0.0
        %2190 = vmatpush1.msra.mxu0 0.0
        %2191 = vmatprep.subr.mxu0 0.0
        %2192 = vmatpush1.msra.mxu0 0.0
        %2193 = vmatprep.subr.mxu0 0.0
        %2194 = vmatpush1.msra.mxu0 0.0
        %2195 = vmatprep.subr.mxu0 0.0
        %2196 = vmatpush1.msra.mxu0 %v2165
        %2197 = vmatprep.subr.mxu0 0.0
        %2198 = vmatpush1.msra.mxu0 %v2130
        %2199 = vmatprep.subr.mxu0 0.0
        %2200 = vmatpush2.msra.mxu0 0.0
        %2201 = vmatprep.subr.mxu0 0.0
        %2202 = vmatpush2.msra.mxu0 0.0
        %2203 = vmatprep.subr.mxu0 0.0
        %2204 = vmatpush2.msra.mxu0 0.0
        %2205 = vmatprep.subr.mxu0 0.0
        %2206 = vmatpush2.msra.mxu0 0.0
        %2207 = vmatprep.subr.mxu0 0.0
        %2208 = vmatpush2.msra.mxu0 0.0
        %2209 = vmatprep.subr.mxu0 0.0
        %2210 = vmatpush2.msra.mxu0 0.0
        %2211 = vmatprep.subr.mxu0 0.0
        %2212 = vmatpush2.msra.mxu0 0.0
        %2213 = vmatprep.subr.mxu0 0.0
        %2214 = vmatpush2.msra.mxu0 0.0
        %2215 = vmatprep.subr.mxu0 0.0
        %2216 = vmatpush2.msra.mxu0 0.0
        %2217 = vmatprep.subr.mxu0 0.0
        %2218 = vmatpush2.msra.mxu0 0.0
        %2219 = vmatprep.subr.mxu0 0.0
        %2220 = vmatpush2.msra.mxu0 0.0
        %2221 = vmatprep.subr.mxu0 0.0
        %2222 = vmatpush2.msra.mxu0 0.0
        %2223 = vmatprep.subr.mxu0 0.0
        %2224 = vmatpush2.msra.mxu0 0.0
        %2225 = vmatprep.subr.mxu0 0.0
        %2226 = vmatpush2.msra.mxu0 0.0
        %2227 = vmatprep.subr.mxu0 0.0
        %2228 = vmatpush2.msra.mxu0 0.0
        %2229 = vmatprep.subr.mxu0 0.0
        %2230 = vmatpush2.msra.mxu0 0.0
        %2231 = vmatprep.mubr.f32.mxu0 0.0
        %2232 = vmatmul.mubr.f32.gmra.mxu0 %v2132
        %v2233 = vpop.f32.mrf.mxu0
        %v2234 = vadd.f32 0.0, %v2233
        %v2235 = vpop.f32.mrf.mxu0
        %2236 = vmatprep.mubr.f32.mxu0 0.0
        %2237 = vmatmul.mubr.f32.gmra.mxu0 %v2134
        %v2238 = vpop.f32.mrf.mxu0
        %v2239 = vadd.f32 0.0, %v2238
        %v2240 = vpop.f32.mrf.mxu0
        %2241 = vmatprep.mubr.f32.mxu0 0.0
        %2242 = vmatmul.mubr.f32.gmra.mxu0 %v2136
        %v2243 = vpop.f32.mrf.mxu0
        %v2244 = vadd.f32 0.0, %v2243
        %v2245 = vpop.f32.mrf.mxu0
        %2246 = vmatprep.mubr.f32.mxu0 0.0
        %2247 = vmatmul.mubr.f32.gmra.mxu0 %v2138
        %v2248 = vpop.f32.mrf.mxu0
        %v2249 = vadd.f32 0.0, %v2248
        %v2250 = vpop.f32.mrf.mxu0
        %2251 = vmatprep.mubr.f32.mxu0 0.0
        %2252 = vmatmul.mubr.f32.gmra.mxu0 %v2140
        %v2253 = vpop.f32.mrf.mxu0
        %v2254 = vadd.f32 0.0, %v2253
        %v2255 = vpop.f32.mrf.mxu0
        %2256 = vmatprep.mubr.f32.mxu0 0.0
        %2257 = vmatmul.mubr.f32.gmra.mxu0 %v2142
        %v2258 = vpop.f32.mrf.mxu0
        %v2259 = vadd.f32 0.0, %v2258
        %v2260 = vpop.f32.mrf.mxu0
        %2261 = vmatprep.mubr.f32.mxu0 0.0
        %2262 = vmatmul.mubr.f32.gmra.mxu0 %v2144
        %v2263 = vpop.f32.mrf.mxu0
        %v2264 = vadd.f32 0.0, %v2263
        %v2265 = vpop.f32.mrf.mxu0
        %2266 = vmatprep.mubr.f32.mxu0 0.0
        %2267 = vmatmul.mubr.f32.gmra.mxu0 %v2146
        %v2268 = vpop.f32.mrf.mxu0
        %v2269 = vadd.f32 0.0, %v2268
        %v2270 = vpop.f32.mrf.mxu0
        %2271 = vmatprep.mubr.f32.mxu0 0.0
        %2272 = vmatmul.mubr.f32.gmra.mxu0 %v2148
        %v2273 = vpop.f32.mrf.mxu0
        %v2274 = vadd.f32 0.0, %v2273
        %v2275 = vpop.f32.mrf.mxu0
        %2276 = vmatprep.mubr.f32.mxu0 0.0
        %2277 = vmatmul.mubr.f32.gmra.mxu0 %v2150
        %v2278 = vpop.f32.mrf.mxu0
        %v2279 = vadd.f32 0.0, %v2278
        %v2280 = vpop.f32.mrf.mxu0
        %2281 = vmatprep.mubr.f32.mxu0 0.0
        %2282 = vmatmul.mubr.f32.gmra.mxu0 %v2152
        %v2283 = vpop.f32.mrf.mxu0
        %v2284 = vadd.f32 0.0, %v2283
        %v2285 = vpop.f32.mrf.mxu0
        %2286 = vmatprep.mubr.f32.mxu0 0.0
        %2287 = vmatmul.mubr.f32.gmra.mxu0 %v2154
        %v2288 = vpop.f32.mrf.mxu0
        %v2289 = vadd.f32 0.0, %v2288
        %v2290 = vpop.f32.mrf.mxu0
        %2291 = vmatprep.mubr.f32.mxu0 0.0
        %2292 = vmatmul.mubr.f32.gmra.mxu0 %v2156
        %v2293 = vpop.f32.mrf.mxu0
        %v2294 = vadd.f32 0.0, %v2293
        %v2295 = vpop.f32.mrf.mxu0
        %2296 = vmatprep.mubr.f32.mxu0 0.0
        %2297 = vmatmul.mubr.f32.gmra.mxu0 %v2158
        %v2298 = vpop.f32.mrf.mxu0
        %v2299 = vadd.f32 0.0, %v2298
        %v2300 = vpop.f32.mrf.mxu0
        %2301 = vmatprep.mubr.f32.mxu0 0.0
        %2302 = vmatmul.mubr.f32.gmra.mxu0 %v2160
        %v2303 = vpop.f32.mrf.mxu0
        %v2304 = vadd.f32 0.0, %v2303
        %v2305 = vpop.f32.mrf.mxu0
        %2306 = vmatprep.mubr.f32.mxu0 0.0
        %2307 = vmatmul.mubr.f32.gmra.mxu0 %v2162
        %v2308 = vpop.f32.mrf.mxu0
        %v2309 = vadd.f32 0.0, %v2308
        %v2310 = vpop.f32.mrf.mxu0
        %2311 = vdwg.mxu0
        %v2312 = vadd.f32 %v1666, %v2234
        %v2313 = vadd.f32 %v1671, %v2239
        %v2314 = vadd.f32 %v1676, %v2244
        %v2315 = vadd.f32 %v1681, %v2249
        %v2316 = vadd.f32 %v1686, %v2254
        %v2317 = vadd.f32 %v1691, %v2259
        %v2318 = vadd.f32 %v1696, %v2264
        %v2319 = vadd.f32 %v1701, %v2269
        %v2320 = vadd.f32 %v1706, %v2274
        %v2321 = vadd.f32 %v1711, %v2279
        %v2322 = vadd.f32 %v1716, %v2284
        %v2323 = vadd.f32 %v1721, %v2289
        %v2324 = vadd.f32 %v1726, %v2294
        %v2325 = vadd.f32 %v1731, %v2299
        %v2326 = vadd.f32 %v1736, %v2304
        %v2327 = vadd.f32 %v1741, %v2309
        %v2328 = vld [vmem:[%s4] sm:$0x1]
        %v2329 = vlaneseq
        %v2330 = vshrl.u32 %v2329, 7
        %v2331 = vsub.s32 0, %v2330
        %v2332 = vrot.slane %v2328, %v2331
        %v2333 = vadd.f32 %v2312, %v2332
        %v2334 = vadd.f32 %v2313, %v2332
        %v2335 = vadd.f32 %v2314, %v2332
        %v2336 = vadd.f32 %v2315, %v2332
        %v2337 = vadd.f32 %v2316, %v2332
        %v2338 = vadd.f32 %v2317, %v2332
        %v2339 = vadd.f32 %v2318, %v2332
        %v2340 = vadd.f32 %v2319, %v2332
        %v2341 = vadd.f32 %v2320, %v2332
        %v2342 = vadd.f32 %v2321, %v2332
        %v2343 = vadd.f32 %v2322, %v2332
        %v2344 = vadd.f32 %v2323, %v2332
        %v2345 = vadd.f32 %v2324, %v2332
        %v2346 = vadd.f32 %v2325, %v2332
        %v2347 = vadd.f32 %v2326, %v2332
        %v2348 = vadd.f32 %v2327, %v2332
        %v2349 = vmax.f32 %v2333, 0.0
        %v2350 = vmax.f32 %v2334, 0.0
        %v2351 = vmax.f32 %v2335, 0.0
        %v2352 = vmax.f32 %v2336, 0.0
        %v2353 = vmax.f32 %v2337, 0.0
        %v2354 = vmax.f32 %v2338, 0.0
        %v2355 = vmax.f32 %v2339, 0.0
        %v2356 = vmax.f32 %v2340, 0.0
        %v2357 = vmax.f32 %v2341, 0.0
        %v2358 = vmax.f32 %v2342, 0.0
        %v2359 = vmax.f32 %v2343, 0.0
        %v2360 = vmax.f32 %v2344, 0.0
        %v2361 = vmax.f32 %v2345, 0.0
        %v2362 = vmax.f32 %v2346, 0.0
        %v2363 = vmax.f32 %v2347, 0.0
        %v2364 = vmax.f32 %v2348, 0.0
        %s2365 = scalar_lea.vmem %s5, 128
        %v2366 = vld [vmem:[%s2365] sm:$0xff]
        %v2367 = vld [vmem:[%s2365 + $0x8] sm:$0xff]
        %v2368 = vld [vmem:[%s2365 + $0x10] sm:$0xff]
        %v2369 = vld [vmem:[%s2365 + $0x18] sm:$0xff]
        %v2370 = vld [vmem:[%s2365 + $0x20] sm:$0xff]
        %v2371 = vld [vmem:[%s2365 + $0x28] sm:$0xff]
        %v2372 = vld [vmem:[%s2365 + $0x30] sm:$0xff]
        %v2373 = vld [vmem:[%s2365 + $0x38] sm:$0xff]
        %v2374 = vld [vmem:[%s2365 + $0x40] sm:$0xff]
        %v2375 = vld [vmem:[%s2365 + $0x48] sm:$0xff]
        %v2376 = vld [vmem:[%s2365 + $0x50] sm:$0xff]
        %v2377 = vld [vmem:[%s2365 + $0x58] sm:$0xff]
        %v2378 = vld [vmem:[%s2365 + $0x60] sm:$0xff]
        %v2379 = vld [vmem:[%s2365 + $0x68] sm:$0xff]
        %v2380 = vld [vmem:[%s2365 + $0x70] sm:$0xff]
        %v2381 = vld [vmem:[%s2365 + $0x78] sm:$0xff]
        %2382 = vmatprep.subr.mxu0 0.0
        %2383 = vmatpush1.msra.mxu0 %v2381
        %2384 = vmatprep.subr.mxu0 0.0
        %2385 = vmatpush1.msra.mxu0 %v2380
        %2386 = vmatprep.subr.mxu0 0.0
        %2387 = vmatpush1.msra.mxu0 %v2379
        %2388 = vmatprep.subr.mxu0 0.0
        %2389 = vmatpush1.msra.mxu0 %v2378
        %2390 = vmatprep.subr.mxu0 0.0
        %2391 = vmatpush1.msra.mxu0 %v2377
        %2392 = vmatprep.subr.mxu0 0.0
        %2393 = vmatpush1.msra.mxu0 %v2376
        %2394 = vmatprep.subr.mxu0 0.0
        %2395 = vmatpush1.msra.mxu0 %v2375
        %2396 = vmatprep.subr.mxu0 0.0
        %2397 = vmatpush1.msra.mxu0 %v2374
        %2398 = vmatprep.subr.mxu0 0.0
        %2399 = vmatpush1.msra.mxu0 %v2373
        %2400 = vmatprep.subr.mxu0 0.0
        %2401 = vmatpush1.msra.mxu0 %v2372
        %2402 = vmatprep.subr.mxu0 0.0
        %2403 = vmatpush1.msra.mxu0 %v2371
        %2404 = vmatprep.subr.mxu0 0.0
        %2405 = vmatpush1.msra.mxu0 %v2370
        %2406 = vmatprep.subr.mxu0 0.0
        %2407 = vmatpush1.msra.mxu0 %v2369
        %2408 = vmatprep.subr.mxu0 0.0
        %2409 = vmatpush1.msra.mxu0 %v2368
        %2410 = vmatprep.subr.mxu0 0.0
        %2411 = vmatpush1.msra.mxu0 %v2367
        %2412 = vmatprep.subr.mxu0 0.0
        %2413 = vmatpush1.msra.mxu0 %v2366
        %2414 = vmatprep.subr.mxu0 0.0
        %2415 = vmatpush2.msra.mxu0 0.0
        %2416 = vmatprep.subr.mxu0 0.0
        %2417 = vmatpush2.msra.mxu0 0.0
        %2418 = vmatprep.subr.mxu0 0.0
        %2419 = vmatpush2.msra.mxu0 0.0
        %2420 = vmatprep.subr.mxu0 0.0
        %2421 = vmatpush2.msra.mxu0 0.0
        %2422 = vmatprep.subr.mxu0 0.0
        %2423 = vmatpush2.msra.mxu0 0.0
        %2424 = vmatprep.subr.mxu0 0.0
        %2425 = vmatpush2.msra.mxu0 0.0
        %2426 = vmatprep.subr.mxu0 0.0
        %2427 = vmatpush2.msra.mxu0 0.0
        %2428 = vmatprep.subr.mxu0 0.0
        %2429 = vmatpush2.msra.mxu0 0.0
        %2430 = vmatprep.subr.mxu0 0.0
        %2431 = vmatpush2.msra.mxu0 0.0
        %2432 = vmatprep.subr.mxu0 0.0
        %2433 = vmatpush2.msra.mxu0 0.0
        %2434 = vmatprep.subr.mxu0 0.0
        %2435 = vmatpush2.msra.mxu0 0.0
        %2436 = vmatprep.subr.mxu0 0.0
        %2437 = vmatpush2.msra.mxu0 0.0
        %2438 = vmatprep.subr.mxu0 0.0
        %2439 = vmatpush2.msra.mxu0 0.0
        %2440 = vmatprep.subr.mxu0 0.0
        %2441 = vmatpush2.msra.mxu0 0.0
        %2442 = vmatprep.subr.mxu0 0.0
        %2443 = vmatpush2.msra.mxu0 0.0
        %2444 = vmatprep.subr.mxu0 0.0
        %2445 = vmatpush2.msra.mxu0 0.0
        %2446 = vmatprep.mubr.f32.mxu0 0.0
        %2447 = vmatmul.mubr.f32.gmra.mxu0 %v2349
        %v2448 = vpop.f32.mrf.mxu0
        %v2449 = vadd.f32 0.0, %v2448
        %v2450 = vpop.f32.mrf.mxu0
        %2451 = vmatprep.mubr.f32.mxu0 0.0
        %2452 = vmatmul.mubr.f32.gmra.mxu0 %v2350
        %v2453 = vpop.f32.mrf.mxu0
        %v2454 = vadd.f32 0.0, %v2453
        %v2455 = vpop.f32.mrf.mxu0
        %2456 = vmatprep.mubr.f32.mxu0 0.0
        %2457 = vmatmul.mubr.f32.gmra.mxu0 %v2351
        %v2458 = vpop.f32.mrf.mxu0
        %v2459 = vadd.f32 0.0, %v2458
        %v2460 = vpop.f32.mrf.mxu0
        %2461 = vmatprep.mubr.f32.mxu0 0.0
        %2462 = vmatmul.mubr.f32.gmra.mxu0 %v2352
        %v2463 = vpop.f32.mrf.mxu0
        %v2464 = vadd.f32 0.0, %v2463
        %v2465 = vpop.f32.mrf.mxu0
        %2466 = vmatprep.mubr.f32.mxu0 0.0
        %2467 = vmatmul.mubr.f32.gmra.mxu0 %v2353
        %v2468 = vpop.f32.mrf.mxu0
        %v2469 = vadd.f32 0.0, %v2468
        %v2470 = vpop.f32.mrf.mxu0
        %2471 = vmatprep.mubr.f32.mxu0 0.0
        %2472 = vmatmul.mubr.f32.gmra.mxu0 %v2354
        %v2473 = vpop.f32.mrf.mxu0
        %v2474 = vadd.f32 0.0, %v2473
        %v2475 = vpop.f32.mrf.mxu0
        %2476 = vmatprep.mubr.f32.mxu0 0.0
        %2477 = vmatmul.mubr.f32.gmra.mxu0 %v2355
        %v2478 = vpop.f32.mrf.mxu0
        %v2479 = vadd.f32 0.0, %v2478
        %v2480 = vpop.f32.mrf.mxu0
        %2481 = vmatprep.mubr.f32.mxu0 0.0
        %2482 = vmatmul.mubr.f32.gmra.mxu0 %v2356
        %v2483 = vpop.f32.mrf.mxu0
        %v2484 = vadd.f32 0.0, %v2483
        %v2485 = vpop.f32.mrf.mxu0
        %2486 = vmatprep.mubr.f32.mxu0 0.0
        %2487 = vmatmul.mubr.f32.gmra.mxu0 %v2357
        %v2488 = vpop.f32.mrf.mxu0
        %v2489 = vadd.f32 0.0, %v2488
        %v2490 = vpop.f32.mrf.mxu0
        %2491 = vmatprep.mubr.f32.mxu0 0.0
        %2492 = vmatmul.mubr.f32.gmra.mxu0 %v2358
        %v2493 = vpop.f32.mrf.mxu0
        %v2494 = vadd.f32 0.0, %v2493
        %v2495 = vpop.f32.mrf.mxu0
        %2496 = vmatprep.mubr.f32.mxu0 0.0
        %2497 = vmatmul.mubr.f32.gmra.mxu0 %v2359
        %v2498 = vpop.f32.mrf.mxu0
        %v2499 = vadd.f32 0.0, %v2498
        %v2500 = vpop.f32.mrf.mxu0
        %2501 = vmatprep.mubr.f32.mxu0 0.0
        %2502 = vmatmul.mubr.f32.gmra.mxu0 %v2360
        %v2503 = vpop.f32.mrf.mxu0
        %v2504 = vadd.f32 0.0, %v2503
        %v2505 = vpop.f32.mrf.mxu0
        %2506 = vmatprep.mubr.f32.mxu0 0.0
        %2507 = vmatmul.mubr.f32.gmra.mxu0 %v2361
        %v2508 = vpop.f32.mrf.mxu0
        %v2509 = vadd.f32 0.0, %v2508
        %v2510 = vpop.f32.mrf.mxu0
        %2511 = vmatprep.mubr.f32.mxu0 0.0
        %2512 = vmatmul.mubr.f32.gmra.mxu0 %v2362
        %v2513 = vpop.f32.mrf.mxu0
        %v2514 = vadd.f32 0.0, %v2513
        %v2515 = vpop.f32.mrf.mxu0
        %2516 = vmatprep.mubr.f32.mxu0 0.0
        %2517 = vmatmul.mubr.f32.gmra.mxu0 %v2363
        %v2518 = vpop.f32.mrf.mxu0
        %v2519 = vadd.f32 0.0, %v2518
        %v2520 = vpop.f32.mrf.mxu0
        %2521 = vmatprep.mubr.f32.mxu0 0.0
        %2522 = vmatmul.mubr.f32.gmra.mxu0 %v2364
        %v2523 = vpop.f32.mrf.mxu0
        %v2524 = vadd.f32 0.0, %v2523
        %v2525 = vpop.f32.mrf.mxu0
        %2526 = vdwg.mxu0
        %2527 = vmatprep.subr.mxu0 0.0
        %2528 = vmatpush1.msra.mxu0 %v605
        %2529 = vmatprep.subr.mxu0 0.0
        %2530 = vmatpush1.msra.mxu0 %v604
        %2531 = vmatprep.subr.mxu0 0.0
        %2532 = vmatpush1.msra.mxu0 %v603
        %2533 = vmatprep.subr.mxu0 0.0
        %2534 = vmatpush1.msra.mxu0 %v602
        %2535 = vmatprep.subr.mxu0 0.0
        %2536 = vmatpush1.msra.mxu0 %v601
        %2537 = vmatprep.subr.mxu0 0.0
        %2538 = vmatpush1.msra.mxu0 %v600
        %2539 = vmatprep.subr.mxu0 0.0
        %2540 = vmatpush1.msra.mxu0 %v599
        %2541 = vmatprep.subr.mxu0 0.0
        %2542 = vmatpush1.msra.mxu0 %v598
        %2543 = vmatprep.subr.mxu0 0.0
        %2544 = vmatpush1.msra.mxu0 %v597
        %2545 = vmatprep.subr.mxu0 0.0
        %2546 = vmatpush1.msra.mxu0 %v596
        %2547 = vmatprep.subr.mxu0 0.0
        %2548 = vmatpush1.msra.mxu0 %v595
        %2549 = vmatprep.subr.mxu0 0.0
        %2550 = vmatpush1.msra.mxu0 %v594
        %2551 = vmatprep.subr.mxu0 0.0
        %2552 = vmatpush1.msra.mxu0 %v593
        %2553 = vmatprep.subr.mxu0 0.0
        %2554 = vmatpush1.msra.mxu0 %v592
        %2555 = vmatprep.subr.mxu0 0.0
        %2556 = vmatpush1.msra.mxu0 %v591
        %2557 = vmatprep.subr.mxu0 0.0
        %2558 = vmatpush1.msra.mxu0 %v590
        %2559 = vmatprep.subr.mxu0 0.0
        %2560 = vmatpush2.msra.mxu0 0.0
        %2561 = vmatprep.subr.mxu0 0.0
        %2562 = vmatpush2.msra.mxu0 0.0
        %2563 = vmatprep.subr.mxu0 0.0
        %2564 = vmatpush2.msra.mxu0 0.0
        %2565 = vmatprep.subr.mxu0 0.0
        %2566 = vmatpush2.msra.mxu0 0.0
        %2567 = vmatprep.subr.mxu0 0.0
        %2568 = vmatpush2.msra.mxu0 0.0
        %2569 = vmatprep.subr.mxu0 0.0
        %2570 = vmatpush2.msra.mxu0 0.0
        %2571 = vmatprep.subr.mxu0 0.0
        %2572 = vmatpush2.msra.mxu0 0.0
        %2573 = vmatprep.subr.mxu0 0.0
        %2574 = vmatpush2.msra.mxu0 0.0
        %2575 = vmatprep.subr.mxu0 0.0
        %2576 = vmatpush2.msra.mxu0 0.0
        %2577 = vmatprep.subr.mxu0 0.0
        %2578 = vmatpush2.msra.mxu0 0.0
        %2579 = vmatprep.subr.mxu0 0.0
        %2580 = vmatpush2.msra.mxu0 0.0
        %2581 = vmatprep.subr.mxu0 0.0
        %2582 = vmatpush2.msra.mxu0 0.0
        %2583 = vmatprep.subr.mxu0 0.0
        %2584 = vmatpush2.msra.mxu0 0.0
        %2585 = vmatprep.subr.mxu0 0.0
        %2586 = vmatpush2.msra.mxu0 0.0
        %2587 = vmatprep.subr.mxu0 0.0
        %2588 = vmatpush2.msra.mxu0 0.0
        %2589 = vmatprep.subr.mxu0 0.0
        %2590 = vmatpush2.msra.mxu0 0.0
        %2591 = vmatprep.mubr.f32.mxu0 0.0
        %2592 = vmatmul.mubr.f32.gmra.mxu0 %v574
        %v2593 = vpop.f32.mrf.mxu0
        %v2594 = vadd.f32 %v2449, %v2593
        %v2595 = vpop.f32.mrf.mxu0
        %2596 = vmatprep.mubr.f32.mxu0 0.0
        %2597 = vmatmul.mubr.f32.gmra.mxu0 %v575
        %v2598 = vpop.f32.mrf.mxu0
        %v2599 = vadd.f32 %v2454, %v2598
        %v2600 = vpop.f32.mrf.mxu0
        %2601 = vmatprep.mubr.f32.mxu0 0.0
        %2602 = vmatmul.mubr.f32.gmra.mxu0 %v576
        %v2603 = vpop.f32.mrf.mxu0
        %v2604 = vadd.f32 %v2459, %v2603
        %v2605 = vpop.f32.mrf.mxu0
        %2606 = vmatprep.mubr.f32.mxu0 0.0
        %2607 = vmatmul.mubr.f32.gmra.mxu0 %v577
        %v2608 = vpop.f32.mrf.mxu0
        %v2609 = vadd.f32 %v2464, %v2608
        %v2610 = vpop.f32.mrf.mxu0
        %2611 = vmatprep.mubr.f32.mxu0 0.0
        %2612 = vmatmul.mubr.f32.gmra.mxu0 %v578
        %v2613 = vpop.f32.mrf.mxu0
        %v2614 = vadd.f32 %v2469, %v2613
        %v2615 = vpop.f32.mrf.mxu0
        %2616 = vmatprep.mubr.f32.mxu0 0.0
        %2617 = vmatmul.mubr.f32.gmra.mxu0 %v579
        %v2618 = vpop.f32.mrf.mxu0
        %v2619 = vadd.f32 %v2474, %v2618
        %v2620 = vpop.f32.mrf.mxu0
        %2621 = vmatprep.mubr.f32.mxu0 0.0
        %2622 = vmatmul.mubr.f32.gmra.mxu0 %v580
        %v2623 = vpop.f32.mrf.mxu0
        %v2624 = vadd.f32 %v2479, %v2623
        %v2625 = vpop.f32.mrf.mxu0
        %2626 = vmatprep.mubr.f32.mxu0 0.0
        %2627 = vmatmul.mubr.f32.gmra.mxu0 %v581
        %v2628 = vpop.f32.mrf.mxu0
        %v2629 = vadd.f32 %v2484, %v2628
        %v2630 = vpop.f32.mrf.mxu0
        %2631 = vmatprep.mubr.f32.mxu0 0.0
        %2632 = vmatmul.mubr.f32.gmra.mxu0 %v582
        %v2633 = vpop.f32.mrf.mxu0
        %v2634 = vadd.f32 %v2489, %v2633
        %v2635 = vpop.f32.mrf.mxu0
        %2636 = vmatprep.mubr.f32.mxu0 0.0
        %2637 = vmatmul.mubr.f32.gmra.mxu0 %v583
        %v2638 = vpop.f32.mrf.mxu0
        %v2639 = vadd.f32 %v2494, %v2638
        %v2640 = vpop.f32.mrf.mxu0
        %2641 = vmatprep.mubr.f32.mxu0 0.0
        %2642 = vmatmul.mubr.f32.gmra.mxu0 %v584
        %v2643 = vpop.f32.mrf.mxu0
        %v2644 = vadd.f32 %v2499, %v2643
        %v2645 = vpop.f32.mrf.mxu0
        %2646 = vmatprep.mubr.f32.mxu0 0.0
        %2647 = vmatmul.mubr.f32.gmra.mxu0 %v585
        %v2648 = vpop.f32.mrf.mxu0
        %v2649 = vadd.f32 %v2504, %v2648
        %v2650 = vpop.f32.mrf.mxu0
        %2651 = vmatprep.mubr.f32.mxu0 0.0
        %2652 = vmatmul.mubr.f32.gmra.mxu0 %v586
        %v2653 = vpop.f32.mrf.mxu0
        %v2654 = vadd.f32 %v2509, %v2653
        %v2655 = vpop.f32.mrf.mxu0
        %2656 = vmatprep.mubr.f32.mxu0 0.0
        %2657 = vmatmul.mubr.f32.gmra.mxu0 %v587
        %v2658 = vpop.f32.mrf.mxu0
        %v2659 = vadd.f32 %v2514, %v2658
        %v2660 = vpop.f32.mrf.mxu0
        %2661 = vmatprep.mubr.f32.mxu0 0.0
        %2662 = vmatmul.mubr.f32.gmra.mxu0 %v588
        %v2663 = vpop.f32.mrf.mxu0
        %v2664 = vadd.f32 %v2519, %v2663
        %v2665 = vpop.f32.mrf.mxu0
        %2666 = vmatprep.mubr.f32.mxu0 0.0
        %2667 = vmatmul.mubr.f32.gmra.mxu0 %v589
        %v2668 = vpop.f32.mrf.mxu0
        %v2669 = vadd.f32 %v2524, %v2668
        %v2670 = vpop.f32.mrf.mxu0
        %2671 = vdwg.mxu0
        %v2672 = vld [vmem:[%s342] sm:$0xff]
        %v2673 = vld [vmem:[%s342 + $0x8] sm:$0xff]
        %v2674 = vld [vmem:[%s342 + $0x10] sm:$0xf]
        %v2675 = vld [vmem:[%s342 + $0x18] sm:$0xff]
        %v2676 = vld [vmem:[%s342 + $0x20] sm:$0xff]
        %v2677 = vld [vmem:[%s342 + $0x28] sm:$0xf]
        %v2678 = vld [vmem:[%s342 + $0x30] sm:$0xff]
        %v2679 = vld [vmem:[%s342 + $0x38] sm:$0xff]
        %v2680 = vld [vmem:[%s342 + $0x40] sm:$0xf]
        %v2681 = vld [vmem:[%s342 + $0x48] sm:$0xff]
        %v2682 = vld [vmem:[%s342 + $0x50] sm:$0xff]
        %v2683 = vld [vmem:[%s342 + $0x58] sm:$0xf]
        %v2684 = vld [vmem:[%s342 + $0x60] sm:$0xff]
        %v2685 = vld [vmem:[%s342 + $0x68] sm:$0xff]
        %v2686 = vld [vmem:[%s342 + $0x70] sm:$0xf]
        %v2687 = vld [vmem:[%s342 + $0x78] sm:$0xff]
        %v2688 = vld [vmem:[%s342 + $0x80] sm:$0xff]
        %v2689 = vld [vmem:[%s342 + $0x88] sm:$0xf]
        %v2690 = vld [vmem:[%s342 + $0x90] sm:$0xff]
        %v2691 = vld [vmem:[%s342 + $0x98] sm:$0xff]
        %v2692 = vld [vmem:[%s342 + $0xa0] sm:$0xf]
        %v2693 = vld [vmem:[%s342 + $0xa8] sm:$0xff]
        %v2694 = vld [vmem:[%s342 + $0xb0] sm:$0xff]
        %v2695 = vld [vmem:[%s342 + $0xb8] sm:$0xf]
        %v2720 = vrot.slane %v2672, 2
        %v2721 = vrot.slane %v2673, 2
        %v2722 = vsel %vm768, %v2720, %v2721
        %v2723 = vrot.slane %v2674, 2
        %v2724 = vsel %vm768, %v2721, %v2723
        %v2725 = vrot.slane %v2675, 2
        %v2726 = vrot.slane %v2676, 2
        %v2727 = vsel %vm768, %v2725, %v2726
        %v2728 = vrot.slane %v2677, 2
        %v2729 = vsel %vm768, %v2726, %v2728
        %v2730 = vrot.slane %v2678, 2
        %v2731 = vrot.slane %v2679, 2
        %v2732 = vsel %vm768, %v2730, %v2731
        %v2733 = vrot.slane %v2680, 2
        %v2734 = vsel %vm768, %v2731, %v2733
        %v2735 = vrot.slane %v2681, 2
        %v2736 = vrot.slane %v2682, 2
        %v2737 = vsel %vm768, %v2735, %v2736
        %v2738 = vrot.slane %v2683, 2
        %v2739 = vsel %vm768, %v2736, %v2738
        %v2740 = vrot.slane %v2684, 2
        %v2741 = vrot.slane %v2685, 2
        %v2742 = vsel %vm768, %v2740, %v2741
        %v2743 = vrot.slane %v2686, 2
        %v2744 = vsel %vm768, %v2741, %v2743
        %v2745 = vrot.slane %v2687, 2
        %v2746 = vrot.slane %v2688, 2
        %v2747 = vsel %vm768, %v2745, %v2746
        %v2748 = vrot.slane %v2689, 2
        %v2749 = vsel %vm768, %v2746, %v2748
        %v2750 = vrot.slane %v2690, 2
        %v2751 = vrot.slane %v2691, 2
        %v2752 = vsel %vm768, %v2750, %v2751
        %v2753 = vrot.slane %v2692, 2
        %v2754 = vsel %vm768, %v2751, %v2753
        %v2755 = vrot.slane %v2693, 2
        %v2756 = vrot.slane %v2694, 2
        %v2757 = vsel %vm768, %v2755, %v2756
        %v2758 = vrot.slane %v2695, 2
        %v2759 = vsel %vm768, %v2756, %v2758
        %2760 = vrot.lane.b32.xlu0 %v2722, 4
        %v2761 = vpop.permute.xlu0 %2760
        %2762 = vrot.lane.b32.xlu0 %v2724, 4
        %v2763 = vpop.permute.xlu0 %2762
        %2764 = vrot.lane.b32.xlu0 %v2727, 4
        %v2765 = vpop.permute.xlu0 %2764
        %2766 = vrot.lane.b32.xlu0 %v2729, 4
        %v2767 = vpop.permute.xlu0 %2766
        %2768 = vrot.lane.b32.xlu0 %v2732, 4
        %v2769 = vpop.permute.xlu0 %2768
        %2770 = vrot.lane.b32.xlu0 %v2734, 4
        %v2771 = vpop.permute.xlu0 %2770
        %2772 = vrot.lane.b32.xlu0 %v2737, 4
        %v2773 = vpop.permute.xlu0 %2772
        %2774 = vrot.lane.b32.xlu0 %v2739, 4
        %v2775 = vpop.permute.xlu0 %2774
        %2776 = vrot.lane.b32.xlu0 %v2742, 4
        %v2777 = vpop.permute.xlu0 %2776
        %2778 = vrot.lane.b32.xlu0 %v2744, 4
        %v2779 = vpop.permute.xlu0 %2778
        %2780 = vrot.lane.b32.xlu0 %v2747, 4
        %v2781 = vpop.permute.xlu0 %2780
        %2782 = vrot.lane.b32.xlu0 %v2749, 4
        %v2783 = vpop.permute.xlu0 %2782
        %2784 = vrot.lane.b32.xlu0 %v2752, 4
        %v2785 = vpop.permute.xlu0 %2784
        %2786 = vrot.lane.b32.xlu0 %v2754, 4
        %v2787 = vpop.permute.xlu0 %2786
        %2788 = vrot.lane.b32.xlu0 %v2757, 4
        %v2789 = vpop.permute.xlu0 %2788
        %2790 = vrot.lane.b32.xlu0 %v2759, 4
        %v2791 = vpop.permute.xlu0 %2790
        %v2808 = vrot.slane %v2672, 4
        %v2809 = vrot.slane %v2673, 4
        %v2810 = vsel %vm425, %v2808, %v2809
        %v2811 = vrot.slane %v2674, 4
        %v2812 = vsel %vm425, %v2809, %v2811
        %v2813 = vrot.slane %v2675, 4
        %v2814 = vrot.slane %v2676, 4
        %v2815 = vsel %vm425, %v2813, %v2814
        %v2816 = vrot.slane %v2677, 4
        %v2817 = vsel %vm425, %v2814, %v2816
        %v2818 = vrot.slane %v2678, 4
        %v2819 = vrot.slane %v2679, 4
        %v2820 = vsel %vm425, %v2818, %v2819
        %v2821 = vrot.slane %v2680, 4
        %v2822 = vsel %vm425, %v2819, %v2821
        %v2823 = vrot.slane %v2681, 4
        %v2824 = vrot.slane %v2682, 4
        %v2825 = vsel %vm425, %v2823, %v2824
        %v2826 = vrot.slane %v2683, 4
        %v2827 = vsel %vm425, %v2824, %v2826
        %v2828 = vrot.slane %v2684, 4
        %v2829 = vrot.slane %v2685, 4
        %v2830 = vsel %vm425, %v2828, %v2829
        %v2831 = vrot.slane %v2686, 4
        %v2832 = vsel %vm425, %v2829, %v2831
        %v2833 = vrot.slane %v2687, 4
        %v2834 = vrot.slane %v2688, 4
        %v2835 = vsel %vm425, %v2833, %v2834
        %v2836 = vrot.slane %v2689, 4
        %v2837 = vsel %vm425, %v2834, %v2836
        %v2838 = vrot.slane %v2690, 4
        %v2839 = vrot.slane %v2691, 4
        %v2840 = vsel %vm425, %v2838, %v2839
        %v2841 = vrot.slane %v2692, 4
        %v2842 = vsel %vm425, %v2839, %v2841
        %v2843 = vrot.slane %v2693, 4
        %v2844 = vrot.slane %v2694, 4
        %v2845 = vsel %vm425, %v2843, %v2844
        %v2846 = vrot.slane %v2695, 4
        %v2847 = vsel %vm425, %v2844, %v2846
        %2848 = vrot.lane.b32.xlu0 %v2810, 8
        %v2849 = vpop.permute.xlu0 %2848
        %2850 = vrot.lane.b32.xlu0 %v2812, 8
        %v2851 = vpop.permute.xlu0 %2850
        %2852 = vrot.lane.b32.xlu0 %v2815, 8
        %v2853 = vpop.permute.xlu0 %2852
        %2854 = vrot.lane.b32.xlu0 %v2817, 8
        %v2855 = vpop.permute.xlu0 %2854
        %2856 = vrot.lane.b32.xlu0 %v2820, 8
        %v2857 = vpop.permute.xlu0 %2856
        %2858 = vrot.lane.b32.xlu0 %v2822, 8
        %v2859 = vpop.permute.xlu0 %2858
        %2860 = vrot.lane.b32.xlu0 %v2825, 8
        %v2861 = vpop.permute.xlu0 %2860
        %2862 = vrot.lane.b32.xlu0 %v2827, 8
        %v2863 = vpop.permute.xlu0 %2862
        %2864 = vrot.lane.b32.xlu0 %v2830, 8
        %v2865 = vpop.permute.xlu0 %2864
        %2866 = vrot.lane.b32.xlu0 %v2832, 8
        %v2867 = vpop.permute.xlu0 %2866
        %2868 = vrot.lane.b32.xlu0 %v2835, 8
        %v2869 = vpop.permute.xlu0 %2868
        %2870 = vrot.lane.b32.xlu0 %v2837, 8
        %v2871 = vpop.permute.xlu0 %2870
        %2872 = vrot.lane.b32.xlu0 %v2840, 8
        %v2873 = vpop.permute.xlu0 %2872
        %2874 = vrot.lane.b32.xlu0 %v2842, 8
        %v2875 = vpop.permute.xlu0 %2874
        %2876 = vrot.lane.b32.xlu0 %v2845, 8
        %v2877 = vpop.permute.xlu0 %2876
        %2878 = vrot.lane.b32.xlu0 %v2847, 8
        %v2879 = vpop.permute.xlu0 %2878
        %v2896 = vsel %vm376, %v2672, %v2761
        %v2897 = vsel %vm376, %v2673, %v2763
        %v2898 = vsel %vm376, %v2675, %v2765
        %v2899 = vsel %vm376, %v2676, %v2767
        %v2900 = vsel %vm376, %v2678, %v2769
        %v2901 = vsel %vm376, %v2679, %v2771
        %v2902 = vsel %vm376, %v2681, %v2773
        %v2903 = vsel %vm376, %v2682, %v2775
        %v2904 = vsel %vm376, %v2684, %v2777
        %v2905 = vsel %vm376, %v2685, %v2779
        %v2906 = vsel %vm376, %v2687, %v2781
        %v2907 = vsel %vm376, %v2688, %v2783
        %v2908 = vsel %vm376, %v2690, %v2785
        %v2909 = vsel %vm376, %v2691, %v2787
        %v2910 = vsel %vm376, %v2693, %v2789
        %v2911 = vsel %vm376, %v2694, %v2791
        %v2912 = vsel %vm905, %v2896, %v2849
        %v2913 = vsel %vm905, %v2897, %v2851
        %v2914 = vsel %vm905, %v2898, %v2853
        %v2915 = vsel %vm905, %v2899, %v2855
        %v2916 = vsel %vm905, %v2900, %v2857
        %v2917 = vsel %vm905, %v2901, %v2859
        %v2918 = vsel %vm905, %v2902, %v2861
        %v2919 = vsel %vm905, %v2903, %v2863
        %v2920 = vsel %vm905, %v2904, %v2865
        %v2921 = vsel %vm905, %v2905, %v2867
        %v2922 = vsel %vm905, %v2906, %v2869
        %v2923 = vsel %vm905, %v2907, %v2871
        %v2924 = vsel %vm905, %v2908, %v2873
        %v2925 = vsel %vm905, %v2909, %v2875
        %v2926 = vsel %vm905, %v2910, %v2877
        %v2927 = vsel %vm905, %v2911, %v2879
        %s2928 = scalar_lea.vmem %s3, 48
        %v2929 = vld [vmem:[%s2928] sm:$0xff]
        %v2930 = vld [vmem:[%s2928 + $0x8] sm:$0xf]
        %2931 = vrot.lane.b32.xlu0 %v1158, 4
        %v2932 = vpop.permute.xlu0 %2931
        %2933 = vrot.lane.b32.xlu0 %v1160, 4
        %v2934 = vpop.permute.xlu0 %2933
        %2935 = vrot.lane.b32.xlu0 %v1163, 4
        %v2936 = vpop.permute.xlu0 %2935
        %2937 = vrot.lane.b32.xlu0 %v1165, 4
        %v2938 = vpop.permute.xlu0 %2937
        %2939 = vrot.lane.b32.xlu0 %v1168, 4
        %v2940 = vpop.permute.xlu0 %2939
        %2941 = vrot.lane.b32.xlu0 %v1170, 4
        %v2942 = vpop.permute.xlu0 %2941
        %2943 = vrot.lane.b32.xlu0 %v1173, 4
        %v2944 = vpop.permute.xlu0 %2943
        %2945 = vrot.lane.b32.xlu0 %v1175, 4
        %v2946 = vpop.permute.xlu0 %2945
        %2947 = vrot.lane.b32.xlu0 %v1178, 4
        %v2948 = vpop.permute.xlu0 %2947
        %2949 = vrot.lane.b32.xlu0 %v1180, 4
        %v2950 = vpop.permute.xlu0 %2949
        %2951 = vrot.lane.b32.xlu0 %v1183, 4
        %v2952 = vpop.permute.xlu0 %2951
        %2953 = vrot.lane.b32.xlu0 %v1185, 4
        %v2954 = vpop.permute.xlu0 %2953
        %2955 = vrot.lane.b32.xlu0 %v1188, 4
        %v2956 = vpop.permute.xlu0 %2955
        %2957 = vrot.lane.b32.xlu0 %v1190, 4
        %v2958 = vpop.permute.xlu0 %2957
        %2959 = vrot.lane.b32.xlu0 %v1193, 4
        %v2960 = vpop.permute.xlu0 %2959
        %2961 = vrot.lane.b32.xlu0 %v1195, 4
        %v2962 = vpop.permute.xlu0 %2961
        %v2979 = vrot.slane %v996, 4
        %v2980 = vrot.slane %v997, 4
        %v2981 = vsel %vm425, %v2979, %v2980
        %v2982 = vrot.slane %v998, 4
        %v2983 = vsel %vm425, %v2980, %v2982
        %v2984 = vrot.slane %v999, 4
        %v2985 = vrot.slane %v1000, 4
        %v2986 = vsel %vm425, %v2984, %v2985
        %v2987 = vrot.slane %v1001, 4
        %v2988 = vsel %vm425, %v2985, %v2987
        %v2989 = vrot.slane %v1002, 4
        %v2990 = vrot.slane %v1003, 4
        %v2991 = vsel %vm425, %v2989, %v2990
        %v2992 = vrot.slane %v1004, 4
        %v2993 = vsel %vm425, %v2990, %v2992
        %v2994 = vrot.slane %v1005, 4
        %v2995 = vrot.slane %v1006, 4
        %v2996 = vsel %vm425, %v2994, %v2995
        %v2997 = vrot.slane %v1007, 4
        %v2998 = vsel %vm425, %v2995, %v2997
        %v2999 = vrot.slane %v1008, 4
        %v3000 = vrot.slane %v1009, 4
        %v3001 = vsel %vm425, %v2999, %v3000
        %v3002 = vrot.slane %v1010, 4
        %v3003 = vsel %vm425, %v3000, %v3002
        %v3004 = vrot.slane %v1011, 4
        %v3005 = vrot.slane %v1012, 4
        %v3006 = vsel %vm425, %v3004, %v3005
        %v3007 = vrot.slane %v1013, 4
        %v3008 = vsel %vm425, %v3005, %v3007
        %v3009 = vrot.slane %v1014, 4
        %v3010 = vrot.slane %v1015, 4
        %v3011 = vsel %vm425, %v3009, %v3010
        %v3012 = vrot.slane %v1016, 4
        %v3013 = vsel %vm425, %v3010, %v3012
        %v3014 = vrot.slane %v1017, 4
        %v3015 = vrot.slane %v1018, 4
        %v3016 = vsel %vm425, %v3014, %v3015
        %v3017 = vrot.slane %v1019, 4
        %v3018 = vsel %vm425, %v3015, %v3017
        %3019 = vrot.lane.b32.xlu0 %v2981, 8
        %v3020 = vpop.permute.xlu0 %3019
        %3021 = vrot.lane.b32.xlu0 %v2983, 8
        %v3022 = vpop.permute.xlu0 %3021
        %3023 = vrot.lane.b32.xlu0 %v2986, 8
        %v3024 = vpop.permute.xlu0 %3023
        %3025 = vrot.lane.b32.xlu0 %v2988, 8
        %v3026 = vpop.permute.xlu0 %3025
        %3027 = vrot.lane.b32.xlu0 %v2991, 8
        %v3028 = vpop.permute.xlu0 %3027
        %3029 = vrot.lane.b32.xlu0 %v2993, 8
        %v3030 = vpop.permute.xlu0 %3029
        %3031 = vrot.lane.b32.xlu0 %v2996, 8
        %v3032 = vpop.permute.xlu0 %3031
        %3033 = vrot.lane.b32.xlu0 %v2998, 8
        %v3034 = vpop.permute.xlu0 %3033
        %3035 = vrot.lane.b32.xlu0 %v3001, 8
        %v3036 = vpop.permute.xlu0 %3035
        %3037 = vrot.lane.b32.xlu0 %v3003, 8
        %v3038 = vpop.permute.xlu0 %3037
        %3039 = vrot.lane.b32.xlu0 %v3006, 8
        %v3040 = vpop.permute.xlu0 %3039
        %3041 = vrot.lane.b32.xlu0 %v3008, 8
        %v3042 = vpop.permute.xlu0 %3041
        %3043 = vrot.lane.b32.xlu0 %v3011, 8
        %v3044 = vpop.permute.xlu0 %3043
        %3045 = vrot.lane.b32.xlu0 %v3013, 8
        %v3046 = vpop.permute.xlu0 %3045
        %3047 = vrot.lane.b32.xlu0 %v3016, 8
        %v3048 = vpop.permute.xlu0 %3047
        %3049 = vrot.lane.b32.xlu0 %v3018, 8
        %v3050 = vpop.permute.xlu0 %3049
        %v3067 = vsel %vm376, %v996, %v2932
        %v3068 = vsel %vm376, %v997, %v2934
        %v3069 = vsel %vm376, %v999, %v2936
        %v3070 = vsel %vm376, %v1000, %v2938
        %v3071 = vsel %vm376, %v1002, %v2940
        %v3072 = vsel %vm376, %v1003, %v2942
        %v3073 = vsel %vm376, %v1005, %v2944
        %v3074 = vsel %vm376, %v1006, %v2946
        %v3075 = vsel %vm376, %v1008, %v2948
        %v3076 = vsel %vm376, %v1009, %v2950
        %v3077 = vsel %vm376, %v1011, %v2952
        %v3078 = vsel %vm376, %v1012, %v2954
        %v3079 = vsel %vm376, %v1014, %v2956
        %v3080 = vsel %vm376, %v1015, %v2958
        %v3081 = vsel %vm376, %v1017, %v2960
        %v3082 = vsel %vm376, %v1018, %v2962
        %v3083 = vsel %vm905, %v3067, %v3020
        %v3084 = vsel %vm905, %v3068, %v3022
        %v3085 = vsel %vm905, %v3069, %v3024
        %v3086 = vsel %vm905, %v3070, %v3026
        %v3087 = vsel %vm905, %v3071, %v3028
        %v3088 = vsel %vm905, %v3072, %v3030
        %v3089 = vsel %vm905, %v3073, %v3032
        %v3090 = vsel %vm905, %v3074, %v3034
        %v3091 = vsel %vm905, %v3075, %v3036
        %v3092 = vsel %vm905, %v3076, %v3038
        %v3093 = vsel %vm905, %v3077, %v3040
        %v3094 = vsel %vm905, %v3078, %v3042
        %v3095 = vsel %vm905, %v3079, %v3044
        %v3096 = vsel %vm905, %v3080, %v3046
        %v3097 = vsel %vm905, %v3081, %v3048
        %v3098 = vsel %vm905, %v3082, %v3050
        %s3099 = scalar_lea.vmem %s3, 64
        %v3100 = vld [vmem:[%s3099] sm:$0xff]
        %v3101 = vld [vmem:[%s3099 + $0x8] sm:$0xf]
        %v3103 = vsel %vm1383, %v3083, 0
        %v3106 = vsel %vm1383, %v3084, 0
        %v3109 = vsel %vm1383, %v3085, 0
        %v3112 = vsel %vm1383, %v3086, 0
        %v3115 = vsel %vm1383, %v3087, 0
        %v3118 = vsel %vm1383, %v3088, 0
        %v3121 = vsel %vm1383, %v3089, 0
        %v3124 = vsel %vm1383, %v3090, 0
        %v3127 = vsel %vm1383, %v3091, 0
        %v3130 = vsel %vm1383, %v3092, 0
        %v3133 = vsel %vm1383, %v3093, 0
        %v3136 = vsel %vm1383, %v3094, 0
        %v3139 = vsel %vm1383, %v3095, 0
        %v3142 = vsel %vm1383, %v3096, 0
        %v3145 = vsel %vm1383, %v3097, 0
        %v3148 = vsel %vm1383, %v3098, 0
        %v3151 = vsel %vm425, %v3101, 0
        %3153 = vmatprep.subr.mxu0 0.0
        %3154 = vmatpush1.msra.mxu0 0.0
        %3155 = vmatprep.subr.mxu0 0.0
        %3156 = vmatpush1.msra.mxu0 0.0
        %3157 = vmatprep.subr.mxu0 0.0
        %3158 = vmatpush1.msra.mxu0 0.0
        %3159 = vmatprep.subr.mxu0 0.0
        %3160 = vmatpush1.msra.mxu0 0.0
        %3161 = vmatprep.subr.mxu0 0.0
        %3162 = vmatpush1.msra.mxu0 0.0
        %3163 = vmatprep.subr.mxu0 0.0
        %3164 = vmatpush1.msra.mxu0 0.0
        %3165 = vmatprep.subr.mxu0 0.0
        %3166 = vmatpush1.msra.mxu0 0.0
        %3167 = vmatprep.subr.mxu0 0.0
        %3168 = vmatpush1.msra.mxu0 0.0
        %3169 = vmatprep.subr.mxu0 0.0
        %3170 = vmatpush1.msra.mxu0 0.0
        %3171 = vmatprep.subr.mxu0 0.0
        %3172 = vmatpush1.msra.mxu0 0.0
        %3173 = vmatprep.subr.mxu0 0.0
        %3174 = vmatpush1.msra.mxu0 0.0
        %3175 = vmatprep.subr.mxu0 0.0
        %3176 = vmatpush1.msra.mxu0 0.0
        %3177 = vmatprep.subr.mxu0 0.0
        %3178 = vmatpush1.msra.mxu0 0.0
        %3179 = vmatprep.subr.mxu0 0.0
        %3180 = vmatpush1.msra.mxu0 0.0
        %3181 = vmatprep.subr.mxu0 0.0
        %3182 = vmatpush1.msra.mxu0 %v3151
        %3183 = vmatprep.subr.mxu0 0.0
        %3184 = vmatpush1.msra.mxu0 %v3100
        %3185 = vmatprep.subr.mxu0 0.0
        %3186 = vmatpush2.msra.mxu0 0.0
        %3187 = vmatprep.subr.mxu0 0.0
        %3188 = vmatpush2.msra.mxu0 0.0
        %3189 = vmatprep.subr.mxu0 0.0
        %3190 = vmatpush2.msra.mxu0 0.0
        %3191 = vmatprep.subr.mxu0 0.0
        %3192 = vmatpush2.msra.mxu0 0.0
        %3193 = vmatprep.subr.mxu0 0.0
        %3194 = vmatpush2.msra.mxu0 0.0
        %3195 = vmatprep.subr.mxu0 0.0
        %3196 = vmatpush2.msra.mxu0 0.0
        %3197 = vmatprep.subr.mxu0 0.0
        %3198 = vmatpush2.msra.mxu0 0.0
        %3199 = vmatprep.subr.mxu0 0.0
        %3200 = vmatpush2.msra.mxu0 0.0
        %3201 = vmatprep.subr.mxu0 0.0
        %3202 = vmatpush2.msra.mxu0 0.0
        %3203 = vmatprep.subr.mxu0 0.0
        %3204 = vmatpush2.msra.mxu0 0.0
        %3205 = vmatprep.subr.mxu0 0.0
        %3206 = vmatpush2.msra.mxu0 0.0
        %3207 = vmatprep.subr.mxu0 0.0
        %3208 = vmatpush2.msra.mxu0 0.0
        %3209 = vmatprep.subr.mxu0 0.0
        %3210 = vmatpush2.msra.mxu0 0.0
        %3211 = vmatprep.subr.mxu0 0.0
        %3212 = vmatpush2.msra.mxu0 0.0
        %3213 = vmatprep.subr.mxu0 0.0
        %3214 = vmatpush2.msra.mxu0 0.0
        %3215 = vmatprep.subr.mxu0 0.0
        %3216 = vmatpush2.msra.mxu0 0.0
        %3217 = vmatprep.mubr.f32.mxu0 0.0
        %3218 = vmatmul.mubr.f32.gmra.mxu0 %v3103
        %v3219 = vpop.f32.mrf.mxu0
        %v3220 = vadd.f32 0.0, %v3219
        %v3221 = vpop.f32.mrf.mxu0
        %3222 = vmatprep.mubr.f32.mxu0 0.0
        %3223 = vmatmul.mubr.f32.gmra.mxu0 %v3106
        %v3224 = vpop.f32.mrf.mxu0
        %v3225 = vadd.f32 0.0, %v3224
        %v3226 = vpop.f32.mrf.mxu0
        %3227 = vmatprep.mubr.f32.mxu0 0.0
        %3228 = vmatmul.mubr.f32.gmra.mxu0 %v3109
        %v3229 = vpop.f32.mrf.mxu0
        %v3230 = vadd.f32 0.0, %v3229
        %v3231 = vpop.f32.mrf.mxu0
        %3232 = vmatprep.mubr.f32.mxu0 0.0
        %3233 = vmatmul.mubr.f32.gmra.mxu0 %v3112
        %v3234 = vpop.f32.mrf.mxu0
        %v3235 = vadd.f32 0.0, %v3234
        %v3236 = vpop.f32.mrf.mxu0
        %3237 = vmatprep.mubr.f32.mxu0 0.0
        %3238 = vmatmul.mubr.f32.gmra.mxu0 %v3115
        %v3239 = vpop.f32.mrf.mxu0
        %v3240 = vadd.f32 0.0, %v3239
        %v3241 = vpop.f32.mrf.mxu0
        %3242 = vmatprep.mubr.f32.mxu0 0.0
        %3243 = vmatmul.mubr.f32.gmra.mxu0 %v3118
        %v3244 = vpop.f32.mrf.mxu0
        %v3245 = vadd.f32 0.0, %v3244
        %v3246 = vpop.f32.mrf.mxu0
        %3247 = vmatprep.mubr.f32.mxu0 0.0
        %3248 = vmatmul.mubr.f32.gmra.mxu0 %v3121
        %v3249 = vpop.f32.mrf.mxu0
        %v3250 = vadd.f32 0.0, %v3249
        %v3251 = vpop.f32.mrf.mxu0
        %3252 = vmatprep.mubr.f32.mxu0 0.0
        %3253 = vmatmul.mubr.f32.gmra.mxu0 %v3124
        %v3254 = vpop.f32.mrf.mxu0
        %v3255 = vadd.f32 0.0, %v3254
        %v3256 = vpop.f32.mrf.mxu0
        %3257 = vmatprep.mubr.f32.mxu0 0.0
        %3258 = vmatmul.mubr.f32.gmra.mxu0 %v3127
        %v3259 = vpop.f32.mrf.mxu0
        %v3260 = vadd.f32 0.0, %v3259
        %v3261 = vpop.f32.mrf.mxu0
        %3262 = vmatprep.mubr.f32.mxu0 0.0
        %3263 = vmatmul.mubr.f32.gmra.mxu0 %v3130
        %v3264 = vpop.f32.mrf.mxu0
        %v3265 = vadd.f32 0.0, %v3264
        %v3266 = vpop.f32.mrf.mxu0
        %3267 = vmatprep.mubr.f32.mxu0 0.0
        %3268 = vmatmul.mubr.f32.gmra.mxu0 %v3133
        %v3269 = vpop.f32.mrf.mxu0
        %v3270 = vadd.f32 0.0, %v3269
        %v3271 = vpop.f32.mrf.mxu0
        %3272 = vmatprep.mubr.f32.mxu0 0.0
        %3273 = vmatmul.mubr.f32.gmra.mxu0 %v3136
        %v3274 = vpop.f32.mrf.mxu0
        %v3275 = vadd.f32 0.0, %v3274
        %v3276 = vpop.f32.mrf.mxu0
        %3277 = vmatprep.mubr.f32.mxu0 0.0
        %3278 = vmatmul.mubr.f32.gmra.mxu0 %v3139
        %v3279 = vpop.f32.mrf.mxu0
        %v3280 = vadd.f32 0.0, %v3279
        %v3281 = vpop.f32.mrf.mxu0
        %3282 = vmatprep.mubr.f32.mxu0 0.0
        %3283 = vmatmul.mubr.f32.gmra.mxu0 %v3142
        %v3284 = vpop.f32.mrf.mxu0
        %v3285 = vadd.f32 0.0, %v3284
        %v3286 = vpop.f32.mrf.mxu0
        %3287 = vmatprep.mubr.f32.mxu0 0.0
        %3288 = vmatmul.mubr.f32.gmra.mxu0 %v3145
        %v3289 = vpop.f32.mrf.mxu0
        %v3290 = vadd.f32 0.0, %v3289
        %v3291 = vpop.f32.mrf.mxu0
        %3292 = vmatprep.mubr.f32.mxu0 0.0
        %3293 = vmatmul.mubr.f32.gmra.mxu0 %v3148
        %v3294 = vpop.f32.mrf.mxu0
        %v3295 = vadd.f32 0.0, %v3294
        %v3296 = vpop.f32.mrf.mxu0
        %3297 = vdwg.mxu0
        %v3299 = vsel %vm1383, %v2912, 0
        %v3302 = vsel %vm1383, %v2913, 0
        %v3305 = vsel %vm1383, %v2914, 0
        %v3308 = vsel %vm1383, %v2915, 0
        %v3311 = vsel %vm1383, %v2916, 0
        %v3314 = vsel %vm1383, %v2917, 0
        %v3317 = vsel %vm1383, %v2918, 0
        %v3320 = vsel %vm1383, %v2919, 0
        %v3323 = vsel %vm1383, %v2920, 0
        %v3326 = vsel %vm1383, %v2921, 0
        %v3329 = vsel %vm1383, %v2922, 0
        %v3332 = vsel %vm1383, %v2923, 0
        %v3335 = vsel %vm1383, %v2924, 0
        %v3338 = vsel %vm1383, %v2925, 0
        %v3341 = vsel %vm1383, %v2926, 0
        %v3344 = vsel %vm1383, %v2927, 0
        %v3347 = vsel %vm425, %v2930, 0
        %3349 = vmatprep.subr.mxu0 0.0
        %3350 = vmatpush1.msra.mxu0 0.0
        %3351 = vmatprep.subr.mxu0 0.0
        %3352 = vmatpush1.msra.mxu0 0.0
        %3353 = vmatprep.subr.mxu0 0.0
        %3354 = vmatpush1.msra.mxu0 0.0
        %3355 = vmatprep.subr.mxu0 0.0
        %3356 = vmatpush1.msra.mxu0 0.0
        %3357 = vmatprep.subr.mxu0 0.0
        %3358 = vmatpush1.msra.mxu0 0.0
        %3359 = vmatprep.subr.mxu0 0.0
        %3360 = vmatpush1.msra.mxu0 0.0
        %3361 = vmatprep.subr.mxu0 0.0
        %3362 = vmatpush1.msra.mxu0 0.0
        %3363 = vmatprep.subr.mxu0 0.0
        %3364 = vmatpush1.msra.mxu0 0.0
        %3365 = vmatprep.subr.mxu0 0.0
        %3366 = vmatpush1.msra.mxu0 0.0
        %3367 = vmatprep.subr.mxu0 0.0
        %3368 = vmatpush1.msra.mxu0 0.0
        %3369 = vmatprep.subr.mxu0 0.0
        %3370 = vmatpush1.msra.mxu0 0.0
        %3371 = vmatprep.subr.mxu0 0.0
        %3372 = vmatpush1.msra.mxu0 0.0
        %3373 = vmatprep.subr.mxu0 0.0
        %3374 = vmatpush1.msra.mxu0 0.0
        %3375 = vmatprep.subr.mxu0 0.0
        %3376 = vmatpush1.msra.mxu0 0.0
        %3377 = vmatprep.subr.mxu0 0.0
        %3378 = vmatpush1.msra.mxu0 %v3347
        %3379 = vmatprep.subr.mxu0 0.0
        %3380 = vmatpush1.msra.mxu0 %v2929
        %3381 = vmatprep.subr.mxu0 0.0
        %3382 = vmatpush2.msra.mxu0 0.0
        %3383 = vmatprep.subr.mxu0 0.0
        %3384 = vmatpush2.msra.mxu0 0.0
        %3385 = vmatprep.subr.mxu0 0.0
        %3386 = vmatpush2.msra.mxu0 0.0
        %3387 = vmatprep.subr.mxu0 0.0
        %3388 = vmatpush2.msra.mxu0 0.0
        %3389 = vmatprep.subr.mxu0 0.0
        %3390 = vmatpush2.msra.mxu0 0.0
        %3391 = vmatprep.subr.mxu0 0.0
        %3392 = vmatpush2.msra.mxu0 0.0
        %3393 = vmatprep.subr.mxu0 0.0
        %3394 = vmatpush2.msra.mxu0 0.0
        %3395 = vmatprep.subr.mxu0 0.0
        %3396 = vmatpush2.msra.mxu0 0.0
        %3397 = vmatprep.subr.mxu0 0.0
        %3398 = vmatpush2.msra.mxu0 0.0
        %3399 = vmatprep.subr.mxu0 0.0
        %3400 = vmatpush2.msra.mxu0 0.0
        %3401 = vmatprep.subr.mxu0 0.0
        %3402 = vmatpush2.msra.mxu0 0.0
        %3403 = vmatprep.subr.mxu0 0.0
        %3404 = vmatpush2.msra.mxu0 0.0
        %3405 = vmatprep.subr.mxu0 0.0
        %3406 = vmatpush2.msra.mxu0 0.0
        %3407 = vmatprep.subr.mxu0 0.0
        %3408 = vmatpush2.msra.mxu0 0.0
        %3409 = vmatprep.subr.mxu0 0.0
        %3410 = vmatpush2.msra.mxu0 0.0
        %3411 = vmatprep.subr.mxu0 0.0
        %3412 = vmatpush2.msra.mxu0 0.0
        %3413 = vmatprep.mubr.f32.mxu0 0.0
        %3414 = vmatmul.mubr.f32.gmra.mxu0 %v3299
        %v3415 = vpop.f32.mrf.mxu0
        %v3416 = vadd.f32 %v3220, %v3415
        %v3417 = vpop.f32.mrf.mxu0
        %3418 = vmatprep.mubr.f32.mxu0 0.0
        %3419 = vmatmul.mubr.f32.gmra.mxu0 %v3302
        %v3420 = vpop.f32.mrf.mxu0
        %v3421 = vadd.f32 %v3225, %v3420
        %v3422 = vpop.f32.mrf.mxu0
        %3423 = vmatprep.mubr.f32.mxu0 0.0
        %3424 = vmatmul.mubr.f32.gmra.mxu0 %v3305
        %v3425 = vpop.f32.mrf.mxu0
        %v3426 = vadd.f32 %v3230, %v3425
        %v3427 = vpop.f32.mrf.mxu0
        %3428 = vmatprep.mubr.f32.mxu0 0.0
        %3429 = vmatmul.mubr.f32.gmra.mxu0 %v3308
        %v3430 = vpop.f32.mrf.mxu0
        %v3431 = vadd.f32 %v3235, %v3430
        %v3432 = vpop.f32.mrf.mxu0
        %3433 = vmatprep.mubr.f32.mxu0 0.0
        %3434 = vmatmul.mubr.f32.gmra.mxu0 %v3311
        %v3435 = vpop.f32.mrf.mxu0
        %v3436 = vadd.f32 %v3240, %v3435
        %v3437 = vpop.f32.mrf.mxu0
        %3438 = vmatprep.mubr.f32.mxu0 0.0
        %3439 = vmatmul.mubr.f32.gmra.mxu0 %v3314
        %v3440 = vpop.f32.mrf.mxu0
        %v3441 = vadd.f32 %v3245, %v3440
        %v3442 = vpop.f32.mrf.mxu0
        %3443 = vmatprep.mubr.f32.mxu0 0.0
        %3444 = vmatmul.mubr.f32.gmra.mxu0 %v3317
        %v3445 = vpop.f32.mrf.mxu0
        %v3446 = vadd.f32 %v3250, %v3445
        %v3447 = vpop.f32.mrf.mxu0
        %3448 = vmatprep.mubr.f32.mxu0 0.0
        %3449 = vmatmul.mubr.f32.gmra.mxu0 %v3320
        %v3450 = vpop.f32.mrf.mxu0
        %v3451 = vadd.f32 %v3255, %v3450
        %v3452 = vpop.f32.mrf.mxu0
        %3453 = vmatprep.mubr.f32.mxu0 0.0
        %3454 = vmatmul.mubr.f32.gmra.mxu0 %v3323
        %v3455 = vpop.f32.mrf.mxu0
        %v3456 = vadd.f32 %v3260, %v3455
        %v3457 = vpop.f32.mrf.mxu0
        %3458 = vmatprep.mubr.f32.mxu0 0.0
        %3459 = vmatmul.mubr.f32.gmra.mxu0 %v3326
        %v3460 = vpop.f32.mrf.mxu0
        %v3461 = vadd.f32 %v3265, %v3460
        %v3462 = vpop.f32.mrf.mxu0
        %3463 = vmatprep.mubr.f32.mxu0 0.0
        %3464 = vmatmul.mubr.f32.gmra.mxu0 %v3329
        %v3465 = vpop.f32.mrf.mxu0
        %v3466 = vadd.f32 %v3270, %v3465
        %v3467 = vpop.f32.mrf.mxu0
        %3468 = vmatprep.mubr.f32.mxu0 0.0
        %3469 = vmatmul.mubr.f32.gmra.mxu0 %v3332
        %v3470 = vpop.f32.mrf.mxu0
        %v3471 = vadd.f32 %v3275, %v3470
        %v3472 = vpop.f32.mrf.mxu0
        %3473 = vmatprep.mubr.f32.mxu0 0.0
        %3474 = vmatmul.mubr.f32.gmra.mxu0 %v3335
        %v3475 = vpop.f32.mrf.mxu0
        %v3476 = vadd.f32 %v3280, %v3475
        %v3477 = vpop.f32.mrf.mxu0
        %3478 = vmatprep.mubr.f32.mxu0 0.0
        %3479 = vmatmul.mubr.f32.gmra.mxu0 %v3338
        %v3480 = vpop.f32.mrf.mxu0
        %v3481 = vadd.f32 %v3285, %v3480
        %v3482 = vpop.f32.mrf.mxu0
        %3483 = vmatprep.mubr.f32.mxu0 0.0
        %3484 = vmatmul.mubr.f32.gmra.mxu0 %v3341
        %v3485 = vpop.f32.mrf.mxu0
        %v3486 = vadd.f32 %v3290, %v3485
        %v3487 = vpop.f32.mrf.mxu0
        %3488 = vmatprep.mubr.f32.mxu0 0.0
        %3489 = vmatmul.mubr.f32.gmra.mxu0 %v3344
        %v3490 = vpop.f32.mrf.mxu0
        %v3491 = vadd.f32 %v3295, %v3490
        %v3492 = vpop.f32.mrf.mxu0
        %3493 = vdwg.mxu0
        %s3494 = scalar_lea.vmem %s342, 96
        %v3495 = vld [vmem:[%s3494] sm:$0xff]
        %v3496 = vld [vmem:[%s3494 + $0x8] sm:$0xff]
        %v3497 = vld [vmem:[%s3494 + $0x10] sm:$0xf]
        %v3498 = vld [vmem:[%s3494 + $0x18] sm:$0xff]
        %v3499 = vld [vmem:[%s3494 + $0x20] sm:$0xff]
        %v3500 = vld [vmem:[%s3494 + $0x28] sm:$0xf]
        %v3501 = vld [vmem:[%s3494 + $0x30] sm:$0xff]
        %v3502 = vld [vmem:[%s3494 + $0x38] sm:$0xff]
        %v3503 = vld [vmem:[%s3494 + $0x40] sm:$0xf]
        %v3504 = vld [vmem:[%s3494 + $0x48] sm:$0xff]
        %v3505 = vld [vmem:[%s3494 + $0x50] sm:$0xff]
        %v3506 = vld [vmem:[%s3494 + $0x58] sm:$0xf]
        %v3507 = vld [vmem:[%s3494 + $0x60] sm:$0xff]
        %v3508 = vld [vmem:[%s3494 + $0x68] sm:$0xff]
        %v3509 = vld [vmem:[%s3494 + $0x70] sm:$0xf]
        %v3510 = vld [vmem:[%s3494 + $0x78] sm:$0xff]
        %v3511 = vld [vmem:[%s3494 + $0x80] sm:$0xff]
        %v3512 = vld [vmem:[%s3494 + $0x88] sm:$0xf]
        %v3513 = vld [vmem:[%s3494 + $0x90] sm:$0xff]
        %v3514 = vld [vmem:[%s3494 + $0x98] sm:$0xff]
        %v3515 = vld [vmem:[%s3494 + $0xa0] sm:$0xf]
        %v3516 = vld [vmem:[%s3494 + $0xa8] sm:$0xff]
        %v3517 = vld [vmem:[%s3494 + $0xb0] sm:$0xff]
        %v3518 = vld [vmem:[%s3494 + $0xb8] sm:$0xf]
        %v3543 = vrot.slane %v3495, 2
        %v3544 = vrot.slane %v3496, 2
        %v3545 = vsel %vm768, %v3543, %v3544
        %v3546 = vrot.slane %v3497, 2
        %v3547 = vsel %vm768, %v3544, %v3546
        %v3548 = vrot.slane %v3498, 2
        %v3549 = vrot.slane %v3499, 2
        %v3550 = vsel %vm768, %v3548, %v3549
        %v3551 = vrot.slane %v3500, 2
        %v3552 = vsel %vm768, %v3549, %v3551
        %v3553 = vrot.slane %v3501, 2
        %v3554 = vrot.slane %v3502, 2
        %v3555 = vsel %vm768, %v3553, %v3554
        %v3556 = vrot.slane %v3503, 2
        %v3557 = vsel %vm768, %v3554, %v3556
        %v3558 = vrot.slane %v3504, 2
        %v3559 = vrot.slane %v3505, 2
        %v3560 = vsel %vm768, %v3558, %v3559
        %v3561 = vrot.slane %v3506, 2
        %v3562 = vsel %vm768, %v3559, %v3561
        %v3563 = vrot.slane %v3507, 2
        %v3564 = vrot.slane %v3508, 2
        %v3565 = vsel %vm768, %v3563, %v3564
        %v3566 = vrot.slane %v3509, 2
        %v3567 = vsel %vm768, %v3564, %v3566
        %v3568 = vrot.slane %v3510, 2
        %v3569 = vrot.slane %v3511, 2
        %v3570 = vsel %vm768, %v3568, %v3569
        %v3571 = vrot.slane %v3512, 2
        %v3572 = vsel %vm768, %v3569, %v3571
        %v3573 = vrot.slane %v3513, 2
        %v3574 = vrot.slane %v3514, 2
        %v3575 = vsel %vm768, %v3573, %v3574
        %v3576 = vrot.slane %v3515, 2
        %v3577 = vsel %vm768, %v3574, %v3576
        %v3578 = vrot.slane %v3516, 2
        %v3579 = vrot.slane %v3517, 2
        %v3580 = vsel %vm768, %v3578, %v3579
        %v3581 = vrot.slane %v3518, 2
        %v3582 = vsel %vm768, %v3579, %v3581
        %3583 = vrot.lane.b32.xlu0 %v3545, 4
        %v3584 = vpop.permute.xlu0 %3583
        %3585 = vrot.lane.b32.xlu0 %v3547, 4
        %v3586 = vpop.permute.xlu0 %3585
        %3587 = vrot.lane.b32.xlu0 %v3550, 4
        %v3588 = vpop.permute.xlu0 %3587
        %3589 = vrot.lane.b32.xlu0 %v3552, 4
        %v3590 = vpop.permute.xlu0 %3589
        %3591 = vrot.lane.b32.xlu0 %v3555, 4
        %v3592 = vpop.permute.xlu0 %3591
        %3593 = vrot.lane.b32.xlu0 %v3557, 4
        %v3594 = vpop.permute.xlu0 %3593
        %3595 = vrot.lane.b32.xlu0 %v3560, 4
        %v3596 = vpop.permute.xlu0 %3595
        %3597 = vrot.lane.b32.xlu0 %v3562, 4
        %v3598 = vpop.permute.xlu0 %3597
        %3599 = vrot.lane.b32.xlu0 %v3565, 4
        %v3600 = vpop.permute.xlu0 %3599
        %3601 = vrot.lane.b32.xlu0 %v3567, 4
        %v3602 = vpop.permute.xlu0 %3601
        %3603 = vrot.lane.b32.xlu0 %v3570, 4
        %v3604 = vpop.permute.xlu0 %3603
        %3605 = vrot.lane.b32.xlu0 %v3572, 4
        %v3606 = vpop.permute.xlu0 %3605
        %3607 = vrot.lane.b32.xlu0 %v3575, 4
        %v3608 = vpop.permute.xlu0 %3607
        %3609 = vrot.lane.b32.xlu0 %v3577, 4
        %v3610 = vpop.permute.xlu0 %3609
        %3611 = vrot.lane.b32.xlu0 %v3580, 4
        %v3612 = vpop.permute.xlu0 %3611
        %3613 = vrot.lane.b32.xlu0 %v3582, 4
        %v3614 = vpop.permute.xlu0 %3613
        %v3631 = vrot.slane %v3495, 4
        %v3632 = vrot.slane %v3496, 4
        %v3633 = vsel %vm425, %v3631, %v3632
        %v3634 = vrot.slane %v3497, 4
        %v3635 = vsel %vm425, %v3632, %v3634
        %v3636 = vrot.slane %v3498, 4
        %v3637 = vrot.slane %v3499, 4
        %v3638 = vsel %vm425, %v3636, %v3637
        %v3639 = vrot.slane %v3500, 4
        %v3640 = vsel %vm425, %v3637, %v3639
        %v3641 = vrot.slane %v3501, 4
        %v3642 = vrot.slane %v3502, 4
        %v3643 = vsel %vm425, %v3641, %v3642
        %v3644 = vrot.slane %v3503, 4
        %v3645 = vsel %vm425, %v3642, %v3644
        %v3646 = vrot.slane %v3504, 4
        %v3647 = vrot.slane %v3505, 4
        %v3648 = vsel %vm425, %v3646, %v3647
        %v3649 = vrot.slane %v3506, 4
        %v3650 = vsel %vm425, %v3647, %v3649
        %v3651 = vrot.slane %v3507, 4
        %v3652 = vrot.slane %v3508, 4
        %v3653 = vsel %vm425, %v3651, %v3652
        %v3654 = vrot.slane %v3509, 4
        %v3655 = vsel %vm425, %v3652, %v3654
        %v3656 = vrot.slane %v3510, 4
        %v3657 = vrot.slane %v3511, 4
        %v3658 = vsel %vm425, %v3656, %v3657
        %v3659 = vrot.slane %v3512, 4
        %v3660 = vsel %vm425, %v3657, %v3659
        %v3661 = vrot.slane %v3513, 4
        %v3662 = vrot.slane %v3514, 4
        %v3663 = vsel %vm425, %v3661, %v3662
        %v3664 = vrot.slane %v3515, 4
        %v3665 = vsel %vm425, %v3662, %v3664
        %v3666 = vrot.slane %v3516, 4
        %v3667 = vrot.slane %v3517, 4
        %v3668 = vsel %vm425, %v3666, %v3667
        %v3669 = vrot.slane %v3518, 4
        %v3670 = vsel %vm425, %v3667, %v3669
        %3671 = vrot.lane.b32.xlu0 %v3633, 8
        %v3672 = vpop.permute.xlu0 %3671
        %3673 = vrot.lane.b32.xlu0 %v3635, 8
        %v3674 = vpop.permute.xlu0 %3673
        %3675 = vrot.lane.b32.xlu0 %v3638, 8
        %v3676 = vpop.permute.xlu0 %3675
        %3677 = vrot.lane.b32.xlu0 %v3640, 8
        %v3678 = vpop.permute.xlu0 %3677
        %3679 = vrot.lane.b32.xlu0 %v3643, 8
        %v3680 = vpop.permute.xlu0 %3679
        %3681 = vrot.lane.b32.xlu0 %v3645, 8
        %v3682 = vpop.permute.xlu0 %3681
        %3683 = vrot.lane.b32.xlu0 %v3648, 8
        %v3684 = vpop.permute.xlu0 %3683
        %3685 = vrot.lane.b32.xlu0 %v3650, 8
        %v3686 = vpop.permute.xlu0 %3685
        %3687 = vrot.lane.b32.xlu0 %v3653, 8
        %v3688 = vpop.permute.xlu0 %3687
        %3689 = vrot.lane.b32.xlu0 %v3655, 8
        %v3690 = vpop.permute.xlu0 %3689
        %3691 = vrot.lane.b32.xlu0 %v3658, 8
        %v3692 = vpop.permute.xlu0 %3691
        %3693 = vrot.lane.b32.xlu0 %v3660, 8
        %v3694 = vpop.permute.xlu0 %3693
        %3695 = vrot.lane.b32.xlu0 %v3663, 8
        %v3696 = vpop.permute.xlu0 %3695
        %3697 = vrot.lane.b32.xlu0 %v3665, 8
        %v3698 = vpop.permute.xlu0 %3697
        %3699 = vrot.lane.b32.xlu0 %v3668, 8
        %v3700 = vpop.permute.xlu0 %3699
        %3701 = vrot.lane.b32.xlu0 %v3670, 8
        %v3702 = vpop.permute.xlu0 %3701
        %v3719 = vsel %vm376, %v3495, %v3584
        %v3720 = vsel %vm376, %v3496, %v3586
        %v3721 = vsel %vm376, %v3498, %v3588
        %v3722 = vsel %vm376, %v3499, %v3590
        %v3723 = vsel %vm376, %v3501, %v3592
        %v3724 = vsel %vm376, %v3502, %v3594
        %v3725 = vsel %vm376, %v3504, %v3596
        %v3726 = vsel %vm376, %v3505, %v3598
        %v3727 = vsel %vm376, %v3507, %v3600
        %v3728 = vsel %vm376, %v3508, %v3602
        %v3729 = vsel %vm376, %v3510, %v3604
        %v3730 = vsel %vm376, %v3511, %v3606
        %v3731 = vsel %vm376, %v3513, %v3608
        %v3732 = vsel %vm376, %v3514, %v3610
        %v3733 = vsel %vm376, %v3516, %v3612
        %v3734 = vsel %vm376, %v3517, %v3614
        %v3735 = vsel %vm905, %v3719, %v3672
        %v3736 = vsel %vm905, %v3720, %v3674
        %v3737 = vsel %vm905, %v3721, %v3676
        %v3738 = vsel %vm905, %v3722, %v3678
        %v3739 = vsel %vm905, %v3723, %v3680
        %v3740 = vsel %vm905, %v3724, %v3682
        %v3741 = vsel %vm905, %v3725, %v3684
        %v3742 = vsel %vm905, %v3726, %v3686
        %v3743 = vsel %vm905, %v3727, %v3688
        %v3744 = vsel %vm905, %v3728, %v3690
        %v3745 = vsel %vm905, %v3729, %v3692
        %v3746 = vsel %vm905, %v3730, %v3694
        %v3747 = vsel %vm905, %v3731, %v3696
        %v3748 = vsel %vm905, %v3732, %v3698
        %v3749 = vsel %vm905, %v3733, %v3700
        %v3750 = vsel %vm905, %v3734, %v3702
        %s3751 = scalar_lea.vmem %s3, 80
        %v3752 = vld [vmem:[%s3751] sm:$0xff]
        %v3753 = vld [vmem:[%s3751 + $0x8] sm:$0xf]
        %v3755 = vsel %vm1383, %v3735, 0
        %v3758 = vsel %vm1383, %v3736, 0
        %v3761 = vsel %vm1383, %v3737, 0
        %v3764 = vsel %vm1383, %v3738, 0
        %v3767 = vsel %vm1383, %v3739, 0
        %v3770 = vsel %vm1383, %v3740, 0
        %v3773 = vsel %vm1383, %v3741, 0
        %v3776 = vsel %vm1383, %v3742, 0
        %v3779 = vsel %vm1383, %v3743, 0
        %v3782 = vsel %vm1383, %v3744, 0
        %v3785 = vsel %vm1383, %v3745, 0
        %v3788 = vsel %vm1383, %v3746, 0
        %v3791 = vsel %vm1383, %v3747, 0
        %v3794 = vsel %vm1383, %v3748, 0
        %v3797 = vsel %vm1383, %v3749, 0
        %v3800 = vsel %vm1383, %v3750, 0
        %v3803 = vsel %vm425, %v3753, 0
        %3805 = vmatprep.subr.mxu0 0.0
        %3806 = vmatpush1.msra.mxu0 0.0
        %3807 = vmatprep.subr.mxu0 0.0
        %3808 = vmatpush1.msra.mxu0 0.0
        %3809 = vmatprep.subr.mxu0 0.0
        %3810 = vmatpush1.msra.mxu0 0.0
        %3811 = vmatprep.subr.mxu0 0.0
        %3812 = vmatpush1.msra.mxu0 0.0
        %3813 = vmatprep.subr.mxu0 0.0
        %3814 = vmatpush1.msra.mxu0 0.0
        %3815 = vmatprep.subr.mxu0 0.0
        %3816 = vmatpush1.msra.mxu0 0.0
        %3817 = vmatprep.subr.mxu0 0.0
        %3818 = vmatpush1.msra.mxu0 0.0
        %3819 = vmatprep.subr.mxu0 0.0
        %3820 = vmatpush1.msra.mxu0 0.0
        %3821 = vmatprep.subr.mxu0 0.0
        %3822 = vmatpush1.msra.mxu0 0.0
        %3823 = vmatprep.subr.mxu0 0.0
        %3824 = vmatpush1.msra.mxu0 0.0
        %3825 = vmatprep.subr.mxu0 0.0
        %3826 = vmatpush1.msra.mxu0 0.0
        %3827 = vmatprep.subr.mxu0 0.0
        %3828 = vmatpush1.msra.mxu0 0.0
        %3829 = vmatprep.subr.mxu0 0.0
        %3830 = vmatpush1.msra.mxu0 0.0
        %3831 = vmatprep.subr.mxu0 0.0
        %3832 = vmatpush1.msra.mxu0 0.0
        %3833 = vmatprep.subr.mxu0 0.0
        %3834 = vmatpush1.msra.mxu0 %v3803
        %3835 = vmatprep.subr.mxu0 0.0
        %3836 = vmatpush1.msra.mxu0 %v3752
        %3837 = vmatprep.subr.mxu0 0.0
        %3838 = vmatpush2.msra.mxu0 0.0
        %3839 = vmatprep.subr.mxu0 0.0
        %3840 = vmatpush2.msra.mxu0 0.0
        %3841 = vmatprep.subr.mxu0 0.0
        %3842 = vmatpush2.msra.mxu0 0.0
        %3843 = vmatprep.subr.mxu0 0.0
        %3844 = vmatpush2.msra.mxu0 0.0
        %3845 = vmatprep.subr.mxu0 0.0
        %3846 = vmatpush2.msra.mxu0 0.0
        %3847 = vmatprep.subr.mxu0 0.0
        %3848 = vmatpush2.msra.mxu0 0.0
        %3849 = vmatprep.subr.mxu0 0.0
        %3850 = vmatpush2.msra.mxu0 0.0
        %3851 = vmatprep.subr.mxu0 0.0
        %3852 = vmatpush2.msra.mxu0 0.0
        %3853 = vmatprep.subr.mxu0 0.0
        %3854 = vmatpush2.msra.mxu0 0.0
        %3855 = vmatprep.subr.mxu0 0.0
        %3856 = vmatpush2.msra.mxu0 0.0
        %3857 = vmatprep.subr.mxu0 0.0
        %3858 = vmatpush2.msra.mxu0 0.0
        %3859 = vmatprep.subr.mxu0 0.0
        %3860 = vmatpush2.msra.mxu0 0.0
        %3861 = vmatprep.subr.mxu0 0.0
        %3862 = vmatpush2.msra.mxu0 0.0
        %3863 = vmatprep.subr.mxu0 0.0
        %3864 = vmatpush2.msra.mxu0 0.0
        %3865 = vmatprep.subr.mxu0 0.0
        %3866 = vmatpush2.msra.mxu0 0.0
        %3867 = vmatprep.subr.mxu0 0.0
        %3868 = vmatpush2.msra.mxu0 0.0
        %3869 = vmatprep.mubr.f32.mxu0 0.0
        %3870 = vmatmul.mubr.f32.gmra.mxu0 %v3755
        %v3871 = vpop.f32.mrf.mxu0
        %v3872 = vadd.f32 0.0, %v3871
        %v3873 = vpop.f32.mrf.mxu0
        %3874 = vmatprep.mubr.f32.mxu0 0.0
        %3875 = vmatmul.mubr.f32.gmra.mxu0 %v3758
        %v3876 = vpop.f32.mrf.mxu0
        %v3877 = vadd.f32 0.0, %v3876
        %v3878 = vpop.f32.mrf.mxu0
        %3879 = vmatprep.mubr.f32.mxu0 0.0
        %3880 = vmatmul.mubr.f32.gmra.mxu0 %v3761
        %v3881 = vpop.f32.mrf.mxu0
        %v3882 = vadd.f32 0.0, %v3881
        %v3883 = vpop.f32.mrf.mxu0
        %3884 = vmatprep.mubr.f32.mxu0 0.0
        %3885 = vmatmul.mubr.f32.gmra.mxu0 %v3764
        %v3886 = vpop.f32.mrf.mxu0
        %v3887 = vadd.f32 0.0, %v3886
        %v3888 = vpop.f32.mrf.mxu0
        %3889 = vmatprep.mubr.f32.mxu0 0.0
        %3890 = vmatmul.mubr.f32.gmra.mxu0 %v3767
        %v3891 = vpop.f32.mrf.mxu0
        %v3892 = vadd.f32 0.0, %v3891
        %v3893 = vpop.f32.mrf.mxu0
        %3894 = vmatprep.mubr.f32.mxu0 0.0
        %3895 = vmatmul.mubr.f32.gmra.mxu0 %v3770
        %v3896 = vpop.f32.mrf.mxu0
        %v3897 = vadd.f32 0.0, %v3896
        %v3898 = vpop.f32.mrf.mxu0
        %3899 = vmatprep.mubr.f32.mxu0 0.0
        %3900 = vmatmul.mubr.f32.gmra.mxu0 %v3773
        %v3901 = vpop.f32.mrf.mxu0
        %v3902 = vadd.f32 0.0, %v3901
        %v3903 = vpop.f32.mrf.mxu0
        %3904 = vmatprep.mubr.f32.mxu0 0.0
        %3905 = vmatmul.mubr.f32.gmra.mxu0 %v3776
        %v3906 = vpop.f32.mrf.mxu0
        %v3907 = vadd.f32 0.0, %v3906
        %v3908 = vpop.f32.mrf.mxu0
        %3909 = vmatprep.mubr.f32.mxu0 0.0
        %3910 = vmatmul.mubr.f32.gmra.mxu0 %v3779
        %v3911 = vpop.f32.mrf.mxu0
        %v3912 = vadd.f32 0.0, %v3911
        %v3913 = vpop.f32.mrf.mxu0
        %3914 = vmatprep.mubr.f32.mxu0 0.0
        %3915 = vmatmul.mubr.f32.gmra.mxu0 %v3782
        %v3916 = vpop.f32.mrf.mxu0
        %v3917 = vadd.f32 0.0, %v3916
        %v3918 = vpop.f32.mrf.mxu0
        %3919 = vmatprep.mubr.f32.mxu0 0.0
        %3920 = vmatmul.mubr.f32.gmra.mxu0 %v3785
        %v3921 = vpop.f32.mrf.mxu0
        %v3922 = vadd.f32 0.0, %v3921
        %v3923 = vpop.f32.mrf.mxu0
        %3924 = vmatprep.mubr.f32.mxu0 0.0
        %3925 = vmatmul.mubr.f32.gmra.mxu0 %v3788
        %v3926 = vpop.f32.mrf.mxu0
        %v3927 = vadd.f32 0.0, %v3926
        %v3928 = vpop.f32.mrf.mxu0
        %3929 = vmatprep.mubr.f32.mxu0 0.0
        %3930 = vmatmul.mubr.f32.gmra.mxu0 %v3791
        %v3931 = vpop.f32.mrf.mxu0
        %v3932 = vadd.f32 0.0, %v3931
        %v3933 = vpop.f32.mrf.mxu0
        %3934 = vmatprep.mubr.f32.mxu0 0.0
        %3935 = vmatmul.mubr.f32.gmra.mxu0 %v3794
        %v3936 = vpop.f32.mrf.mxu0
        %v3937 = vadd.f32 0.0, %v3936
        %v3938 = vpop.f32.mrf.mxu0
        %3939 = vmatprep.mubr.f32.mxu0 0.0
        %3940 = vmatmul.mubr.f32.gmra.mxu0 %v3797
        %v3941 = vpop.f32.mrf.mxu0
        %v3942 = vadd.f32 0.0, %v3941
        %v3943 = vpop.f32.mrf.mxu0
        %3944 = vmatprep.mubr.f32.mxu0 0.0
        %3945 = vmatmul.mubr.f32.gmra.mxu0 %v3800
        %v3946 = vpop.f32.mrf.mxu0
        %v3947 = vadd.f32 0.0, %v3946
        %v3948 = vpop.f32.mrf.mxu0
        %3949 = vdwg.mxu0
        %v3950 = vadd.f32 %v3416, %v3872
        %v3951 = vadd.f32 %v3421, %v3877
        %v3952 = vadd.f32 %v3426, %v3882
        %v3953 = vadd.f32 %v3431, %v3887
        %v3954 = vadd.f32 %v3436, %v3892
        %v3955 = vadd.f32 %v3441, %v3897
        %v3956 = vadd.f32 %v3446, %v3902
        %v3957 = vadd.f32 %v3451, %v3907
        %v3958 = vadd.f32 %v3456, %v3912
        %v3959 = vadd.f32 %v3461, %v3917
        %v3960 = vadd.f32 %v3466, %v3922
        %v3961 = vadd.f32 %v3471, %v3927
        %v3962 = vadd.f32 %v3476, %v3932
        %v3963 = vadd.f32 %v3481, %v3937
        %v3964 = vadd.f32 %v3486, %v3942
        %v3965 = vadd.f32 %v3491, %v3947
        %v3966 = vld [vmem:[%s4 + $0x1] sm:$0x1]
        %v3967 = vlaneseq
        %v3968 = vshrl.u32 %v3967, 7
        %v3969 = vsub.s32 0, %v3968
        %v3970 = vrot.slane %v3966, %v3969
        %v3971 = vadd.f32 %v3950, %v3970
        %v3972 = vadd.f32 %v3951, %v3970
        %v3973 = vadd.f32 %v3952, %v3970
        %v3974 = vadd.f32 %v3953, %v3970
        %v3975 = vadd.f32 %v3954, %v3970
        %v3976 = vadd.f32 %v3955, %v3970
        %v3977 = vadd.f32 %v3956, %v3970
        %v3978 = vadd.f32 %v3957, %v3970
        %v3979 = vadd.f32 %v3958, %v3970
        %v3980 = vadd.f32 %v3959, %v3970
        %v3981 = vadd.f32 %v3960, %v3970
        %v3982 = vadd.f32 %v3961, %v3970
        %v3983 = vadd.f32 %v3962, %v3970
        %v3984 = vadd.f32 %v3963, %v3970
        %v3985 = vadd.f32 %v3964, %v3970
        %v3986 = vadd.f32 %v3965, %v3970
        %v3987 = vmax.f32 %v3971, 0.0
        %v3988 = vmax.f32 %v3972, 0.0
        %v3989 = vmax.f32 %v3973, 0.0
        %v3990 = vmax.f32 %v3974, 0.0
        %v3991 = vmax.f32 %v3975, 0.0
        %v3992 = vmax.f32 %v3976, 0.0
        %v3993 = vmax.f32 %v3977, 0.0
        %v3994 = vmax.f32 %v3978, 0.0
        %v3995 = vmax.f32 %v3979, 0.0
        %v3996 = vmax.f32 %v3980, 0.0
        %v3997 = vmax.f32 %v3981, 0.0
        %v3998 = vmax.f32 %v3982, 0.0
        %v3999 = vmax.f32 %v3983, 0.0
        %v4000 = vmax.f32 %v3984, 0.0
        %v4001 = vmax.f32 %v3985, 0.0
        %v4002 = vmax.f32 %v3986, 0.0
        %s4003 = scalar_lea.vmem %s5, 256
        %v4004 = vld [vmem:[%s4003] sm:$0xff]
        %v4005 = vld [vmem:[%s4003 + $0x8] sm:$0xff]
        %v4006 = vld [vmem:[%s4003 + $0x10] sm:$0xff]
        %v4007 = vld [vmem:[%s4003 + $0x18] sm:$0xff]
        %v4008 = vld [vmem:[%s4003 + $0x20] sm:$0xff]
        %v4009 = vld [vmem:[%s4003 + $0x28] sm:$0xff]
        %v4010 = vld [vmem:[%s4003 + $0x30] sm:$0xff]
        %v4011 = vld [vmem:[%s4003 + $0x38] sm:$0xff]
        %v4012 = vld [vmem:[%s4003 + $0x40] sm:$0xff]
        %v4013 = vld [vmem:[%s4003 + $0x48] sm:$0xff]
        %v4014 = vld [vmem:[%s4003 + $0x50] sm:$0xff]
        %v4015 = vld [vmem:[%s4003 + $0x58] sm:$0xff]
        %v4016 = vld [vmem:[%s4003 + $0x60] sm:$0xff]
        %v4017 = vld [vmem:[%s4003 + $0x68] sm:$0xff]
        %v4018 = vld [vmem:[%s4003 + $0x70] sm:$0xff]
        %v4019 = vld [vmem:[%s4003 + $0x78] sm:$0xff]
        %4020 = vmatprep.subr.mxu0 0.0
        %4021 = vmatpush1.msra.mxu0 %v4019
        %4022 = vmatprep.subr.mxu0 0.0
        %4023 = vmatpush1.msra.mxu0 %v4018
        %4024 = vmatprep.subr.mxu0 0.0
        %4025 = vmatpush1.msra.mxu0 %v4017
        %4026 = vmatprep.subr.mxu0 0.0
        %4027 = vmatpush1.msra.mxu0 %v4016
        %4028 = vmatprep.subr.mxu0 0.0
        %4029 = vmatpush1.msra.mxu0 %v4015
        %4030 = vmatprep.subr.mxu0 0.0
        %4031 = vmatpush1.msra.mxu0 %v4014
        %4032 = vmatprep.subr.mxu0 0.0
        %4033 = vmatpush1.msra.mxu0 %v4013
        %4034 = vmatprep.subr.mxu0 0.0
        %4035 = vmatpush1.msra.mxu0 %v4012
        %4036 = vmatprep.subr.mxu0 0.0
        %4037 = vmatpush1.msra.mxu0 %v4011
        %4038 = vmatprep.subr.mxu0 0.0
        %4039 = vmatpush1.msra.mxu0 %v4010
        %4040 = vmatprep.subr.mxu0 0.0
        %4041 = vmatpush1.msra.mxu0 %v4009
        %4042 = vmatprep.subr.mxu0 0.0
        %4043 = vmatpush1.msra.mxu0 %v4008
        %4044 = vmatprep.subr.mxu0 0.0
        %4045 = vmatpush1.msra.mxu0 %v4007
        %4046 = vmatprep.subr.mxu0 0.0
        %4047 = vmatpush1.msra.mxu0 %v4006
        %4048 = vmatprep.subr.mxu0 0.0
        %4049 = vmatpush1.msra.mxu0 %v4005
        %4050 = vmatprep.subr.mxu0 0.0
        %4051 = vmatpush1.msra.mxu0 %v4004
        %4052 = vmatprep.subr.mxu0 0.0
        %4053 = vmatpush2.msra.mxu0 0.0
        %4054 = vmatprep.subr.mxu0 0.0
        %4055 = vmatpush2.msra.mxu0 0.0
        %4056 = vmatprep.subr.mxu0 0.0
        %4057 = vmatpush2.msra.mxu0 0.0
        %4058 = vmatprep.subr.mxu0 0.0
        %4059 = vmatpush2.msra.mxu0 0.0
        %4060 = vmatprep.subr.mxu0 0.0
        %4061 = vmatpush2.msra.mxu0 0.0
        %4062 = vmatprep.subr.mxu0 0.0
        %4063 = vmatpush2.msra.mxu0 0.0
        %4064 = vmatprep.subr.mxu0 0.0
        %4065 = vmatpush2.msra.mxu0 0.0
        %4066 = vmatprep.subr.mxu0 0.0
        %4067 = vmatpush2.msra.mxu0 0.0
        %4068 = vmatprep.subr.mxu0 0.0
        %4069 = vmatpush2.msra.mxu0 0.0
        %4070 = vmatprep.subr.mxu0 0.0
        %4071 = vmatpush2.msra.mxu0 0.0
        %4072 = vmatprep.subr.mxu0 0.0
        %4073 = vmatpush2.msra.mxu0 0.0
        %4074 = vmatprep.subr.mxu0 0.0
        %4075 = vmatpush2.msra.mxu0 0.0
        %4076 = vmatprep.subr.mxu0 0.0
        %4077 = vmatpush2.msra.mxu0 0.0
        %4078 = vmatprep.subr.mxu0 0.0
        %4079 = vmatpush2.msra.mxu0 0.0
        %4080 = vmatprep.subr.mxu0 0.0
        %4081 = vmatpush2.msra.mxu0 0.0
        %4082 = vmatprep.subr.mxu0 0.0
        %4083 = vmatpush2.msra.mxu0 0.0
        %4084 = vmatprep.mubr.f32.mxu0 0.0
        %4085 = vmatmul.mubr.f32.gmra.mxu0 %v3987
        %v4086 = vpop.f32.mrf.mxu0
        %v4087 = vadd.f32 0.0, %v4086
        %v4088 = vpop.f32.mrf.mxu0
        %4089 = vmatprep.mubr.f32.mxu0 0.0
        %4090 = vmatmul.mubr.f32.gmra.mxu0 %v3988
        %v4091 = vpop.f32.mrf.mxu0
        %v4092 = vadd.f32 0.0, %v4091
        %v4093 = vpop.f32.mrf.mxu0
        %4094 = vmatprep.mubr.f32.mxu0 0.0
        %4095 = vmatmul.mubr.f32.gmra.mxu0 %v3989
        %v4096 = vpop.f32.mrf.mxu0
        %v4097 = vadd.f32 0.0, %v4096
        %v4098 = vpop.f32.mrf.mxu0
        %4099 = vmatprep.mubr.f32.mxu0 0.0
        %4100 = vmatmul.mubr.f32.gmra.mxu0 %v3990
        %v4101 = vpop.f32.mrf.mxu0
        %v4102 = vadd.f32 0.0, %v4101
        %v4103 = vpop.f32.mrf.mxu0
        %4104 = vmatprep.mubr.f32.mxu0 0.0
        %4105 = vmatmul.mubr.f32.gmra.mxu0 %v3991
        %v4106 = vpop.f32.mrf.mxu0
        %v4107 = vadd.f32 0.0, %v4106
        %v4108 = vpop.f32.mrf.mxu0
        %4109 = vmatprep.mubr.f32.mxu0 0.0
        %4110 = vmatmul.mubr.f32.gmra.mxu0 %v3992
        %v4111 = vpop.f32.mrf.mxu0
        %v4112 = vadd.f32 0.0, %v4111
        %v4113 = vpop.f32.mrf.mxu0
        %4114 = vmatprep.mubr.f32.mxu0 0.0
        %4115 = vmatmul.mubr.f32.gmra.mxu0 %v3993
        %v4116 = vpop.f32.mrf.mxu0
        %v4117 = vadd.f32 0.0, %v4116
        %v4118 = vpop.f32.mrf.mxu0
        %4119 = vmatprep.mubr.f32.mxu0 0.0
        %4120 = vmatmul.mubr.f32.gmra.mxu0 %v3994
        %v4121 = vpop.f32.mrf.mxu0
        %v4122 = vadd.f32 0.0, %v4121
        %v4123 = vpop.f32.mrf.mxu0
        %4124 = vmatprep.mubr.f32.mxu0 0.0
        %4125 = vmatmul.mubr.f32.gmra.mxu0 %v3995
        %v4126 = vpop.f32.mrf.mxu0
        %v4127 = vadd.f32 0.0, %v4126
        %v4128 = vpop.f32.mrf.mxu0
        %4129 = vmatprep.mubr.f32.mxu0 0.0
        %4130 = vmatmul.mubr.f32.gmra.mxu0 %v3996
        %v4131 = vpop.f32.mrf.mxu0
        %v4132 = vadd.f32 0.0, %v4131
        %v4133 = vpop.f32.mrf.mxu0
        %4134 = vmatprep.mubr.f32.mxu0 0.0
        %4135 = vmatmul.mubr.f32.gmra.mxu0 %v3997
        %v4136 = vpop.f32.mrf.mxu0
        %v4137 = vadd.f32 0.0, %v4136
        %v4138 = vpop.f32.mrf.mxu0
        %4139 = vmatprep.mubr.f32.mxu0 0.0
        %4140 = vmatmul.mubr.f32.gmra.mxu0 %v3998
        %v4141 = vpop.f32.mrf.mxu0
        %v4142 = vadd.f32 0.0, %v4141
        %v4143 = vpop.f32.mrf.mxu0
        %4144 = vmatprep.mubr.f32.mxu0 0.0
        %4145 = vmatmul.mubr.f32.gmra.mxu0 %v3999
        %v4146 = vpop.f32.mrf.mxu0
        %v4147 = vadd.f32 0.0, %v4146
        %v4148 = vpop.f32.mrf.mxu0
        %4149 = vmatprep.mubr.f32.mxu0 0.0
        %4150 = vmatmul.mubr.f32.gmra.mxu0 %v4000
        %v4151 = vpop.f32.mrf.mxu0
        %v4152 = vadd.f32 0.0, %v4151
        %v4153 = vpop.f32.mrf.mxu0
        %4154 = vmatprep.mubr.f32.mxu0 0.0
        %4155 = vmatmul.mubr.f32.gmra.mxu0 %v4001
        %v4156 = vpop.f32.mrf.mxu0
        %v4157 = vadd.f32 0.0, %v4156
        %v4158 = vpop.f32.mrf.mxu0
        %4159 = vmatprep.mubr.f32.mxu0 0.0
        %4160 = vmatmul.mubr.f32.gmra.mxu0 %v4002
        %v4161 = vpop.f32.mrf.mxu0
        %v4162 = vadd.f32 0.0, %v4161
        %v4163 = vpop.f32.mrf.mxu0
        %4164 = vdwg.mxu0
        %v4165 = vadd.f32 %v2594, %v4087
        %v4166 = vadd.f32 %v2599, %v4092
        %v4167 = vadd.f32 %v2604, %v4097
        %v4168 = vadd.f32 %v2609, %v4102
        %v4169 = vadd.f32 %v2614, %v4107
        %v4170 = vadd.f32 %v2619, %v4112
        %v4171 = vadd.f32 %v2624, %v4117
        %v4172 = vadd.f32 %v2629, %v4122
        %v4173 = vadd.f32 %v2634, %v4127
        %v4174 = vadd.f32 %v2639, %v4132
        %v4175 = vadd.f32 %v2644, %v4137
        %v4176 = vadd.f32 %v2649, %v4142
        %v4177 = vadd.f32 %v2654, %v4147
        %v4178 = vadd.f32 %v2659, %v4152
        %v4179 = vadd.f32 %v2664, %v4157
        %v4180 = vadd.f32 %v2669, %v4162
        %v4181 = vld [vmem:[%s347] sm:$0x1]
        %v4183 = vlaneseq
        %v4184 = vshrl.u32 %v4183, 7
        %v4185 = vsub.s32 0, %v4184
        %v4186 = vrot.slane %v4181, %v4185
        %v4188 = vadd.f32 %v4165, %v4186
        %v4189 = vadd.f32 %v4166, %v4186
        %v4190 = vadd.f32 %v4167, %v4186
        %v4191 = vadd.f32 %v4168, %v4186
        %v4192 = vadd.f32 %v4169, %v4186
        %v4193 = vadd.f32 %v4170, %v4186
        %v4194 = vadd.f32 %v4171, %v4186
        %v4195 = vadd.f32 %v4172, %v4186
        %v4196 = vadd.f32 %v4173, %v4186
        %v4197 = vadd.f32 %v4174, %v4186
        %v4198 = vadd.f32 %v4175, %v4186
        %v4199 = vadd.f32 %v4176, %v4186
        %v4200 = vadd.f32 %v4177, %v4186
        %v4201 = vadd.f32 %v4178, %v4186
        %v4202 = vadd.f32 %v4179, %v4186
        %v4203 = vadd.f32 %v4180, %v4186
        %v4204 = vld [vmem:[%s7] sm:$0x1]
        %v4206 = vlaneseq
        %v4207 = vshrl.u32 %v4206, 7
        %v4208 = vsub.s32 0, %v4207
        %v4209 = vrot.slane %v4204, %v4208
        %v4211 = vadd.f32 %v4188, %v4209
        %v4212 = vadd.f32 %v4189, %v4209
        %v4213 = vadd.f32 %v4190, %v4209
        %v4214 = vadd.f32 %v4191, %v4209
        %v4215 = vadd.f32 %v4192, %v4209
        %v4216 = vadd.f32 %v4193, %v4209
        %v4217 = vadd.f32 %v4194, %v4209
        %v4218 = vadd.f32 %v4195, %v4209
        %v4219 = vadd.f32 %v4196, %v4209
        %v4220 = vadd.f32 %v4197, %v4209
        %v4221 = vadd.f32 %v4198, %v4209
        %v4222 = vadd.f32 %v4199, %v4209
        %v4223 = vadd.f32 %v4200, %v4209
        %v4224 = vadd.f32 %v4201, %v4209
        %v4225 = vadd.f32 %v4202, %v4209
        %v4226 = vadd.f32 %v4203, %v4209
        %v4227 = vmax.f32 %v4211, 0.0
        %v4228 = vmax.f32 %v4212, 0.0
        %v4229 = vmax.f32 %v4213, 0.0
        %v4230 = vmax.f32 %v4214, 0.0
        %v4231 = vmax.f32 %v4215, 0.0
        %v4232 = vmax.f32 %v4216, 0.0
        %v4233 = vmax.f32 %v4217, 0.0
        %v4234 = vmax.f32 %v4218, 0.0
        %v4235 = vmax.f32 %v4219, 0.0
        %v4236 = vmax.f32 %v4220, 0.0
        %v4237 = vmax.f32 %v4221, 0.0
        %v4238 = vmax.f32 %v4222, 0.0
        %v4239 = vmax.f32 %v4223, 0.0
        %v4240 = vmax.f32 %v4224, 0.0
        %v4241 = vmax.f32 %v4225, 0.0
        %v4242 = vmax.f32 %v4226, 0.0
        %4243 = vst [vmem:[%s335] sm:$0xff] %v4227
        %4244 = vst [vmem:[%s335 + $0x8] sm:$0xff] %v4228
        %4245 = vst [vmem:[%s335 + $0x10] sm:$0xff] %v4229
        %4246 = vst [vmem:[%s335 + $0x18] sm:$0xff] %v4230
        %4247 = vst [vmem:[%s335 + $0x20] sm:$0xff] %v4231
        %4248 = vst [vmem:[%s335 + $0x28] sm:$0xff] %v4232
        %4249 = vst [vmem:[%s335 + $0x30] sm:$0xff] %v4233
        %4250 = vst [vmem:[%s335 + $0x38] sm:$0xff] %v4234
        %4251 = vst [vmem:[%s335 + $0x40] sm:$0xff] %v4235
        %4252 = vst [vmem:[%s335 + $0x48] sm:$0xff] %v4236
        %4253 = vst [vmem:[%s335 + $0x50] sm:$0xff] %v4237
        %4254 = vst [vmem:[%s335 + $0x58] sm:$0xff] %v4238
        %4255 = vst [vmem:[%s335 + $0x60] sm:$0xff] %v4239
        %4256 = vst [vmem:[%s335 + $0x68] sm:$0xff] %v4240
        %4257 = vst [vmem:[%s335 + $0x70] sm:$0xff] %v4241
        %4258 = vst [vmem:[%s335 + $0x78] sm:$0xff] %v4242
        %s4259 = sand.u32 %s228, 1
        %s4260 = scalar_lea.sflag [#allocation3], %s4259
        %s4261 = sand.u32 %s228, 1
        %s4262 = smul.addr %s4261, 128
        %s4263 = scalar_lea.vmem [#allocation2], %s4262
        // Predicated region
        $region53: #{tpu_custom_call.1} parent=51 // pred_check
          %p4264 = pneg %p238
        $region54: #{tpu_custom_call.1} parent=51 // pred_check_branch
          %4266 = sbr.rel (%p4264) target = $region56
        $region55: #{tpu_custom_call.1} parent=51 // pred_region
          %s4267 = smul.u32 %s26, 2
          %s4268 = sadd.s32 %s4267, %s27
          %s4269 = smul.u32 16, %s4268
          %s4271 = ssub.s32 2048, 2048
          %4272 = vsyncadd %s4260, %s4271
          %s4273 = smul.addr %s4269, 128
          %s4274 = scalar_lea.hbm %s8, %s4273
          %s4275 = sshll.u32 %s4263, 4
          %s4276 = int_to_ptr.vmem [resolvable:$true] %s4275
          %4281 = dma.vmem_to_hbm [thread:$0]  %s4276, 2048, %s4274, %s4260, 128, 128, 8
        $region56: #{tpu_custom_call.1} parent=51 // pred_fallthru
          _
      $region52: #{tpu_custom_call.1} parent=5 // pred_fallthru
        _
      %p4282 = scmp.le.s32.totalorder 2, %s17
      // Predicated region
      $region57: #{tpu_custom_call.1} parent=5 // pred_check
        %p4283 = pneg %p4282
      $region58: #{tpu_custom_call.1} parent=5 // pred_check_branch
        %4285 = sbr.rel (%p4283) target = $region60
      $region59: #{tpu_custom_call.1} parent=5 // pred_region
        %s4286 = ssub.s32 %s17, 2
        // Predicated region
        $region61: #{tpu_custom_call.1} parent=59 // pred_check
          %p4287 = pneg %p244
        $region62: #{tpu_custom_call.1} parent=59 // pred_check_branch
          %4289 = sbr.rel (%p4287) target = $region64
        $region63: #{tpu_custom_call.1} parent=59 // pred_region
          %s4290 = sand.u32 %s229, 1
          %s4291 = scalar_lea.sflag [#allocation3], %s4290
          %s4292 = sand.u32 %s229, 1
          %s4293 = smul.addr %s4292, 128
          %s4294 = scalar_lea.vmem [#allocation2], %s4293
          %4295 = dma.done %s4291, 2048
        $region64: #{tpu_custom_call.1} parent=59 // pred_fallthru
          _
      $region60: #{tpu_custom_call.1} parent=5 // pred_fallthru
        _
    $region6: #{tpu_custom_call.1} parent=1 // loop_footer
      %s21 = sadd.s32 1, %s17
    $region7: #{tpu_custom_call.1} parent=1 // loop_footer_branch
      %16 = sbr.rel target = $region3
    $region8: #{tpu_custom_call.1} parent=1 // loop_exit
      _
    %4296 = vsyncpa [#allocation3], 1
    %s4297 = scalar_lea.sflag [#allocation3], 1
    %4298 = vsyncpa %s4297, 1

</llo_original>
